<compile_context>
chip_gen: v7x
topology: tpu7x:2x2x1
jax: 0.10.0
libtpu: 0.0.40
codegen_flags: <defaults>
</compile_context>

<pallas_src>
import jax
import jax.numpy as jnp
from jax.experimental import pallas as pl
from jax.experimental.pallas import tpu as pltpu

NP = 128  # lane-padded output-channel / feature width


# ----------------------------- Pallas kernels ------------------------------

def _conv_block_kernel(p_ref, w_ref, b_ref, o_ref):
    """Fused conv-as-matmul + 2x2 max-pool + bias + ReLU.

    p_ref: (4, TM, K) bf16 im2col patches, quadrant-major (the 4 positions of
           each 2x2 pooling window are the leading axis).
    w_ref: (K, NP)    bf16 conv weights, output channels zero-padded to NP.
    b_ref: (1, NP)    f32 bias, zero-padded.
    o_ref: (TM, NP)   bf16, one row per pooled output pixel.
    """
    tm = o_ref.shape[0]
    k = p_ref.shape[2]
    p = p_ref[...].reshape(4 * tm, k)                 # layout-free collapse
    r = jnp.dot(p, w_ref[...], preferred_element_type=jnp.float32)  # (4*TM, NP)
    m = jnp.maximum(jnp.maximum(r[0 * tm:1 * tm], r[1 * tm:2 * tm]),
                    jnp.maximum(r[2 * tm:3 * tm], r[3 * tm:4 * tm]))
    # max(relu(x+b)) == relu(max(x)+b): bias identical across quadrants.
    o_ref[...] = jnp.maximum(m + b_ref[...], 0.0).astype(o_ref.dtype)


def _fc3_kernel(x_ref, w1_ref, b1_ref, w2_ref, b2_ref, w3_ref, b3_ref, o_ref):
    """fc1+ReLU -> fc2+ReLU -> out, all weights resident in VMEM."""
    h = jnp.dot(x_ref[...], w1_ref[...], preferred_element_type=jnp.float32) + b1_ref[...]
    h = jnp.maximum(h, 0.0).astype(jnp.bfloat16)
    h = jnp.dot(h, w2_ref[...], preferred_element_type=jnp.float32) + b2_ref[...]
    h = jnp.maximum(h, 0.0).astype(jnp.bfloat16)
    o_ref[...] = (jnp.dot(h, w3_ref[...], preferred_element_type=jnp.float32)
                  + b3_ref[...]).astype(o_ref.dtype)


# ----------------------------- kernel wrappers ------------------------------

def _pick_tm(m, cap):
    """Row-tile size: multiple of 16 (bf16 sublane tile), <= cap, and -- when the
    problem is big enough -- chosen so the grid has >= 2 steps (v7x 2-TC sharding
    and DMA/compute overlap) while staying large enough to amortize the ~0.35us
    per-grid-step overhead."""
    if m <= 16:
        return m                                      # single full-extent block
    half = (m + 1) // 2
    return min(cap, ((half + 15) // 16) * 16)


def conv_block_pallas(patches, w, b):
    """patches: (4, Mq, K) bf16; w: (K, NP) bf16; b: (1, NP) f32 -> (Mq, NP) bf16."""
    _, mq, k = patches.shape
    tm = _pick_tm(mq, 512)
    grid = (pl.cdiv(mq, tm),)
    return pl.pallas_call(
        _conv_block_kernel,
        out_shape=jax.ShapeDtypeStruct((mq, NP), jnp.bfloat16),
        grid=grid,
        in_specs=[
            pl.BlockSpec((4, tm, k), lambda i: (0, i, 0)),
            pl.BlockSpec((k, NP), lambda i: (0, 0)),
            pl.BlockSpec((1, NP), lambda i: (0, 0)),
        ],
        out_specs=pl.BlockSpec((tm, NP), lambda i: (i, 0)),
        compiler_params=pltpu.CompilerParams(dimension_semantics=("parallel",)),
    )(patches, w, b)


def fc3_pallas(x, w1, b1, w2, b2, w3, b3):
    """x: (M, 400) bf16; weights bf16 pre-padded to N=128 -> (M, NP) f32."""
    m, k = x.shape
    tm = _pick_tm(m, 256)
    grid = (pl.cdiv(m, tm),)

    def full(shp):
        return pl.BlockSpec(shp, lambda i: (0, 0))

    return pl.pallas_call(
        _fc3_kernel,
        out_shape=jax.ShapeDtypeStruct((m, NP), jnp.float32),
        grid=grid,
        in_specs=[
            pl.BlockSpec((tm, k), lambda i: (i, 0)),
            full(w1.shape), full(b1.shape),
            full(w2.shape), full(b2.shape),
            full(w3.shape), full(b3.shape),
        ],
        out_specs=pl.BlockSpec((tm, NP), lambda i: (i, 0)),
        compiler_params=pltpu.CompilerParams(dimension_semantics=("parallel",)),
    )(x, w1, b1, w2, b2, w3, b3)


# --------------------------------- glue -------------------------------------

def im2col_pooled_nhwc(x, kh_, kw_):
    """x: (B, H, W, C) NHWC -> patches (4, B*(Ho//2)*(Wo//2), KH*KW*C).

    K is ordered (kh, kw, c) to match weights stored as transpose(2,3,1,0).
    The 4 positions of each 2x2 pool window form the leading axis so the conv
    kernel fuses the pool as an elementwise max of the 4 result blocks.
    """
    b, h, w, c = x.shape
    ho, wo = h - kh_ + 1, w - kw_ + 1
    hp, wp = ho // 2, wo // 2
    k = kh_ * kw_ * c
    cols = jnp.stack(
        [x[:, i:i + ho, j:j + wo, :] for i in range(kh_) for j in range(kw_)],
        axis=3)                                   # (B, Ho, Wo, KH*KW, C)
    cols = cols.reshape(b, hp, 2, wp, 2, k)       # oh = 2i+dr, ow = 2j+dc
    cols = cols.transpose(2, 4, 0, 1, 3, 5)       # (dr, dc, B, i, j, K)
    return cols.reshape(4, b * hp * wp, k)


# ------------------------------- parameters ---------------------------------

def _uniform(key, shape, fan_in):
    bound = 1.0 / jnp.sqrt(jnp.float32(fan_in))
    return jax.random.uniform(key, shape, jnp.float32, -bound, bound)


def _pad2d(a, rows, cols):
    return jnp.pad(a, ((0, rows - a.shape[0]), (0, cols - a.shape[1])))


def init_params(key):
    """PyTorch-style init.  Weights are permuted once to NHWC-friendly row
    order, transposed, zero-padded to N=128 lanes and cast to bf16 so the
    kernels always see lane-dense MXU operands.  Zero padding is exact: padded
    rows/lanes contribute 0 and are sliced off.  Biases stay f32."""
    ks = jax.random.split(key, 10)
    c1w = _uniform(ks[0], (6, 3, 5, 5), 3 * 5 * 5)
    c1b = _uniform(ks[1], (6,), 3 * 5 * 5)
    c2w = _uniform(ks[2], (16, 6, 5, 5), 6 * 5 * 5)
    c2b = _uniform(ks[3], (16,), 6 * 5 * 5)
    f1w = _uniform(ks[4], (120, 400), 400)    # PyTorch Linear layout (out, in)
    f1b = _uniform(ks[5], (120,), 400)
    f2w = _uniform(ks[6], (84, 120), 120)
    f2b = _uniform(ks[7], (84,), 120)
    f3w = _uniform(ks[8], (10, 84), 84)
    f3b = _uniform(ks[9], (10,), 84)

    bf16 = jnp.bfloat16
    # Conv weights: rows ordered (kh, kw, cin) to match NHWC im2col.
    c1 = c1w.transpose(2, 3, 1, 0).reshape(75, 6)
    c2 = c2w.transpose(2, 3, 1, 0).reshape(150, 16)
    # fc1: PyTorch flatten order is (c, h, w); permute rows to (h, w, c) so the
    # NHWC conv2 output can be flattened with no transpose.
    f1 = f1w.reshape(120, 16, 5, 5).transpose(0, 2, 3, 1).reshape(120, 400).T
    return {
        "conv1_w": _pad2d(c1, 75, NP).astype(bf16),            # (75, 128)
        "conv1_b": _pad2d(c1b.reshape(1, 6), 1, NP),
        "conv2_w": _pad2d(c2, 150, NP).astype(bf16),            # (150, 128)
        "conv2_b": _pad2d(c2b.reshape(1, 16), 1, NP),
        "fc1_w": _pad2d(f1, 400, NP).astype(bf16),              # (400, 128)
        "fc1_b": _pad2d(f1b.reshape(1, 120), 1, NP),
        "fc2_w": _pad2d(f2w.T, NP, NP).astype(bf16),            # (128, 128)
        "fc2_b": _pad2d(f2b.reshape(1, 84), 1, NP),
        "out_w": _pad2d(f3w.T, NP, NP).astype(bf16),            # (128, 128)
        "out_b": _pad2d(f3b.reshape(1, 10), 1, NP),
    }


# --------------------------------- forward ----------------------------------

@jax.jit
def net_forward(params, x):
    # x: (B, 3, 32, 32) NCHW float32 (PyTorch convention at the boundary).
    B = x.shape[0]
    x = jnp.transpose(x, (0, 2, 3, 1)).astype(jnp.bfloat16)      # NHWC, bf16
    # conv1 -> ReLU -> 2x2 max-pool        (ONE fused pallas_call)
    p1 = im2col_pooled_nhwc(x, 5, 5)                             # (4, B*196, 75)
    o1 = conv_block_pallas(p1, params["conv1_w"], params["conv1_b"])
    y1 = o1[:, :6].reshape(B, 14, 14, 6)                         # NHWC, no transpose
    # conv2 -> ReLU -> 2x2 max-pool        (ONE fused pallas_call)
    p2 = im2col_pooled_nhwc(y1, 5, 5)                            # (4, B*25, 150)
    o2 = conv_block_pallas(p2, params["conv2_w"], params["conv2_b"])
    # rows are (b, h, w); lanes :16 are channels -> flatten is (h, w, c) order,
    # matching the permuted fc1 weights (== PyTorch view(-1, 400) semantics).
    xf = o2[:, :16].reshape(B, 16 * 5 * 5)                       # (B, 400) bf16
    # fc1+ReLU -> fc2+ReLU -> out          (ONE fused pallas_call)
    o3 = fc3_pallas(xf, params["fc1_w"], params["fc1_b"],
                    params["fc2_w"], params["fc2_b"],
                    params["out_w"], params["out_b"])            # (B, 128) f32
    return o3[:, :10]


if __name__ == "__main__":
    key = jax.random.PRNGKey(0)
    k_param, k_x = jax.random.split(key)
    params = init_params(k_param)
    # 32x32 spatial is required by the module's own view(-1, 16*5*5).
    x = jax.random.normal(k_x, (2, 3, 32, 32), dtype=jnp.float32)
    y = net_forward(params, x)
    jax.block_until_ready(y)
    assert y.shape == (2, 10) and y.dtype == jnp.float32
    print("KERNEL_OK")
</pallas_src>

<mosaic_0001>
module attributes {stable_mosaic.version = 11 : i64} {
  func.func @_conv_block_kernel(%arg0: i32, %arg1: memref<4x208x75xbf16, #tpu.memory_space<vmem>>, %arg2: memref<75x128xbf16, #tpu.memory_space<vmem>>, %arg3: memref<1x128xf32, #tpu.memory_space<vmem>>, %arg4: memref<208x128xbf16, #tpu.memory_space<vmem>>) attributes {dimension_semantics = [#tpu.dimension_semantics<parallel>], iteration_bounds = array<i64: 2>, scalar_prefetch = 0 : i64, scratch_operands = 0 : i64, tpu.core_type = #tpu.core_type<tc>, window_params = [{transform_indices = @transform_0, window_bounds = array<i64: 4, 208, 75>}, {pipeline_mode = #tpu.pipeline_mode<synchronous>, transform_indices = @transform_1, window_bounds = array<i64: 75, 128>}, {pipeline_mode = #tpu.pipeline_mode<synchronous>, transform_indices = @transform_2, window_bounds = array<i64: 1, 128>}, {transform_indices = @transform_3, window_bounds = array<i64: 208, 128>}]} {
    %c0 = arith.constant 0 : index
    %c0_0 = arith.constant 0 : index
    %c0_1 = arith.constant 0 : index
    %0 = vector.load %arg1[%c0, %c0_0, %c0_1] : memref<4x208x75xbf16, #tpu.memory_space<vmem>>, vector<4x208x75xbf16>
    %1 = vector.shape_cast %0 : vector<4x208x75xbf16> to vector<832x75xbf16>
    %c0_2 = arith.constant 0 : index
    %c0_3 = arith.constant 0 : index
    %2 = vector.load %arg2[%c0_2, %c0_3] : memref<75x128xbf16, #tpu.memory_space<vmem>>, vector<75x128xbf16>
    %cst = arith.constant dense<0.000000e+00> : vector<832x128xf32>
    %3 = tpu.matmul %1, %2, %cst {dimension_numbers = #tpu.dot_dimension_numbers<[1], [0], [0], [1], [0, 0, 1, 1], [], []>} : vector<832x75xbf16>, vector<75x128xbf16>, vector<832x128xf32> -> vector<832x128xf32>
    %4 = vector.extract_strided_slice %3 {offsets = [0, 0], sizes = [208, 128], strides = [1, 1]} : vector<832x128xf32> to vector<208x128xf32>
    %5 = vector.extract_strided_slice %3 {offsets = [208, 0], sizes = [208, 128], strides = [1, 1]} : vector<832x128xf32> to vector<208x128xf32>
    %6 = arith.maximumf %4, %5 : vector<208x128xf32>
    %7 = vector.extract_strided_slice %3 {offsets = [416, 0], sizes = [208, 128], strides = [1, 1]} : vector<832x128xf32> to vector<208x128xf32>
    %8 = vector.extract_strided_slice %3 {offsets = [624, 0], sizes = [208, 128], strides = [1, 1]} : vector<832x128xf32> to vector<208x128xf32>
    %9 = arith.maximumf %7, %8 : vector<208x128xf32>
    %10 = arith.maximumf %6, %9 : vector<208x128xf32>
    %c0_4 = arith.constant 0 : index
    %c0_5 = arith.constant 0 : index
    %11 = vector.load %arg3[%c0_4, %c0_5] : memref<1x128xf32, #tpu.memory_space<vmem>>, vector<1x128xf32>
    %12 = vector.broadcast %11 : vector<1x128xf32> to vector<208x128xf32>
    %13 = arith.addf %10, %12 : vector<208x128xf32>
    %cst_6 = arith.constant 0.000000e+00 : f32
    %14 = vector.broadcast %cst_6 : f32 to vector<208x128xf32>
    %15 = arith.maximumf %13, %14 : vector<208x128xf32>
    %16 = arith.truncf %15 : vector<208x128xf32> to vector<208x128xbf16>
    %c0_7 = arith.constant 0 : index
    %c0_8 = arith.constant 0 : index
    %17 = vector.load %arg4[%c0_7, %c0_8] : memref<208x128xbf16, #tpu.memory_space<vmem>>, vector<208x128xbf16>
    tpu.vector_store %arg4[%c0_7, %c0_8], %16 {strides = array<i32>} : memref<208x128xbf16, #tpu.memory_space<vmem>>, vector<208x128xbf16>,
    return
  }
  func.func @transform_0(%arg0: i32) -> (i32, i32, i32) {
    %c0_i32 = arith.constant 0 : i32
    %c0_i32_0 = arith.constant 0 : i32
    %c0_i32_1 = arith.constant 0 : i32
    return %c0_i32, %arg0, %c0_i32_0 : i32, i32, i32
  }
  func.func @transform_1(%arg0: i32) -> (i32, i32) {
    %c0_i32 = arith.constant 0 : i32
    %c0_i32_0 = arith.constant 0 : i32
    %c0_i32_1 = arith.constant 0 : i32
    return %c0_i32, %c0_i32_0 : i32, i32
  }
  func.func @transform_2(%arg0: i32) -> (i32, i32) {
    %c0_i32 = arith.constant 0 : i32
    %c0_i32_0 = arith.constant 0 : i32
    %c0_i32_1 = arith.constant 0 : i32
    return %c0_i32, %c0_i32_0 : i32, i32
  }
  func.func @transform_3(%arg0: i32) -> (i32, i32) {
    %c0_i32 = arith.constant 0 : i32
    %c0_i32_0 = arith.constant 0 : i32
    return %arg0, %c0_i32 : i32, i32
  }
}

module attributes {stable_mosaic.version = 11 : i64} {
  func.func @_conv_block_kernel(%arg0: i32, %arg1: memref<4x32x150xbf16, #tpu.memory_space<vmem>>, %arg2: memref<150x128xbf16, #tpu.memory_space<vmem>>, %arg3: memref<1x128xf32, #tpu.memory_space<vmem>>, %arg4: memref<32x128xbf16, #tpu.memory_space<vmem>>) attributes {dimension_semantics = [#tpu.dimension_semantics<parallel>], iteration_bounds = array<i64: 2>, scalar_prefetch = 0 : i64, scratch_operands = 0 : i64, tpu.core_type = #tpu.core_type<tc>, window_params = [{transform_indices = @transform_0, window_bounds = array<i64: 4, 32, 150>}, {pipeline_mode = #tpu.pipeline_mode<synchronous>, transform_indices = @transform_1, window_bounds = array<i64: 150, 128>}, {pipeline_mode = #tpu.pipeline_mode<synchronous>, transform_indices = @transform_2, window_bounds = array<i64: 1, 128>}, {transform_indices = @transform_3, window_bounds = array<i64: 32, 128>}]} {
    %c0 = arith.constant 0 : index
    %c0_0 = arith.constant 0 : index
    %c0_1 = arith.constant 0 : index
    %0 = vector.load %arg1[%c0, %c0_0, %c0_1] : memref<4x32x150xbf16, #tpu.memory_space<vmem>>, vector<4x32x150xbf16>
    %1 = vector.shape_cast %0 : vector<4x32x150xbf16> to vector<128x150xbf16>
    %c0_2 = arith.constant 0 : index
    %c0_3 = arith.constant 0 : index
    %2 = vector.load %arg2[%c0_2, %c0_3] : memref<150x128xbf16, #tpu.memory_space<vmem>>, vector<150x128xbf16>
    %cst = arith.constant dense<0.000000e+00> : vector<128x128xf32>
    %3 = tpu.matmul %1, %2, %cst {dimension_numbers = #tpu.dot_dimension_numbers<[1], [0], [0], [1], [0, 0, 1, 1], [], []>} : vector<128x150xbf16>, vector<150x128xbf16>, vector<128x128xf32> -> vector<128x128xf32>
    %4 = vector.extract_strided_slice %3 {offsets = [0, 0], sizes = [32, 128], strides = [1, 1]} : vector<128x128xf32> to vector<32x128xf32>
    %5 = vector.extract_strided_slice %3 {offsets = [32, 0], sizes = [32, 128], strides = [1, 1]} : vector<128x128xf32> to vector<32x128xf32>
    %6 = arith.maximumf %4, %5 : vector<32x128xf32>
    %7 = vector.extract_strided_slice %3 {offsets = [64, 0], sizes = [32, 128], strides = [1, 1]} : vector<128x128xf32> to vector<32x128xf32>
    %8 = vector.extract_strided_slice %3 {offsets = [96, 0], sizes = [32, 128], strides = [1, 1]} : vector<128x128xf32> to vector<32x128xf32>
    %9 = arith.maximumf %7, %8 : vector<32x128xf32>
    %10 = arith.maximumf %6, %9 : vector<32x128xf32>
    %c0_4 = arith.constant 0 : index
    %c0_5 = arith.constant 0 : index
    %11 = vector.load %arg3[%c0_4, %c0_5] : memref<1x128xf32, #tpu.memory_space<vmem>>, vector<1x128xf32>
    %12 = vector.broadcast %11 : vector<1x128xf32> to vector<32x128xf32>
    %13 = arith.addf %10, %12 : vector<32x128xf32>
    %cst_6 = arith.constant 0.000000e+00 : f32
    %14 = vector.broadcast %cst_6 : f32 to vector<32x128xf32>
    %15 = arith.maximumf %13, %14 : vector<32x128xf32>
    %16 = arith.truncf %15 : vector<32x128xf32> to vector<32x128xbf16>
    %c0_7 = arith.constant 0 : index
    %c0_8 = arith.constant 0 : index
    %17 = vector.load %arg4[%c0_7, %c0_8] : memref<32x128xbf16, #tpu.memory_space<vmem>>, vector<32x128xbf16>
    tpu.vector_store %arg4[%c0_7, %c0_8], %16 {strides = array<i32>} : memref<32x128xbf16, #tpu.memory_space<vmem>>, vector<32x128xbf16>,
    return
  }
  func.func @transform_0(%arg0: i32) -> (i32, i32, i32) {
    %c0_i32 = arith.constant 0 : i32
    %c0_i32_0 = arith.constant 0 : i32
    %c0_i32_1 = arith.constant 0 : i32
    return %c0_i32, %arg0, %c0_i32_0 : i32, i32, i32
  }
  func.func @transform_1(%arg0: i32) -> (i32, i32) {
    %c0_i32 = arith.constant 0 : i32
    %c0_i32_0 = arith.constant 0 : i32
    %c0_i32_1 = arith.constant 0 : i32
    return %c0_i32, %c0_i32_0 : i32, i32
  }
  func.func @transform_2(%arg0: i32) -> (i32, i32) {
    %c0_i32 = arith.constant 0 : i32
    %c0_i32_0 = arith.constant 0 : i32
    %c0_i32_1 = arith.constant 0 : i32
    return %c0_i32, %c0_i32_0 : i32, i32
  }
  func.func @transform_3(%arg0: i32) -> (i32, i32) {
    %c0_i32 = arith.constant 0 : i32
    %c0_i32_0 = arith.constant 0 : i32
    return %arg0, %c0_i32 : i32, i32
  }
}

module attributes {stable_mosaic.version = 11 : i64} {
  func.func @_fc3_kernel(%arg0: i32, %arg1: memref<2x400xbf16, #tpu.memory_space<vmem>>, %arg2: memref<400x128xbf16, #tpu.memory_space<vmem>>, %arg3: memref<1x128xf32, #tpu.memory_space<vmem>>, %arg4: memref<128x128xbf16, #tpu.memory_space<vmem>>, %arg5: memref<1x128xf32, #tpu.memory_space<vmem>>, %arg6: memref<128x128xbf16, #tpu.memory_space<vmem>>, %arg7: memref<1x128xf32, #tpu.memory_space<vmem>>, %arg8: memref<2x128xf32, #tpu.memory_space<vmem>>) attributes {dimension_semantics = [#tpu.dimension_semantics<parallel>], iteration_bounds = array<i64: 1>, scalar_prefetch = 0 : i64, scratch_operands = 0 : i64, tpu.core_type = #tpu.core_type<tc>, window_params = [{transform_indices = @transform_0, window_bounds = array<i64: 2, 400>}, {pipeline_mode = #tpu.pipeline_mode<synchronous>, transform_indices = @transform_1, window_bounds = array<i64: 400, 128>}, {pipeline_mode = #tpu.pipeline_mode<synchronous>, transform_indices = @transform_2, window_bounds = array<i64: 1, 128>}, {pipeline_mode = #tpu.pipeline_mode<synchronous>, transform_indices = @transform_3, window_bounds = array<i64: 128, 128>}, {pipeline_mode = #tpu.pipeline_mode<synchronous>, transform_indices = @transform_4, window_bounds = array<i64: 1, 128>}, {pipeline_mode = #tpu.pipeline_mode<synchronous>, transform_indices = @transform_5, window_bounds = array<i64: 128, 128>}, {pipeline_mode = #tpu.pipeline_mode<synchronous>, transform_indices = @transform_6, window_bounds = array<i64: 1, 128>}, {transform_indices = @transform_7, window_bounds = array<i64: 2, 128>}]} {
    %c0 = arith.constant 0 : index
    %c0_0 = arith.constant 0 : index
    %0 = vector.load %arg1[%c0, %c0_0] : memref<2x400xbf16, #tpu.memory_space<vmem>>, vector<2x400xbf16>
    %c0_1 = arith.constant 0 : index
    %c0_2 = arith.constant 0 : index
    %1 = vector.load %arg2[%c0_1, %c0_2] : memref<400x128xbf16, #tpu.memory_space<vmem>>, vector<400x128xbf16>
    %cst = arith.constant dense<0.000000e+00> : vector<2x128xf32>
    %2 = tpu.matmul %0, %1, %cst {dimension_numbers = #tpu.dot_dimension_numbers<[1], [0], [0], [1], [0, 0, 1, 1], [], []>} : vector<2x400xbf16>, vector<400x128xbf16>, vector<2x128xf32> -> vector<2x128xf32>
    %c0_3 = arith.constant 0 : index
    %c0_4 = arith.constant 0 : index
    %3 = vector.load %arg3[%c0_3, %c0_4] : memref<1x128xf32, #tpu.memory_space<vmem>>, vector<1x128xf32>
    %4 = vector.broadcast %3 : vector<1x128xf32> to vector<2x128xf32>
    %5 = arith.addf %2, %4 : vector<2x128xf32>
    %cst_5 = arith.constant 0.000000e+00 : f32
    %6 = vector.broadcast %cst_5 : f32 to vector<2x128xf32>
    %7 = arith.maximumf %5, %6 : vector<2x128xf32>
    %8 = arith.truncf %7 : vector<2x128xf32> to vector<2x128xbf16>
    %c0_6 = arith.constant 0 : index
    %c0_7 = arith.constant 0 : index
    %9 = vector.load %arg4[%c0_6, %c0_7] : memref<128x128xbf16, #tpu.memory_space<vmem>>, vector<128x128xbf16>
    %cst_8 = arith.constant dense<0.000000e+00> : vector<2x128xf32>
    %10 = tpu.matmul %8, %9, %cst_8 {dimension_numbers = #tpu.dot_dimension_numbers<[1], [0], [0], [1], [0, 0, 1, 1], [], []>} : vector<2x128xbf16>, vector<128x128xbf16>, vector<2x128xf32> -> vector<2x128xf32>
    %c0_9 = arith.constant 0 : index
    %c0_10 = arith.constant 0 : index
    %11 = vector.load %arg5[%c0_9, %c0_10] : memref<1x128xf32, #tpu.memory_space<vmem>>, vector<1x128xf32>
    %12 = vector.broadcast %11 : vector<1x128xf32> to vector<2x128xf32>
    %13 = arith.addf %10, %12 : vector<2x128xf32>
    %cst_11 = arith.constant 0.000000e+00 : f32
    %14 = vector.broadcast %cst_11 : f32 to vector<2x128xf32>
    %15 = arith.maximumf %13, %14 : vector<2x128xf32>
    %16 = arith.truncf %15 : vector<2x128xf32> to vector<2x128xbf16>
    %c0_12 = arith.constant 0 : index
    %c0_13 = arith.constant 0 : index
    %17 = vector.load %arg6[%c0_12, %c0_13] : memref<128x128xbf16, #tpu.memory_space<vmem>>, vector<128x128xbf16>
    %cst_14 = arith.constant dense<0.000000e+00> : vector<2x128xf32>
    %18 = tpu.matmul %16, %17, %cst_14 {dimension_numbers = #tpu.dot_dimension_numbers<[1], [0], [0], [1], [0, 0, 1, 1], [], []>} : vector<2x128xbf16>, vector<128x128xbf16>, vector<2x128xf32> -> vector<2x128xf32>
    %c0_15 = arith.constant 0 : index
    %c0_16 = arith.constant 0 : index
    %19 = vector.load %arg7[%c0_15, %c0_16] : memref<1x128xf32, #tpu.memory_space<vmem>>, vector<1x128xf32>
    %20 = vector.broadcast %19 : vector<1x128xf32> to vector<2x128xf32>
    %21 = arith.addf %18, %20 : vector<2x128xf32>
    %c0_17 = arith.constant 0 : index
    %c0_18 = arith.constant 0 : index
    %22 = vector.load %arg8[%c0_17, %c0_18] : memref<2x128xf32, #tpu.memory_space<vmem>>, vector<2x128xf32>
    tpu.vector_store %arg8[%c0_17, %c0_18], %21 {strides = array<i32>} : memref<2x128xf32, #tpu.memory_space<vmem>>, vector<2x128xf32>,
    return
  }
  func.func @transform_0(%arg0: i32) -> (i32, i32) {
    %c0_i32 = arith.constant 0 : i32
    %c0_i32_0 = arith.constant 0 : i32
    return %arg0, %c0_i32 : i32, i32
  }
  func.func @transform_1(%arg0: i32) -> (i32, i32) {
    %c0_i32 = arith.constant 0 : i32
    %c0_i32_0 = arith.constant 0 : i32
    %c0_i32_1 = arith.constant 0 : i32
    return %c0_i32, %c0_i32_0 : i32, i32
  }
  func.func @transform_2(%arg0: i32) -> (i32, i32) {
    %c0_i32 = arith.constant 0 : i32
    %c0_i32_0 = arith.constant 0 : i32
    %c0_i32_1 = arith.constant 0 : i32
    return %c0_i32, %c0_i32_0 : i32, i32
  }
  func.func @transform_3(%arg0: i32) -> (i32, i32) {
    %c0_i32 = arith.constant 0 : i32
    %c0_i32_0 = arith.constant 0 : i32
    %c0_i32_1 = arith.constant 0 : i32
    return %c0_i32, %c0_i32_0 : i32, i32
  }
  func.func @transform_4(%arg0: i32) -> (i32, i32) {
    %c0_i32 = arith.constant 0 : i32
    %c0_i32_0 = arith.constant 0 : i32
    %c0_i32_1 = arith.constant 0 : i32
    return %c0_i32, %c0_i32_0 : i32, i32
  }
  func.func @transform_5(%arg0: i32) -> (i32, i32) {
    %c0_i32 = arith.constant 0 : i32
    %c0_i32_0 = arith.constant 0 : i32
    %c0_i32_1 = arith.constant 0 : i32
    return %c0_i32, %c0_i32_0 : i32, i32
  }
  func.func @transform_6(%arg0: i32) -> (i32, i32) {
    %c0_i32 = arith.constant 0 : i32
    %c0_i32_0 = arith.constant 0 : i32
    %c0_i32_1 = arith.constant 0 : i32
    return %c0_i32, %c0_i32_0 : i32, i32
  }
  func.func @transform_7(%arg0: i32) -> (i32, i32) {
    %c0_i32 = arith.constant 0 : i32
    %c0_i32_0 = arith.constant 0 : i32
    return %arg0, %c0_i32 : i32, i32
  }
}

</mosaic_0001>

<llo_original>
// kernel: net_forward.3
$region0: #{net_forward.3}
  #allocation0 [shape = 'u32[]', space=smem, size = 0x4, offset = 0x4, fixed_abs, tag = 'smem constant byte address 0x4 - core index']
  #allocation1 [shape = 'u32[144,128]{1,0:T(1,128)}', space=vmem, size = 0x12000, scoped, tag = 'internal scratch']
  %s0 = inlined_call_operand.vmem [shape: bf16[4,392,75], index: 0, kind: input, shape index: {}]
  %s1 = inlined_call_operand.vmem [shape: bf16[75,128], index: 1, kind: input, shape index: {}]
  %s2 = inlined_call_operand.vmem [shape: f32[1,128], index: 2, kind: input, shape index: {}]
  %s3 = inlined_call_operand.vmem [shape: bf16[392,128], index: 3, kind: output, shape index: {}]
  %s4 = sld [smem:[#allocation0]]
  $region151: #{net_forward.3} parent=0
    _
  %s6 = ssub.s32 1, %s4
  %s7 = scalar_select 0, %s6, %s4
  $region1: #{net_forward.3} parent=0
    #allocation2 [shape = 'u8[425984]{0}', space=vmem, size = 0x68000, scoped, tag = 'input window, operand 0']
    #allocation3 [shape = 'u8[106496]{0}', space=vmem, size = 0x1a000, scoped, tag = 'output window, operand 0']
    loop: start=0, step=1, limit=4
    $region2: #{net_forward.3} parent=1 // loop_pre_header
      _
    $region3: #{net_forward.3} parent=1 // loop_header
      %s9 = sphi 0, %s13
      %p10 = scmp.ge.s32.totalorder %s9, 4
      %s19 = sphi 0, %s21
      %s22 = sphi 0, %s19
      %s23 = sphi 0, %s22
      %s39 = sphi 0, %s23
      %s43 = sphi 0, %s43
      %s45 = sphi 0, %s43
      %s46 = sphi 0, %s45
      %s60 = sphi 0, %s46
      %s64 = sphi 0, %s64
      %s66 = sphi 0, %s64
      %s67 = sphi 0, %s66
      %s81 = sphi 0, %s67
      %s87 = sphi 0, %s89
      %s90 = sphi 0, %s87
      %s91 = sphi 0, %s90
      %s107 = sphi 0, %s91
    $region4: #{net_forward.3} parent=1 // loop_header_branch
      %12 = sbr.rel (%p10) target = $region8
    $region5: #{net_forward.3} parent=1 // loop_body
      %s14 = ssub.s32 %s9, 1
      %s15 = ssub.s32 %s9, 2
      %s16 = sadd.s32 %s9, 1
      %s17 = ssub.s32 %s9, %s16
      %p18 = scmp.eq.s32.totalorder %s17, 0
      %s20 = sadd.s32 %s19, 1
      %s21 = scalar_select %p18, %s19, %s20
      %p24 = pneg %p18
      %p25 = scmp.eq.s32.totalorder %s9, 1
      %p26 = por %p24, %p25
      %p27 = scmp.ne.s32.totalorder %s19, %s22
      %p28 = scmp.eq.s32.totalorder %s9, 0
      %p29 = por %p27, %p28
      %p30 = scmp.ne.s32.totalorder %s19, %s22
      %p31 = scmp.eq.s32.totalorder %s14, 1
      %p32 = por %p30, %p31
      %p33 = scmp.ne.s32.totalorder %s22, %s23
      %p34 = scmp.eq.s32.totalorder %s14, 0
      %p35 = por %p33, %p34
      %p36 = scmp.ne.s32.totalorder %s22, %s23
      %p37 = scmp.eq.s32.totalorder %s15, 1
      %p38 = por %p36, %p37
      %p40 = scmp.ne.s32.totalorder %s23, %s39
      %p41 = scmp.eq.s32.totalorder %s15, 0
      %p42 = por %p40, %p41
      %s44 = sadd.s32 %s43, 1
      %p47 = scmp.eq.s32.totalorder %s9, 1
      %p48 = scmp.ne.s32.totalorder %s43, %s45
      %p49 = scmp.eq.s32.totalorder %s9, 0
      %p50 = por %p48, %p49
      %p51 = scmp.ne.s32.totalorder %s43, %s45
      %p52 = scmp.eq.s32.totalorder %s14, 1
      %p53 = por %p51, %p52
      %p54 = scmp.ne.s32.totalorder %s45, %s46
      %p55 = scmp.eq.s32.totalorder %s14, 0
      %p56 = por %p54, %p55
      %p57 = scmp.ne.s32.totalorder %s45, %s46
      %p58 = scmp.eq.s32.totalorder %s15, 1
      %p59 = por %p57, %p58
      %p61 = scmp.ne.s32.totalorder %s46, %s60
      %p62 = scmp.eq.s32.totalorder %s15, 0
      %p63 = por %p61, %p62
      %s65 = sadd.s32 %s64, 1
      %p68 = scmp.eq.s32.totalorder %s9, 1
      %p69 = scmp.ne.s32.totalorder %s64, %s66
      %p70 = scmp.eq.s32.totalorder %s9, 0
      %p71 = por %p69, %p70
      %p72 = scmp.ne.s32.totalorder %s64, %s66
      %p73 = scmp.eq.s32.totalorder %s14, 1
      %p74 = por %p72, %p73
      %p75 = scmp.ne.s32.totalorder %s66, %s67
      %p76 = scmp.eq.s32.totalorder %s14, 0
      %p77 = por %p75, %p76
      %p78 = scmp.ne.s32.totalorder %s66, %s67
      %p79 = scmp.eq.s32.totalorder %s15, 1
      %p80 = por %p78, %p79
      %p82 = scmp.ne.s32.totalorder %s67, %s81
      %p83 = scmp.eq.s32.totalorder %s15, 0
      %p84 = por %p82, %p83
      %s85 = ssub.s32 %s9, %s16
      %p86 = scmp.eq.s32.totalorder %s85, 0
      %s88 = sadd.s32 %s87, 1
      %s89 = scalar_select %p86, %s87, %s88
      %p92 = pneg %p86
      %p93 = scmp.eq.s32.totalorder %s9, 1
      %p94 = por %p92, %p93
      %p95 = scmp.ne.s32.totalorder %s87, %s90
      %p96 = scmp.eq.s32.totalorder %s9, 0
      %p97 = por %p95, %p96
      %p98 = scmp.ne.s32.totalorder %s87, %s90
      %p99 = scmp.eq.s32.totalorder %s14, 1
      %p100 = por %p98, %p99
      %p101 = scmp.ne.s32.totalorder %s90, %s91
      %p102 = scmp.eq.s32.totalorder %s14, 0
      %p103 = por %p101, %p102
      %p104 = scmp.ne.s32.totalorder %s90, %s91
      %p105 = scmp.eq.s32.totalorder %s15, 1
      %p106 = por %p104, %p105
      %p108 = scmp.ne.s32.totalorder %s91, %s107
      %p109 = scmp.eq.s32.totalorder %s15, 0
      %p110 = por %p108, %p109
      %p111 = scmp.le.s32.totalorder 1, %s9
      %p112 = scmp.lt.s32.totalorder %s9, 3
      %p113 = pnand %p111, %p112
      %p114 = pneg %p113
      // Predicated region
      $region9: #{net_forward.3} parent=5 // pred_check
        _
      $region10: #{net_forward.3} parent=5 // pred_check_branch
        %116 = sbr.rel (%p113) target = $region12
      $region11: #{net_forward.3} parent=5 // pred_region
        %s117 = ssub.s32 %s9, 1
        // Predicated region
        $region13: #{net_forward.3} parent=11 // pred_check
          %p118 = pneg %p56
        $region14: #{net_forward.3} parent=11 // pred_check_branch
          %120 = sbr.rel (%p118) target = $region16
        $region15: #{net_forward.3} parent=11 // pred_region
          _
        $region16: #{net_forward.3} parent=11 // pred_fallthru
          _
        // Predicated region
        $region17: #{net_forward.3} parent=11 // pred_check
          %p121 = pneg %p77
        $region18: #{net_forward.3} parent=11 // pred_check_branch
          %123 = sbr.rel (%p121) target = $region20
        $region19: #{net_forward.3} parent=11 // pred_region
          _
        $region20: #{net_forward.3} parent=11 // pred_fallthru
          _
      $region12: #{net_forward.3} parent=5 // pred_fallthru
        _
      %p124 = scmp.lt.s32.totalorder %s9, 2
      // Predicated region
      $region21: #{net_forward.3} parent=5 // pred_check
        %p125 = pneg %p124
      $region22: #{net_forward.3} parent=5 // pred_check_branch
        %127 = sbr.rel (%p125) target = $region24
      $region23: #{net_forward.3} parent=5 // pred_region
        // Predicated region
        $region25: #{net_forward.3} parent=23 // pred_check
          %p128 = pneg %p29
        $region26: #{net_forward.3} parent=23 // pred_check_branch
          %130 = sbr.rel (%p128) target = $region28
        $region27: #{net_forward.3} parent=23 // pred_region
          %s131 = sand.u32 %s19, 1
          %s132 = sand.u32 %s19, 1
          %s133 = smul.addr %s132, 416
          %s134 = scalar_lea.vmem [#allocation2], %s133
          %s135 = smul.u32 26, %s9
          %s136 = ssub.s32 49, %s135
          %p137 = scmp.lt.s32.totalorder %s136, 26
          %s138 = scalar_select %p137, %s136, 26
          %s139 = smul.u32 256, %s138
          %p140 = scmp.ne.s32.totalorder 0, %s139
          %s141 = smul.addr %s135, 4
          %s142 = scalar_lea.vmem %s0, %s141
          // Predicated region
          $region29: #{net_forward.3} parent=27 // pred_check
            %p143 = pneg %p140
          $region30: #{net_forward.3} parent=27 // pred_check_branch
            %145 = sbr.rel (%p143) target = $region32
          $region31: #{net_forward.3} parent=27 // pred_region
            // Predicated region
            $region33: #{net_forward.3} parent=31 // pred_check
              _
            $region34: #{net_forward.3} parent=31 // pred_check_branch
              %147 = sbr.rel target = $region36
            $region35: #{net_forward.3} parent=31 // pred_region
              // Predicated region
              $region55: #{net_forward.3} parent=35 // pred_check
                _
              $region56: #{net_forward.3} parent=35 // pred_check_branch
                %328 = sbr.rel (0) target = $region58
              $region57: #{net_forward.3} parent=35 // pred_region
                %s329 = sdiv.u32.pop %s138, 26
                %s330 = srem.u32.pop %s138, 26
                // While loop
                $region59: #{net_forward.3} parent=57 // loop_pre_header
                  _
                $region60: #{net_forward.3} parent=57 // loop_header
                  %s332 = sphi 0, %s334
                  %p333 = scmp.ge.s32.totalorder %s332, %s329
                  %s337 = sphi 0, %s342
                  %s338 = sphi %s142, %s345
                  %s339 = sphi %s134, %s346
                $region61: #{net_forward.3} parent=57 // loop_header_branch
                  %336 = sbr.rel (%p333) target = $region65
                $region62: #{net_forward.3} parent=57 // loop_body
                  %s340 = sadd.s32 1, %s337
                  %p341 = scmp.ge.s32.totalorder %s340, %s329
                  %s342 = scalar_select %p341, 0, %s340
                  %s343 = smul.u32 %s342, 104
                  %s344 = smul.u32 %s342, 104
                  %s345 = scalar_lea.vmem %s142, %s343
                  %s346 = scalar_lea.vmem %s134, %s344 [#allocation2]
                $region63: #{net_forward.3} parent=57 // loop_footer
                  %s334 = sadd.s32 %s332, 1
                $region64: #{net_forward.3} parent=57 // loop_footer_branch
                  %331 = sbr.rel target = $region60
                $region65: #{net_forward.3} parent=57 // loop_exit
                  _
                %s347 = sdiv.u32.pop %s138, 26
                %s348 = srem.u32.pop %s138, 26
                %s349 = smul.u32 %s347, 26
                %s350 = smul.u32 4, %s349
                %s351 = scalar_lea.vmem %s142, %s350
                %s352 = smul.u32 4, %s349
                %s353 = scalar_lea.vmem %s134, %s352 [#allocation2]
                // While loop
                $region66: #{net_forward.3} parent=57 // loop_pre_header
                  _
                $region67: #{net_forward.3} parent=57 // loop_header
                  %s355 = sphi 0, %s357
                  %p356 = scmp.ge.s32.totalorder %s355, %s348
                  %s360 = sphi 0, %s365
                  %s361 = sphi %s351, %s368
                  %s362 = sphi %s353, %s369
                $region68: #{net_forward.3} parent=57 // loop_header_branch
                  %359 = sbr.rel (%p356) target = $region72
                $region69: #{net_forward.3} parent=57 // loop_body
                  %s363 = sadd.s32 1, %s360
                  %p364 = scmp.ge.s32.totalorder %s363, %s348
                  %s365 = scalar_select %p364, 0, %s363
                  %s366 = smul.u32 %s365, 4
                  %s367 = smul.u32 %s365, 4
                  %s368 = scalar_lea.vmem %s351, %s366
                  %s369 = scalar_lea.vmem %s353, %s367 [#allocation2]
                $region70: #{net_forward.3} parent=57 // loop_footer
                  %s357 = sadd.s32 %s355, 1
                $region71: #{net_forward.3} parent=57 // loop_footer_branch
                  %354 = sbr.rel target = $region67
                $region72: #{net_forward.3} parent=57 // loop_exit
                  _
                %s371 = sshrl.u32 %s138, 4
                // While loop
                $region73: #{net_forward.3} parent=57 // loop_pre_header
                  _
                $region74: #{net_forward.3} parent=57 // loop_header
                  %s373 = sphi 0, %s375
                  %p374 = scmp.ge.s32.totalorder %s373, %s371
                  %s378 = sphi 0, %s511
                  %s379 = sphi %s142, %s514
                  %s380 = sphi %s134, %s515
                $region75: #{net_forward.3} parent=57 // loop_header_branch
                  %377 = sbr.rel (%p374) target = $region79
                $region76: #{net_forward.3} parent=57 // loop_body
                  %v381 = vld [vmem:[%s379] sm:$0xf]
                  %382 = vst [vmem:[%s380] sm:$0xf] %v381
                  %v383 = vld [vmem:[%s379 + $0x4] sm:$0xf]
                  %384 = vst [vmem:[%s380 + $0x4] sm:$0xf] %v383
                  %v385 = vld [vmem:[%s379 + $0x8] sm:$0xf]
                  %386 = vst [vmem:[%s380 + $0x8] sm:$0xf] %v385
                  %v387 = vld [vmem:[%s379 + $0xc] sm:$0xf]
                  %388 = vst [vmem:[%s380 + $0xc] sm:$0xf] %v387
                  %v389 = vld [vmem:[%s379 + $0x10] sm:$0xf]
                  %390 = vst [vmem:[%s380 + $0x10] sm:$0xf] %v389
                  %v391 = vld [vmem:[%s379 + $0x14] sm:$0xf]
                  %392 = vst [vmem:[%s380 + $0x14] sm:$0xf] %v391
                  %v393 = vld [vmem:[%s379 + $0x18] sm:$0xf]
                  %394 = vst [vmem:[%s380 + $0x18] sm:$0xf] %v393
                  %v395 = vld [vmem:[%s379 + $0x1c] sm:$0xf]
                  %396 = vst [vmem:[%s380 + $0x1c] sm:$0xf] %v395
                  %v397 = vld [vmem:[%s379 + $0x20] sm:$0xf]
                  %398 = vst [vmem:[%s380 + $0x20] sm:$0xf] %v397
                  %v399 = vld [vmem:[%s379 + $0x24] sm:$0xf]
                  %400 = vst [vmem:[%s380 + $0x24] sm:$0xf] %v399
                  %v401 = vld [vmem:[%s379 + $0x28] sm:$0xf]
                  %402 = vst [vmem:[%s380 + $0x28] sm:$0xf] %v401
                  %v403 = vld [vmem:[%s379 + $0x2c] sm:$0xf]
                  %404 = vst [vmem:[%s380 + $0x2c] sm:$0xf] %v403
                  %v405 = vld [vmem:[%s379 + $0x30] sm:$0xf]
                  %406 = vst [vmem:[%s380 + $0x30] sm:$0xf] %v405
                  %v407 = vld [vmem:[%s379 + $0x34] sm:$0xf]
                  %408 = vst [vmem:[%s380 + $0x34] sm:$0xf] %v407
                  %v409 = vld [vmem:[%s379 + $0x38] sm:$0xf]
                  %410 = vst [vmem:[%s380 + $0x38] sm:$0xf] %v409
                  %v411 = vld [vmem:[%s379 + $0x3c] sm:$0xf]
                  %412 = vst [vmem:[%s380 + $0x3c] sm:$0xf] %v411
                  %v413 = vld [vmem:[%s379 + $0xc4] sm:$0xf]
                  %414 = vst [vmem:[%s380 + $0x68] sm:$0xf] %v413
                  %v415 = vld [vmem:[%s379 + $0xc8] sm:$0xf]
                  %416 = vst [vmem:[%s380 + $0x6c] sm:$0xf] %v415
                  %v417 = vld [vmem:[%s379 + $0xcc] sm:$0xf]
                  %418 = vst [vmem:[%s380 + $0x70] sm:$0xf] %v417
                  %v419 = vld [vmem:[%s379 + $0xd0] sm:$0xf]
                  %420 = vst [vmem:[%s380 + $0x74] sm:$0xf] %v419
                  %v421 = vld [vmem:[%s379 + $0xd4] sm:$0xf]
                  %422 = vst [vmem:[%s380 + $0x78] sm:$0xf] %v421
                  %v423 = vld [vmem:[%s379 + $0xd8] sm:$0xf]
                  %424 = vst [vmem:[%s380 + $0x7c] sm:$0xf] %v423
                  %v425 = vld [vmem:[%s379 + $0xdc] sm:$0xf]
                  %426 = vst [vmem:[%s380 + $0x80] sm:$0xf] %v425
                  %v427 = vld [vmem:[%s379 + $0xe0] sm:$0xf]
                  %428 = vst [vmem:[%s380 + $0x84] sm:$0xf] %v427
                  %v429 = vld [vmem:[%s379 + $0xe4] sm:$0xf]
                  %430 = vst [vmem:[%s380 + $0x88] sm:$0xf] %v429
                  %v431 = vld [vmem:[%s379 + $0xe8] sm:$0xf]
                  %432 = vst [vmem:[%s380 + $0x8c] sm:$0xf] %v431
                  %v433 = vld [vmem:[%s379 + $0xec] sm:$0xf]
                  %434 = vst [vmem:[%s380 + $0x90] sm:$0xf] %v433
                  %v435 = vld [vmem:[%s379 + $0xf0] sm:$0xf]
                  %436 = vst [vmem:[%s380 + $0x94] sm:$0xf] %v435
                  %v437 = vld [vmem:[%s379 + $0xf4] sm:$0xf]
                  %438 = vst [vmem:[%s380 + $0x98] sm:$0xf] %v437
                  %v439 = vld [vmem:[%s379 + $0xf8] sm:$0xf]
                  %440 = vst [vmem:[%s380 + $0x9c] sm:$0xf] %v439
                  %v441 = vld [vmem:[%s379 + $0xfc] sm:$0xf]
                  %442 = vst [vmem:[%s380 + $0xa0] sm:$0xf] %v441
                  %v443 = vld [vmem:[%s379 + $0x100] sm:$0xf]
                  %444 = vst [vmem:[%s380 + $0xa4] sm:$0xf] %v443
                  %v445 = vld [vmem:[%s379 + $0x188] sm:$0xf]
                  %446 = vst [vmem:[%s380 + $0xd0] sm:$0xf] %v445
                  %v447 = vld [vmem:[%s379 + $0x18c] sm:$0xf]
                  %448 = vst [vmem:[%s380 + $0xd4] sm:$0xf] %v447
                  %v449 = vld [vmem:[%s379 + $0x190] sm:$0xf]
                  %450 = vst [vmem:[%s380 + $0xd8] sm:$0xf] %v449
                  %v451 = vld [vmem:[%s379 + $0x194] sm:$0xf]
                  %452 = vst [vmem:[%s380 + $0xdc] sm:$0xf] %v451
                  %v453 = vld [vmem:[%s379 + $0x198] sm:$0xf]
                  %454 = vst [vmem:[%s380 + $0xe0] sm:$0xf] %v453
                  %v455 = vld [vmem:[%s379 + $0x19c] sm:$0xf]
                  %456 = vst [vmem:[%s380 + $0xe4] sm:$0xf] %v455
                  %v457 = vld [vmem:[%s379 + $0x1a0] sm:$0xf]
                  %458 = vst [vmem:[%s380 + $0xe8] sm:$0xf] %v457
                  %v459 = vld [vmem:[%s379 + $0x1a4] sm:$0xf]
                  %460 = vst [vmem:[%s380 + $0xec] sm:$0xf] %v459
                  %v461 = vld [vmem:[%s379 + $0x1a8] sm:$0xf]
                  %462 = vst [vmem:[%s380 + $0xf0] sm:$0xf] %v461
                  %v463 = vld [vmem:[%s379 + $0x1ac] sm:$0xf]
                  %464 = vst [vmem:[%s380 + $0xf4] sm:$0xf] %v463
                  %v465 = vld [vmem:[%s379 + $0x1b0] sm:$0xf]
                  %466 = vst [vmem:[%s380 + $0xf8] sm:$0xf] %v465
                  %v467 = vld [vmem:[%s379 + $0x1b4] sm:$0xf]
                  %468 = vst [vmem:[%s380 + $0xfc] sm:$0xf] %v467
                  %v469 = vld [vmem:[%s379 + $0x1b8] sm:$0xf]
                  %470 = vst [vmem:[%s380 + $0x100] sm:$0xf] %v469
                  %v471 = vld [vmem:[%s379 + $0x1bc] sm:$0xf]
                  %472 = vst [vmem:[%s380 + $0x104] sm:$0xf] %v471
                  %v473 = vld [vmem:[%s379 + $0x1c0] sm:$0xf]
                  %474 = vst [vmem:[%s380 + $0x108] sm:$0xf] %v473
                  %v475 = vld [vmem:[%s379 + $0x1c4] sm:$0xf]
                  %476 = vst [vmem:[%s380 + $0x10c] sm:$0xf] %v475
                  %v477 = vld [vmem:[%s379 + $0x24c] sm:$0xf]
                  %478 = vst [vmem:[%s380 + $0x138] sm:$0xf] %v477
                  %v479 = vld [vmem:[%s379 + $0x250] sm:$0xf]
                  %480 = vst [vmem:[%s380 + $0x13c] sm:$0xf] %v479
                  %v481 = vld [vmem:[%s379 + $0x254] sm:$0xf]
                  %482 = vst [vmem:[%s380 + $0x140] sm:$0xf] %v481
                  %v483 = vld [vmem:[%s379 + $0x258] sm:$0xf]
                  %484 = vst [vmem:[%s380 + $0x144] sm:$0xf] %v483
                  %v485 = vld [vmem:[%s379 + $0x25c] sm:$0xf]
                  %486 = vst [vmem:[%s380 + $0x148] sm:$0xf] %v485
                  %v487 = vld [vmem:[%s379 + $0x260] sm:$0xf]
                  %488 = vst [vmem:[%s380 + $0x14c] sm:$0xf] %v487
                  %v489 = vld [vmem:[%s379 + $0x264] sm:$0xf]
                  %490 = vst [vmem:[%s380 + $0x150] sm:$0xf] %v489
                  %v491 = vld [vmem:[%s379 + $0x268] sm:$0xf]
                  %492 = vst [vmem:[%s380 + $0x154] sm:$0xf] %v491
                  %v493 = vld [vmem:[%s379 + $0x26c] sm:$0xf]
                  %494 = vst [vmem:[%s380 + $0x158] sm:$0xf] %v493
                  %v495 = vld [vmem:[%s379 + $0x270] sm:$0xf]
                  %496 = vst [vmem:[%s380 + $0x15c] sm:$0xf] %v495
                  %v497 = vld [vmem:[%s379 + $0x274] sm:$0xf]
                  %498 = vst [vmem:[%s380 + $0x160] sm:$0xf] %v497
                  %v499 = vld [vmem:[%s379 + $0x278] sm:$0xf]
                  %500 = vst [vmem:[%s380 + $0x164] sm:$0xf] %v499
                  %v501 = vld [vmem:[%s379 + $0x27c] sm:$0xf]
                  %502 = vst [vmem:[%s380 + $0x168] sm:$0xf] %v501
                  %v503 = vld [vmem:[%s379 + $0x280] sm:$0xf]
                  %504 = vst [vmem:[%s380 + $0x16c] sm:$0xf] %v503
                  %v505 = vld [vmem:[%s379 + $0x284] sm:$0xf]
                  %506 = vst [vmem:[%s380 + $0x170] sm:$0xf] %v505
                  %v507 = vld [vmem:[%s379 + $0x288] sm:$0xf]
                  %508 = vst [vmem:[%s380 + $0x174] sm:$0xf] %v507
                  %s509 = sadd.s32 1, %s378
                  %p510 = scmp.ge.s32.totalorder %s509, %s371
                  %s511 = scalar_select %p510, 0, %s509
                  %s512 = smul.u32 %s511, 64
                  %s513 = smul.u32 %s511, 64
                  %s514 = scalar_lea.vmem %s142, %s512
                  %s515 = scalar_lea.vmem %s134, %s513 [#allocation2]
                $region77: #{net_forward.3} parent=57 // loop_footer
                  %s375 = sadd.s32 %s373, 1
                $region78: #{net_forward.3} parent=57 // loop_footer_branch
                  %372 = sbr.rel target = $region74
                $region79: #{net_forward.3} parent=57 // loop_exit
                  _
                %s516 = sshrl.u32 %s138, 4
                %s517 = sand.u32 %s138, 15
                %s518 = smul.u32 %s516, 16
                %s519 = smul.u32 4, %s518
                %s520 = scalar_lea.vmem %s142, %s519
                %s521 = smul.u32 4, %s518
                %s522 = scalar_lea.vmem %s134, %s521 [#allocation2]
                // While loop
                $region80: #{net_forward.3} parent=57 // loop_pre_header
                  _
                $region81: #{net_forward.3} parent=57 // loop_header
                  %s524 = sphi 0, %s526
                  %p525 = scmp.ge.s32.totalorder %s524, %s517
                  %s529 = sphi 0, %s542
                  %s530 = sphi %s520, %s545
                  %s531 = sphi %s522, %s546
                $region82: #{net_forward.3} parent=57 // loop_header_branch
                  %528 = sbr.rel (%p525) target = $region86
                $region83: #{net_forward.3} parent=57 // loop_body
                  %v532 = vld [vmem:[%s530] sm:$0xf]
                  %533 = vst [vmem:[%s531] sm:$0xf] %v532
                  %v534 = vld [vmem:[%s530 + $0xc4] sm:$0xf]
                  %535 = vst [vmem:[%s531 + $0x68] sm:$0xf] %v534
                  %v536 = vld [vmem:[%s530 + $0x188] sm:$0xf]
                  %537 = vst [vmem:[%s531 + $0xd0] sm:$0xf] %v536
                  %v538 = vld [vmem:[%s530 + $0x24c] sm:$0xf]
                  %539 = vst [vmem:[%s531 + $0x138] sm:$0xf] %v538
                  %s540 = sadd.s32 1, %s529
                  %p541 = scmp.ge.s32.totalorder %s540, %s517
                  %s542 = scalar_select %p541, 0, %s540
                  %s543 = smul.u32 %s542, 4
                  %s544 = smul.u32 %s542, 4
                  %s545 = scalar_lea.vmem %s520, %s543
                  %s546 = scalar_lea.vmem %s522, %s544 [#allocation2]
                $region84: #{net_forward.3} parent=57 // loop_footer
                  %s526 = sadd.s32 %s524, 1
                $region85: #{net_forward.3} parent=57 // loop_footer_branch
                  %523 = sbr.rel target = $region81
                $region86: #{net_forward.3} parent=57 // loop_exit
                  _
              $region58: #{net_forward.3} parent=35 // pred_fallthru
                _
            $region36: #{net_forward.3} parent=31 // pred_fallthru
              _
            // Predicated region
            $region37: #{net_forward.3} parent=31 // pred_check
              _
            $region38: #{net_forward.3} parent=31 // pred_check_branch
              %149 = sbr.rel (0) target = $region40
            $region39: #{net_forward.3} parent=31 // pred_region
              %s151 = sshrl.u32 %s138, 4
              // While loop
              $region41: #{net_forward.3} parent=39 // loop_pre_header
                _
              $region42: #{net_forward.3} parent=39 // loop_header
                %s153 = sphi 0, %s155
                %p154 = scmp.ge.s32.totalorder %s153, %s151
                %s158 = sphi 0, %s291
                %s159 = sphi %s142, %s294
                %s160 = sphi %s134, %s295
              $region43: #{net_forward.3} parent=39 // loop_header_branch
                %157 = sbr.rel (%p154) target = $region47
              $region44: #{net_forward.3} parent=39 // loop_body
                %v161 = vld [vmem:[%s159] sm:$0xf]
                %162 = vst [vmem:[%s160] sm:$0xf] %v161
                %v163 = vld [vmem:[%s159 + $0x4] sm:$0xf]
                %164 = vst [vmem:[%s160 + $0x4] sm:$0xf] %v163
                %v165 = vld [vmem:[%s159 + $0x8] sm:$0xf]
                %166 = vst [vmem:[%s160 + $0x8] sm:$0xf] %v165
                %v167 = vld [vmem:[%s159 + $0xc] sm:$0xf]
                %168 = vst [vmem:[%s160 + $0xc] sm:$0xf] %v167
                %v169 = vld [vmem:[%s159 + $0x10] sm:$0xf]
                %170 = vst [vmem:[%s160 + $0x10] sm:$0xf] %v169
                %v171 = vld [vmem:[%s159 + $0x14] sm:$0xf]
                %172 = vst [vmem:[%s160 + $0x14] sm:$0xf] %v171
                %v173 = vld [vmem:[%s159 + $0x18] sm:$0xf]
                %174 = vst [vmem:[%s160 + $0x18] sm:$0xf] %v173
                %v175 = vld [vmem:[%s159 + $0x1c] sm:$0xf]
                %176 = vst [vmem:[%s160 + $0x1c] sm:$0xf] %v175
                %v177 = vld [vmem:[%s159 + $0x20] sm:$0xf]
                %178 = vst [vmem:[%s160 + $0x20] sm:$0xf] %v177
                %v179 = vld [vmem:[%s159 + $0x24] sm:$0xf]
                %180 = vst [vmem:[%s160 + $0x24] sm:$0xf] %v179
                %v181 = vld [vmem:[%s159 + $0x28] sm:$0xf]
                %182 = vst [vmem:[%s160 + $0x28] sm:$0xf] %v181
                %v183 = vld [vmem:[%s159 + $0x2c] sm:$0xf]
                %184 = vst [vmem:[%s160 + $0x2c] sm:$0xf] %v183
                %v185 = vld [vmem:[%s159 + $0x30] sm:$0xf]
                %186 = vst [vmem:[%s160 + $0x30] sm:$0xf] %v185
                %v187 = vld [vmem:[%s159 + $0x34] sm:$0xf]
                %188 = vst [vmem:[%s160 + $0x34] sm:$0xf] %v187
                %v189 = vld [vmem:[%s159 + $0x38] sm:$0xf]
                %190 = vst [vmem:[%s160 + $0x38] sm:$0xf] %v189
                %v191 = vld [vmem:[%s159 + $0x3c] sm:$0xf]
                %192 = vst [vmem:[%s160 + $0x3c] sm:$0xf] %v191
                %v193 = vld [vmem:[%s159 + $0xc4] sm:$0xf]
                %194 = vst [vmem:[%s160 + $0x68] sm:$0xf] %v193
                %v195 = vld [vmem:[%s159 + $0xc8] sm:$0xf]
                %196 = vst [vmem:[%s160 + $0x6c] sm:$0xf] %v195
                %v197 = vld [vmem:[%s159 + $0xcc] sm:$0xf]
                %198 = vst [vmem:[%s160 + $0x70] sm:$0xf] %v197
                %v199 = vld [vmem:[%s159 + $0xd0] sm:$0xf]
                %200 = vst [vmem:[%s160 + $0x74] sm:$0xf] %v199
                %v201 = vld [vmem:[%s159 + $0xd4] sm:$0xf]
                %202 = vst [vmem:[%s160 + $0x78] sm:$0xf] %v201
                %v203 = vld [vmem:[%s159 + $0xd8] sm:$0xf]
                %204 = vst [vmem:[%s160 + $0x7c] sm:$0xf] %v203
                %v205 = vld [vmem:[%s159 + $0xdc] sm:$0xf]
                %206 = vst [vmem:[%s160 + $0x80] sm:$0xf] %v205
                %v207 = vld [vmem:[%s159 + $0xe0] sm:$0xf]
                %208 = vst [vmem:[%s160 + $0x84] sm:$0xf] %v207
                %v209 = vld [vmem:[%s159 + $0xe4] sm:$0xf]
                %210 = vst [vmem:[%s160 + $0x88] sm:$0xf] %v209
                %v211 = vld [vmem:[%s159 + $0xe8] sm:$0xf]
                %212 = vst [vmem:[%s160 + $0x8c] sm:$0xf] %v211
                %v213 = vld [vmem:[%s159 + $0xec] sm:$0xf]
                %214 = vst [vmem:[%s160 + $0x90] sm:$0xf] %v213
                %v215 = vld [vmem:[%s159 + $0xf0] sm:$0xf]
                %216 = vst [vmem:[%s160 + $0x94] sm:$0xf] %v215
                %v217 = vld [vmem:[%s159 + $0xf4] sm:$0xf]
                %218 = vst [vmem:[%s160 + $0x98] sm:$0xf] %v217
                %v219 = vld [vmem:[%s159 + $0xf8] sm:$0xf]
                %220 = vst [vmem:[%s160 + $0x9c] sm:$0xf] %v219
                %v221 = vld [vmem:[%s159 + $0xfc] sm:$0xf]
                %222 = vst [vmem:[%s160 + $0xa0] sm:$0xf] %v221
                %v223 = vld [vmem:[%s159 + $0x100] sm:$0xf]
                %224 = vst [vmem:[%s160 + $0xa4] sm:$0xf] %v223
                %v225 = vld [vmem:[%s159 + $0x188] sm:$0xf]
                %226 = vst [vmem:[%s160 + $0xd0] sm:$0xf] %v225
                %v227 = vld [vmem:[%s159 + $0x18c] sm:$0xf]
                %228 = vst [vmem:[%s160 + $0xd4] sm:$0xf] %v227
                %v229 = vld [vmem:[%s159 + $0x190] sm:$0xf]
                %230 = vst [vmem:[%s160 + $0xd8] sm:$0xf] %v229
                %v231 = vld [vmem:[%s159 + $0x194] sm:$0xf]
                %232 = vst [vmem:[%s160 + $0xdc] sm:$0xf] %v231
                %v233 = vld [vmem:[%s159 + $0x198] sm:$0xf]
                %234 = vst [vmem:[%s160 + $0xe0] sm:$0xf] %v233
                %v235 = vld [vmem:[%s159 + $0x19c] sm:$0xf]
                %236 = vst [vmem:[%s160 + $0xe4] sm:$0xf] %v235
                %v237 = vld [vmem:[%s159 + $0x1a0] sm:$0xf]
                %238 = vst [vmem:[%s160 + $0xe8] sm:$0xf] %v237
                %v239 = vld [vmem:[%s159 + $0x1a4] sm:$0xf]
                %240 = vst [vmem:[%s160 + $0xec] sm:$0xf] %v239
                %v241 = vld [vmem:[%s159 + $0x1a8] sm:$0xf]
                %242 = vst [vmem:[%s160 + $0xf0] sm:$0xf] %v241
                %v243 = vld [vmem:[%s159 + $0x1ac] sm:$0xf]
                %244 = vst [vmem:[%s160 + $0xf4] sm:$0xf] %v243
                %v245 = vld [vmem:[%s159 + $0x1b0] sm:$0xf]
                %246 = vst [vmem:[%s160 + $0xf8] sm:$0xf] %v245
                %v247 = vld [vmem:[%s159 + $0x1b4] sm:$0xf]
                %248 = vst [vmem:[%s160 + $0xfc] sm:$0xf] %v247
                %v249 = vld [vmem:[%s159 + $0x1b8] sm:$0xf]
                %250 = vst [vmem:[%s160 + $0x100] sm:$0xf] %v249
                %v251 = vld [vmem:[%s159 + $0x1bc] sm:$0xf]
                %252 = vst [vmem:[%s160 + $0x104] sm:$0xf] %v251
                %v253 = vld [vmem:[%s159 + $0x1c0] sm:$0xf]
                %254 = vst [vmem:[%s160 + $0x108] sm:$0xf] %v253
                %v255 = vld [vmem:[%s159 + $0x1c4] sm:$0xf]
                %256 = vst [vmem:[%s160 + $0x10c] sm:$0xf] %v255
                %v257 = vld [vmem:[%s159 + $0x24c] sm:$0xf]
                %258 = vst [vmem:[%s160 + $0x138] sm:$0xf] %v257
                %v259 = vld [vmem:[%s159 + $0x250] sm:$0xf]
                %260 = vst [vmem:[%s160 + $0x13c] sm:$0xf] %v259
                %v261 = vld [vmem:[%s159 + $0x254] sm:$0xf]
                %262 = vst [vmem:[%s160 + $0x140] sm:$0xf] %v261
                %v263 = vld [vmem:[%s159 + $0x258] sm:$0xf]
                %264 = vst [vmem:[%s160 + $0x144] sm:$0xf] %v263
                %v265 = vld [vmem:[%s159 + $0x25c] sm:$0xf]
                %266 = vst [vmem:[%s160 + $0x148] sm:$0xf] %v265
                %v267 = vld [vmem:[%s159 + $0x260] sm:$0xf]
                %268 = vst [vmem:[%s160 + $0x14c] sm:$0xf] %v267
                %v269 = vld [vmem:[%s159 + $0x264] sm:$0xf]
                %270 = vst [vmem:[%s160 + $0x150] sm:$0xf] %v269
                %v271 = vld [vmem:[%s159 + $0x268] sm:$0xf]
                %272 = vst [vmem:[%s160 + $0x154] sm:$0xf] %v271
                %v273 = vld [vmem:[%s159 + $0x26c] sm:$0xf]
                %274 = vst [vmem:[%s160 + $0x158] sm:$0xf] %v273
                %v275 = vld [vmem:[%s159 + $0x270] sm:$0xf]
                %276 = vst [vmem:[%s160 + $0x15c] sm:$0xf] %v275
                %v277 = vld [vmem:[%s159 + $0x274] sm:$0xf]
                %278 = vst [vmem:[%s160 + $0x160] sm:$0xf] %v277
                %v279 = vld [vmem:[%s159 + $0x278] sm:$0xf]
                %280 = vst [vmem:[%s160 + $0x164] sm:$0xf] %v279
                %v281 = vld [vmem:[%s159 + $0x27c] sm:$0xf]
                %282 = vst [vmem:[%s160 + $0x168] sm:$0xf] %v281
                %v283 = vld [vmem:[%s159 + $0x280] sm:$0xf]
                %284 = vst [vmem:[%s160 + $0x16c] sm:$0xf] %v283
                %v285 = vld [vmem:[%s159 + $0x284] sm:$0xf]
                %286 = vst [vmem:[%s160 + $0x170] sm:$0xf] %v285
                %v287 = vld [vmem:[%s159 + $0x288] sm:$0xf]
                %288 = vst [vmem:[%s160 + $0x174] sm:$0xf] %v287
                %s289 = sadd.s32 1, %s158
                %p290 = scmp.ge.s32.totalorder %s289, %s151
                %s291 = scalar_select %p290, 0, %s289
                %s292 = smul.u32 %s291, 64
                %s293 = smul.u32 %s291, 64
                %s294 = scalar_lea.vmem %s142, %s292
                %s295 = scalar_lea.vmem %s134, %s293 [#allocation2]
              $region45: #{net_forward.3} parent=39 // loop_footer
                %s155 = sadd.s32 %s153, 1
              $region46: #{net_forward.3} parent=39 // loop_footer_branch
                %152 = sbr.rel target = $region42
              $region47: #{net_forward.3} parent=39 // loop_exit
                _
              %s296 = sshrl.u32 %s138, 4
              %s297 = sand.u32 %s138, 15
              %s298 = smul.u32 %s296, 16
              %s299 = smul.u32 4, %s298
              %s300 = scalar_lea.vmem %s142, %s299
              %s301 = smul.u32 4, %s298
              %s302 = scalar_lea.vmem %s134, %s301 [#allocation2]
              // While loop
              $region48: #{net_forward.3} parent=39 // loop_pre_header
                _
              $region49: #{net_forward.3} parent=39 // loop_header
                %s304 = sphi 0, %s306
                %p305 = scmp.ge.s32.totalorder %s304, %s297
                %s309 = sphi 0, %s322
                %s310 = sphi %s300, %s325
                %s311 = sphi %s302, %s326
              $region50: #{net_forward.3} parent=39 // loop_header_branch
                %308 = sbr.rel (%p305) target = $region54
              $region51: #{net_forward.3} parent=39 // loop_body
                %v312 = vld [vmem:[%s310] sm:$0xf]
                %313 = vst [vmem:[%s311] sm:$0xf] %v312
                %v314 = vld [vmem:[%s310 + $0xc4] sm:$0xf]
                %315 = vst [vmem:[%s311 + $0x68] sm:$0xf] %v314
                %v316 = vld [vmem:[%s310 + $0x188] sm:$0xf]
                %317 = vst [vmem:[%s311 + $0xd0] sm:$0xf] %v316
                %v318 = vld [vmem:[%s310 + $0x24c] sm:$0xf]
                %319 = vst [vmem:[%s311 + $0x138] sm:$0xf] %v318
                %s320 = sadd.s32 1, %s309
                %p321 = scmp.ge.s32.totalorder %s320, %s297
                %s322 = scalar_select %p321, 0, %s320
                %s323 = smul.u32 %s322, 4
                %s324 = smul.u32 %s322, 4
                %s325 = scalar_lea.vmem %s300, %s323
                %s326 = scalar_lea.vmem %s302, %s324 [#allocation2]
              $region52: #{net_forward.3} parent=39 // loop_footer
                %s306 = sadd.s32 %s304, 1
              $region53: #{net_forward.3} parent=39 // loop_footer_branch
                %303 = sbr.rel target = $region49
              $region54: #{net_forward.3} parent=39 // loop_exit
                _
            $region40: #{net_forward.3} parent=31 // pred_fallthru
              _
          $region32: #{net_forward.3} parent=27 // pred_fallthru
            _
          %547 = vnop
        $region28: #{net_forward.3} parent=23 // pred_fallthru
          _
      $region24: #{net_forward.3} parent=5 // pred_fallthru
        _
      %p548 = scmp.le.s32.totalorder 1, %s9
      %p549 = scmp.lt.s32.totalorder %s9, 3
      %p550 = pnand %p548, %p549
      %p551 = pneg %p550
      // Predicated region
      $region87: #{net_forward.3} parent=5 // pred_check
        _
      $region88: #{net_forward.3} parent=5 // pred_check_branch
        %553 = sbr.rel (%p550) target = $region90
      $region89: #{net_forward.3} parent=5 // pred_region
        %s554 = ssub.s32 %s9, 1
        %s555 = sand.u32 %s22, 1
        %s556 = sand.u32 %s22, 1
        %s557 = smul.addr %s556, 416
        %s558 = scalar_lea.vmem [#allocation2], %s557
        // Predicated region
        $region91: #{net_forward.3} parent=89 // pred_check
          %p559 = pneg %p35
        $region92: #{net_forward.3} parent=89 // pred_check_branch
          %561 = sbr.rel (%p559) target = $region94
        $region93: #{net_forward.3} parent=89 // pred_region
          _
        $region94: #{net_forward.3} parent=89 // pred_fallthru
          _
        %s562 = sand.u32 %s22, 1
        %s563 = sand.u32 %s22, 1
        %s564 = smul.addr %s563, 416
        %s565 = scalar_lea.vmem [#allocation2], %s564
        %p566 = pneg %p35
        %p567 = pneg %p32
        %p568 = pneg %p56
        %p569 = pneg %p53
        %p570 = pneg %p77
        %p571 = pneg %p74
        %p572 = pneg %p103
        %p573 = pneg %p100
        %s574 = sand.u32 %s90, 1
        %s575 = sand.u32 %s90, 1
        %s576 = smul.addr %s575, 104
        %s577 = scalar_lea.vmem [#allocation3], %s576
        %s578 = smul.u32 26, %s14
        %s579 = ssub.s32 49, %s578
        %p580 = scmp.lt.s32.totalorder %s579, 26
        %s581 = scalar_select %p580, %s579, 26
        %s582 = smul.u32 256, %s581
        %s583 = smul.u32 26, %s14
        %s584 = ssub.s32 49, %s583
        %p585 = scmp.lt.s32.totalorder %s584, 26
        %s586 = scalar_select %p585, %s584, 26
        %s587 = smul.u32 64, %s586
        %v589 = vld [vmem:[%s558] sm:$0xf]
        %v590 = vld [vmem:[%s558 + $0x4] sm:$0xf]
        %v591 = vld [vmem:[%s558 + $0x8] sm:$0xf]
        %v592 = vld [vmem:[%s558 + $0xc] sm:$0xf]
        %v593 = vld [vmem:[%s558 + $0x10] sm:$0xf]
        %v594 = vld [vmem:[%s558 + $0x14] sm:$0xf]
        %v595 = vld [vmem:[%s558 + $0x18] sm:$0xf]
        %v596 = vld [vmem:[%s558 + $0x1c] sm:$0xf]
        %v597 = vld [vmem:[%s558 + $0x20] sm:$0xf]
        %v598 = vld [vmem:[%s558 + $0x24] sm:$0xf]
        %v599 = vld [vmem:[%s558 + $0x28] sm:$0xf]
        %v600 = vld [vmem:[%s558 + $0x2c] sm:$0xf]
        %v601 = vld [vmem:[%s558 + $0x30] sm:$0xf]
        %v602 = vld [vmem:[%s558 + $0x34] sm:$0xf]
        %v603 = vld [vmem:[%s558 + $0x38] sm:$0xf]
        %v604 = vld [vmem:[%s558 + $0x3c] sm:$0xf]
        %v605 = vld [vmem:[%s558 + $0x40] sm:$0xf]
        %v606 = vld [vmem:[%s558 + $0x44] sm:$0xf]
        %v607 = vld [vmem:[%s558 + $0x48] sm:$0xf]
        %v608 = vld [vmem:[%s558 + $0x4c] sm:$0xf]
        %v609 = vld [vmem:[%s558 + $0x50] sm:$0xf]
        %v610 = vld [vmem:[%s558 + $0x54] sm:$0xf]
        %v611 = vld [vmem:[%s558 + $0x58] sm:$0xf]
        %v612 = vld [vmem:[%s558 + $0x5c] sm:$0xf]
        %v613 = vld [vmem:[%s558 + $0x60] sm:$0xf]
        %v614 = vld [vmem:[%s558 + $0x64] sm:$0xf]
        %v615 = vld [vmem:[%s558 + $0x68] sm:$0xf]
        %v616 = vld [vmem:[%s558 + $0x6c] sm:$0xf]
        %v617 = vld [vmem:[%s558 + $0x70] sm:$0xf]
        %v618 = vld [vmem:[%s558 + $0x74] sm:$0xf]
        %v619 = vld [vmem:[%s558 + $0x78] sm:$0xf]
        %v620 = vld [vmem:[%s558 + $0x7c] sm:$0xf]
        %v621 = vld [vmem:[%s558 + $0x80] sm:$0xf]
        %v622 = vld [vmem:[%s558 + $0x84] sm:$0xf]
        %v623 = vld [vmem:[%s558 + $0x88] sm:$0xf]
        %v624 = vld [vmem:[%s558 + $0x8c] sm:$0xf]
        %v625 = vld [vmem:[%s558 + $0x90] sm:$0xf]
        %v626 = vld [vmem:[%s558 + $0x94] sm:$0xf]
        %v627 = vld [vmem:[%s558 + $0x98] sm:$0xf]
        %v628 = vld [vmem:[%s558 + $0x9c] sm:$0xf]
        %v629 = vld [vmem:[%s558 + $0xa0] sm:$0xf]
        %v630 = vld [vmem:[%s558 + $0xa4] sm:$0xf]
        %v631 = vld [vmem:[%s558 + $0xa8] sm:$0xf]
        %v632 = vld [vmem:[%s558 + $0xac] sm:$0xf]
        %v633 = vld [vmem:[%s558 + $0xb0] sm:$0xf]
        %v634 = vld [vmem:[%s558 + $0xb4] sm:$0xf]
        %v635 = vld [vmem:[%s558 + $0xb8] sm:$0xf]
        %v636 = vld [vmem:[%s558 + $0xbc] sm:$0xf]
        %v637 = vld [vmem:[%s558 + $0xc0] sm:$0xf]
        %v638 = vld [vmem:[%s558 + $0xc4] sm:$0xf]
        %v639 = vld [vmem:[%s558 + $0xc8] sm:$0xf]
        %v640 = vld [vmem:[%s558 + $0xcc] sm:$0xf]
        %v641 = vld [vmem:[%s558 + $0xd0] sm:$0xf]
        %v642 = vld [vmem:[%s558 + $0xd4] sm:$0xf]
        %v643 = vld [vmem:[%s558 + $0xd8] sm:$0xf]
        %v644 = vld [vmem:[%s558 + $0xdc] sm:$0xf]
        %v645 = vld [vmem:[%s558 + $0xe0] sm:$0xf]
        %v646 = vld [vmem:[%s558 + $0xe4] sm:$0xf]
        %v647 = vld [vmem:[%s558 + $0xe8] sm:$0xf]
        %v648 = vld [vmem:[%s558 + $0xec] sm:$0xf]
        %v649 = vld [vmem:[%s558 + $0xf0] sm:$0xf]
        %v650 = vld [vmem:[%s558 + $0xf4] sm:$0xf]
        %v651 = vld [vmem:[%s558 + $0xf8] sm:$0xf]
        %v652 = vld [vmem:[%s558 + $0xfc] sm:$0xf]
        %v653 = vld [vmem:[%s558 + $0x100] sm:$0xf]
        %v654 = vld [vmem:[%s558 + $0x104] sm:$0xf]
        %v655 = vld [vmem:[%s558 + $0x108] sm:$0xf]
        %v656 = vld [vmem:[%s558 + $0x10c] sm:$0xf]
        %v657 = vld [vmem:[%s558 + $0x110] sm:$0xf]
        %v658 = vld [vmem:[%s558 + $0x114] sm:$0xf]
        %v659 = vld [vmem:[%s558 + $0x118] sm:$0xf]
        %v660 = vld [vmem:[%s558 + $0x11c] sm:$0xf]
        %v661 = vld [vmem:[%s558 + $0x120] sm:$0xf]
        %v662 = vld [vmem:[%s558 + $0x124] sm:$0xf]
        %v663 = vld [vmem:[%s558 + $0x128] sm:$0xf]
        %v664 = vld [vmem:[%s558 + $0x12c] sm:$0xf]
        %v665 = vld [vmem:[%s558 + $0x130] sm:$0xf]
        %v666 = vld [vmem:[%s558 + $0x134] sm:$0xf]
        %v667 = vld [vmem:[%s558 + $0x138] sm:$0xf]
        %v668 = vld [vmem:[%s558 + $0x13c] sm:$0xf]
        %v669 = vld [vmem:[%s558 + $0x140] sm:$0xf]
        %v670 = vld [vmem:[%s558 + $0x144] sm:$0xf]
        %v671 = vld [vmem:[%s558 + $0x148] sm:$0xf]
        %v672 = vld [vmem:[%s558 + $0x14c] sm:$0xf]
        %v673 = vld [vmem:[%s558 + $0x150] sm:$0xf]
        %v674 = vld [vmem:[%s558 + $0x154] sm:$0xf]
        %v675 = vld [vmem:[%s558 + $0x158] sm:$0xf]
        %v676 = vld [vmem:[%s558 + $0x15c] sm:$0xf]
        %v677 = vld [vmem:[%s558 + $0x160] sm:$0xf]
        %v678 = vld [vmem:[%s558 + $0x164] sm:$0xf]
        %v679 = vld [vmem:[%s558 + $0x168] sm:$0xf]
        %v680 = vld [vmem:[%s558 + $0x16c] sm:$0xf]
        %v681 = vld [vmem:[%s558 + $0x170] sm:$0xf]
        %v682 = vld [vmem:[%s558 + $0x174] sm:$0xf]
        %v683 = vld [vmem:[%s558 + $0x178] sm:$0xf]
        %v684 = vld [vmem:[%s558 + $0x17c] sm:$0xf]
        %v685 = vld [vmem:[%s558 + $0x180] sm:$0xf]
        %v686 = vld [vmem:[%s558 + $0x184] sm:$0xf]
        %v687 = vld [vmem:[%s558 + $0x188] sm:$0xf]
        %v688 = vld [vmem:[%s558 + $0x18c] sm:$0xf]
        %v689 = vld [vmem:[%s558 + $0x190] sm:$0xf]
        %v690 = vld [vmem:[%s558 + $0x194] sm:$0xf]
        %v691 = vld [vmem:[%s558 + $0x198] sm:$0xf]
        %v692 = vld [vmem:[%s558 + $0x19c] sm:$0xf]
        %v693 = vld [vmem:[%s1] sm:$0xf]
        %v694 = vld [vmem:[%s1 + $0x4] sm:$0xf]
        %v695 = vld [vmem:[%s1 + $0x8] sm:$0xf]
        %v696 = vld [vmem:[%s1 + $0xc] sm:$0xf]
        %v697 = vld [vmem:[%s1 + $0x10] sm:$0xf]
        %v698 = vld [vmem:[%s1 + $0x14] sm:$0xf]
        %v699 = vld [vmem:[%s1 + $0x18] sm:$0xf]
        %v700 = vld [vmem:[%s1 + $0x1c] sm:$0xf]
        %v701 = vld [vmem:[%s1 + $0x20] sm:$0xf]
        %v702 = vld [vmem:[%s1 + $0x24] sm:$0x3]
        %v807 = vunpack.c.l.b16 %v589
        %v808 = vunpack.c.l.b16 %v590
        %v809 = vunpack.c.l.b16 %v591
        %v810 = vunpack.c.l.b16 %v592
        %v811 = vunpack.c.l.b16 %v593
        %v812 = vunpack.c.l.b16 %v594
        %v813 = vunpack.c.l.b16 %v595
        %v814 = vunpack.c.l.b16 %v596
        %v815 = vunpack.c.l.b16 %v597
        %v816 = vunpack.c.l.b16 %v598
        %v817 = vunpack.c.l.b16 %v599
        %v818 = vunpack.c.l.b16 %v600
        %v819 = vunpack.c.l.b16 %v601
        %v820 = vunpack.c.l.b16 %v602
        %v821 = vunpack.c.l.b16 %v603
        %v822 = vunpack.c.l.b16 %v604
        %v823 = vunpack.c.l.b16 %v605
        %v824 = vunpack.c.l.b16 %v606
        %v825 = vunpack.c.l.b16 %v607
        %v826 = vunpack.c.l.b16 %v608
        %v827 = vunpack.c.l.b16 %v609
        %v828 = vunpack.c.l.b16 %v610
        %v829 = vunpack.c.l.b16 %v611
        %v830 = vunpack.c.l.b16 %v612
        %v831 = vunpack.c.l.b16 %v613
        %v832 = vunpack.c.l.b16 %v614
        %v833 = vunpack.c.l.b16 %v615
        %v834 = vunpack.c.l.b16 %v616
        %v835 = vunpack.c.l.b16 %v617
        %v836 = vunpack.c.l.b16 %v618
        %v837 = vunpack.c.l.b16 %v619
        %v838 = vunpack.c.l.b16 %v620
        %v839 = vunpack.c.l.b16 %v621
        %v840 = vunpack.c.l.b16 %v622
        %v841 = vunpack.c.l.b16 %v623
        %v842 = vunpack.c.l.b16 %v624
        %v843 = vunpack.c.l.b16 %v625
        %v844 = vunpack.c.l.b16 %v626
        %v845 = vunpack.c.l.b16 %v627
        %v846 = vunpack.c.l.b16 %v628
        %v847 = vunpack.c.l.b16 %v629
        %v848 = vunpack.c.l.b16 %v630
        %v849 = vunpack.c.l.b16 %v631
        %v850 = vunpack.c.l.b16 %v632
        %v851 = vunpack.c.l.b16 %v633
        %v852 = vunpack.c.l.b16 %v634
        %v853 = vunpack.c.l.b16 %v635
        %v854 = vunpack.c.l.b16 %v636
        %v855 = vunpack.c.l.b16 %v637
        %v856 = vunpack.c.l.b16 %v638
        %v857 = vunpack.c.l.b16 %v639
        %v858 = vunpack.c.l.b16 %v640
        %v859 = vunpack.c.l.b16 %v641
        %v860 = vunpack.c.l.b16 %v642
        %v861 = vunpack.c.l.b16 %v643
        %v862 = vunpack.c.l.b16 %v644
        %v863 = vunpack.c.l.b16 %v645
        %v864 = vunpack.c.l.b16 %v646
        %v865 = vunpack.c.l.b16 %v647
        %v866 = vunpack.c.l.b16 %v648
        %v867 = vunpack.c.l.b16 %v649
        %v868 = vunpack.c.l.b16 %v650
        %v869 = vunpack.c.l.b16 %v651
        %v870 = vunpack.c.l.b16 %v652
        %v871 = vunpack.c.l.b16 %v653
        %v872 = vunpack.c.l.b16 %v654
        %v873 = vunpack.c.l.b16 %v655
        %v874 = vunpack.c.l.b16 %v656
        %v875 = vunpack.c.l.b16 %v657
        %v876 = vunpack.c.l.b16 %v658
        %v877 = vunpack.c.l.b16 %v659
        %v878 = vunpack.c.l.b16 %v660
        %v879 = vunpack.c.l.b16 %v661
        %v880 = vunpack.c.l.b16 %v662
        %v881 = vunpack.c.l.b16 %v663
        %v882 = vunpack.c.l.b16 %v664
        %v883 = vunpack.c.l.b16 %v665
        %v884 = vunpack.c.l.b16 %v666
        %v885 = vunpack.c.l.b16 %v667
        %v886 = vunpack.c.l.b16 %v668
        %v887 = vunpack.c.l.b16 %v669
        %v888 = vunpack.c.l.b16 %v670
        %v889 = vunpack.c.l.b16 %v671
        %v890 = vunpack.c.l.b16 %v672
        %v891 = vunpack.c.l.b16 %v673
        %v892 = vunpack.c.l.b16 %v674
        %v893 = vunpack.c.l.b16 %v675
        %v894 = vunpack.c.l.b16 %v676
        %v895 = vunpack.c.l.b16 %v677
        %v896 = vunpack.c.l.b16 %v678
        %v897 = vunpack.c.l.b16 %v679
        %v898 = vunpack.c.l.b16 %v680
        %v899 = vunpack.c.l.b16 %v681
        %v900 = vunpack.c.l.b16 %v682
        %v901 = vunpack.c.l.b16 %v683
        %v902 = vunpack.c.l.b16 %v684
        %v903 = vunpack.c.l.b16 %v685
        %v904 = vunpack.c.l.b16 %v686
        %v905 = vunpack.c.l.b16 %v687
        %v906 = vunpack.c.l.b16 %v688
        %v907 = vunpack.c.l.b16 %v689
        %v908 = vunpack.c.l.b16 %v690
        %v909 = vunpack.c.l.b16 %v691
        %v910 = vunpack.c.l.b16 %v692
        %v911 = vpack.c.b16 %v808, %v807
        %v912 = vpack.c.b16 %v810, %v809
        %v913 = vpack.c.b16 %v812, %v811
        %v914 = vpack.c.b16 %v814, %v813
        %v915 = vpack.c.b16 %v816, %v815
        %v916 = vpack.c.b16 %v818, %v817
        %v917 = vpack.c.b16 %v820, %v819
        %v918 = vpack.c.b16 %v822, %v821
        %v919 = vpack.c.b16 %v824, %v823
        %v920 = vpack.c.b16 %v826, %v825
        %v921 = vpack.c.b16 %v828, %v827
        %v922 = vpack.c.b16 %v830, %v829
        %v923 = vpack.c.b16 %v832, %v831
        %v924 = vpack.c.b16 %v834, %v833
        %v925 = vpack.c.b16 %v836, %v835
        %v926 = vpack.c.b16 %v838, %v837
        %v927 = vpack.c.b16 %v840, %v839
        %v928 = vpack.c.b16 %v842, %v841
        %v929 = vpack.c.b16 %v844, %v843
        %v930 = vpack.c.b16 %v846, %v845
        %v931 = vpack.c.b16 %v848, %v847
        %v932 = vpack.c.b16 %v850, %v849
        %v933 = vpack.c.b16 %v852, %v851
        %v934 = vpack.c.b16 %v854, %v853
        %v935 = vpack.c.b16 %v856, %v855
        %v936 = vpack.c.b16 %v858, %v857
        %v937 = vpack.c.b16 %v860, %v859
        %v938 = vpack.c.b16 %v862, %v861
        %v939 = vpack.c.b16 %v864, %v863
        %v940 = vpack.c.b16 %v866, %v865
        %v941 = vpack.c.b16 %v868, %v867
        %v942 = vpack.c.b16 %v870, %v869
        %v943 = vpack.c.b16 %v872, %v871
        %v944 = vpack.c.b16 %v874, %v873
        %v945 = vpack.c.b16 %v876, %v875
        %v946 = vpack.c.b16 %v878, %v877
        %v947 = vpack.c.b16 %v880, %v879
        %v948 = vpack.c.b16 %v882, %v881
        %v949 = vpack.c.b16 %v884, %v883
        %v950 = vpack.c.b16 %v886, %v885
        %v951 = vpack.c.b16 %v888, %v887
        %v952 = vpack.c.b16 %v890, %v889
        %v953 = vpack.c.b16 %v892, %v891
        %v954 = vpack.c.b16 %v894, %v893
        %v955 = vpack.c.b16 %v896, %v895
        %v956 = vpack.c.b16 %v898, %v897
        %v957 = vpack.c.b16 %v900, %v899
        %v958 = vpack.c.b16 %v902, %v901
        %v959 = vpack.c.b16 %v904, %v903
        %v960 = vpack.c.b16 %v906, %v905
        %v961 = vpack.c.b16 %v908, %v907
        %v962 = vpack.c.b16 %v910, %v909
        %v973 = vunpack.c.l.b16 %v693
        %v974 = vunpack.c.l.b16 %v694
        %v975 = vunpack.c.l.b16 %v695
        %v976 = vunpack.c.l.b16 %v696
        %v977 = vunpack.c.l.b16 %v697
        %v978 = vunpack.c.l.b16 %v698
        %v979 = vunpack.c.l.b16 %v699
        %v980 = vunpack.c.l.b16 %v700
        %v981 = vunpack.c.l.b16 %v701
        %v982 = vunpack.c.l.b16 %v702
        %v983 = vpack.c.b16 %v974, %v973
        %v984 = vpack.c.b16 %v976, %v975
        %v985 = vpack.c.b16 %v978, %v977
        %v986 = vpack.c.b16 %v980, %v979
        %v987 = vpack.c.b16 %v982, %v981
        %vm992 = vcmask 613376
        %v994 = vsel %vm992, %v911, 0
        %v997 = vsel %vm992, %v912, 0
        %v1000 = vsel %vm992, %v913, 0
        %v1003 = vsel %vm992, %v914, 0
        %v1006 = vsel %vm992, %v915, 0
        %v1009 = vsel %vm992, %v916, 0
        %v1012 = vsel %vm992, %v917, 0
        %v1015 = vsel %vm992, %v918, 0
        %v1018 = vsel %vm992, %v919, 0
        %v1021 = vsel %vm992, %v920, 0
        %v1024 = vsel %vm992, %v921, 0
        %v1027 = vsel %vm992, %v922, 0
        %v1030 = vsel %vm992, %v923, 0
        %v1033 = vsel %vm992, %v924, 0
        %v1036 = vsel %vm992, %v925, 0
        %v1039 = vsel %vm992, %v926, 0
        %v1042 = vsel %vm992, %v927, 0
        %v1045 = vsel %vm992, %v928, 0
        %v1048 = vsel %vm992, %v929, 0
        %v1051 = vsel %vm992, %v930, 0
        %v1054 = vsel %vm992, %v931, 0
        %v1057 = vsel %vm992, %v932, 0
        %v1060 = vsel %vm992, %v933, 0
        %v1063 = vsel %vm992, %v934, 0
        %v1066 = vsel %vm992, %v935, 0
        %v1069 = vsel %vm992, %v936, 0
        %v1072 = vsel %vm992, %v937, 0
        %v1075 = vsel %vm992, %v938, 0
        %v1078 = vsel %vm992, %v939, 0
        %v1081 = vsel %vm992, %v940, 0
        %v1084 = vsel %vm992, %v941, 0
        %v1087 = vsel %vm992, %v942, 0
        %v1090 = vsel %vm992, %v943, 0
        %v1093 = vsel %vm992, %v944, 0
        %v1096 = vsel %vm992, %v945, 0
        %v1099 = vsel %vm992, %v946, 0
        %v1102 = vsel %vm992, %v947, 0
        %v1105 = vsel %vm992, %v948, 0
        %v1108 = vsel %vm992, %v949, 0
        %v1111 = vsel %vm992, %v950, 0
        %v1114 = vsel %vm992, %v951, 0
        %v1117 = vsel %vm992, %v952, 0
        %v1120 = vsel %vm992, %v953, 0
        %v1123 = vsel %vm992, %v954, 0
        %v1126 = vsel %vm992, %v955, 0
        %v1129 = vsel %vm992, %v956, 0
        %v1132 = vsel %vm992, %v957, 0
        %v1135 = vsel %vm992, %v958, 0
        %v1138 = vsel %vm992, %v959, 0
        %v1141 = vsel %vm992, %v960, 0
        %v1144 = vsel %vm992, %v961, 0
        %v1147 = vsel %vm992, %v962, 0
        %vm1149 = vcmask 1044480
        %vm1150 = vcmask 1045504
        %v1151 = vsel %vm1149, 4294967295, 65535
        %v1152 = vsel %vm1150, %v1151, 0
        %v1154 = vand.u32 %v987, %v1152
        %1156 = vmatprep.subr.bf16.mxu0 0
        %1157 = vmatpush1.bf16.msra.mxu0 %v983
        %1158 = vmatprep.subr.bf16.mxu0 0
        %1159 = vmatpush1.bf16.msra.mxu0 %v984
        %1160 = vmatprep.subr.bf16.mxu0 0
        %1161 = vmatpush1.bf16.msra.mxu0 %v985
        %1162 = vmatprep.subr.bf16.mxu0 0
        %1163 = vmatpush1.bf16.msra.mxu0 %v986
        %1164 = vmatprep.subr.bf16.mxu0 0
        %1165 = vmatpush1.bf16.msra.mxu0 %v1154
        %1166 = vmatprep.subr.bf16.mxu0 0
        %1167 = vmatpush1.bf16.msra.mxu0 0
        %1168 = vmatprep.subr.bf16.mxu0 0
        %1169 = vmatpush1.bf16.msra.mxu0 0
        %1170 = vmatprep.subr.bf16.mxu0 0
        %1171 = vmatpush1.bf16.msra.mxu0 0
        %1172 = vmatprep.subr.bf16.mxu0 0
        %1173 = vmatpush1.bf16.msra.mxu0 0
        %1174 = vmatprep.subr.bf16.mxu0 0
        %1175 = vmatpush1.bf16.msra.mxu0 0
        %1176 = vmatprep.subr.bf16.mxu0 0
        %1177 = vmatpush1.bf16.msra.mxu0 0
        %1178 = vmatprep.subr.bf16.mxu0 0
        %1179 = vmatpush1.bf16.msra.mxu0 0
        %1180 = vmatprep.subr.bf16.mxu0 0
        %1181 = vmatpush1.bf16.msra.mxu0 0
        %1182 = vmatprep.subr.bf16.mxu0 0
        %1183 = vmatpush1.bf16.msra.mxu0 0
        %1184 = vmatprep.subr.bf16.mxu0 0
        %1185 = vmatpush1.bf16.msra.mxu0 0
        %1186 = vmatprep.subr.bf16.mxu0 0
        %1187 = vmatpush1.bf16.msra.mxu0 0
        %1188 = vmatprep.mubr.bf16.mxu0 0
        %1189 = vmatmul.mubr.bf16.gmra.mrb[0].mxu0 %v994
        %v1190 = vpop.f32.mrb[0].mxu0
        %v1191 = vadd.f32 0.0, %v1190
        %v1192 = vpop.f32.mrb[0].mxu0
        %v1193 = vpop.f32.mrb[0].mxu0
        %v1194 = vadd.f32 0.0, %v1193
        %v1195 = vpop.f32.mrb[0].mxu0
        %1196 = vmatprep.mubr.bf16.mxu0 0
        %1197 = vmatmul.mubr.bf16.gmra.mrb[0].mxu0 %v997
        %v1198 = vpop.f32.mrb[0].mxu0
        %v1199 = vadd.f32 0.0, %v1198
        %v1200 = vpop.f32.mrb[0].mxu0
        %v1201 = vpop.f32.mrb[0].mxu0
        %v1202 = vadd.f32 0.0, %v1201
        %v1203 = vpop.f32.mrb[0].mxu0
        %1204 = vmatprep.mubr.bf16.mxu0 0
        %1205 = vmatmul.mubr.bf16.gmra.mrb[0].mxu0 %v1000
        %v1206 = vpop.f32.mrb[0].mxu0
        %v1207 = vadd.f32 0.0, %v1206
        %v1208 = vpop.f32.mrb[0].mxu0
        %v1209 = vpop.f32.mrb[0].mxu0
        %v1210 = vadd.f32 0.0, %v1209
        %v1211 = vpop.f32.mrb[0].mxu0
        %1212 = vmatprep.mubr.bf16.mxu0 0
        %1213 = vmatmul.mubr.bf16.gmra.mrb[0].mxu0 %v1003
        %v1214 = vpop.f32.mrb[0].mxu0
        %v1215 = vadd.f32 0.0, %v1214
        %v1216 = vpop.f32.mrb[0].mxu0
        %v1217 = vpop.f32.mrb[0].mxu0
        %v1218 = vadd.f32 0.0, %v1217
        %v1219 = vpop.f32.mrb[0].mxu0
        %1220 = vmatprep.mubr.bf16.mxu0 0
        %1221 = vmatmul.mubr.bf16.gmra.mrb[0].mxu0 %v1006
        %v1222 = vpop.f32.mrb[0].mxu0
        %v1223 = vadd.f32 0.0, %v1222
        %v1224 = vpop.f32.mrb[0].mxu0
        %v1225 = vpop.f32.mrb[0].mxu0
        %v1226 = vadd.f32 0.0, %v1225
        %v1227 = vpop.f32.mrb[0].mxu0
        %1228 = vmatprep.mubr.bf16.mxu0 0
        %1229 = vmatmul.mubr.bf16.gmra.mrb[0].mxu0 %v1009
        %v1230 = vpop.f32.mrb[0].mxu0
        %v1231 = vadd.f32 0.0, %v1230
        %v1232 = vpop.f32.mrb[0].mxu0
        %v1233 = vpop.f32.mrb[0].mxu0
        %v1234 = vadd.f32 0.0, %v1233
        %v1235 = vpop.f32.mrb[0].mxu0
        %1236 = vmatprep.mubr.bf16.mxu0 0
        %1237 = vmatmul.mubr.bf16.gmra.mrb[0].mxu0 %v1012
        %v1238 = vpop.f32.mrb[0].mxu0
        %v1239 = vadd.f32 0.0, %v1238
        %v1240 = vpop.f32.mrb[0].mxu0
        %v1241 = vpop.f32.mrb[0].mxu0
        %v1242 = vadd.f32 0.0, %v1241
        %v1243 = vpop.f32.mrb[0].mxu0
        %1244 = vmatprep.mubr.bf16.mxu0 0
        %1245 = vmatmul.mubr.bf16.gmra.mrb[0].mxu0 %v1015
        %v1246 = vpop.f32.mrb[0].mxu0
        %v1247 = vadd.f32 0.0, %v1246
        %v1248 = vpop.f32.mrb[0].mxu0
        %v1249 = vpop.f32.mrb[0].mxu0
        %v1250 = vadd.f32 0.0, %v1249
        %v1251 = vpop.f32.mrb[0].mxu0
        %1252 = vmatprep.mubr.bf16.mxu0 0
        %1253 = vmatmul.mubr.bf16.gmra.mrb[0].mxu0 %v1018
        %v1254 = vpop.f32.mrb[0].mxu0
        %v1255 = vadd.f32 0.0, %v1254
        %v1256 = vpop.f32.mrb[0].mxu0
        %v1257 = vpop.f32.mrb[0].mxu0
        %v1258 = vadd.f32 0.0, %v1257
        %v1259 = vpop.f32.mrb[0].mxu0
        %1260 = vmatprep.mubr.bf16.mxu0 0
        %1261 = vmatmul.mubr.bf16.gmra.mrb[0].mxu0 %v1021
        %v1262 = vpop.f32.mrb[0].mxu0
        %v1263 = vadd.f32 0.0, %v1262
        %v1264 = vpop.f32.mrb[0].mxu0
        %v1265 = vpop.f32.mrb[0].mxu0
        %v1266 = vadd.f32 0.0, %v1265
        %v1267 = vpop.f32.mrb[0].mxu0
        %1268 = vmatprep.mubr.bf16.mxu0 0
        %1269 = vmatmul.mubr.bf16.gmra.mrb[0].mxu0 %v1024
        %v1270 = vpop.f32.mrb[0].mxu0
        %v1271 = vadd.f32 0.0, %v1270
        %v1272 = vpop.f32.mrb[0].mxu0
        %v1273 = vpop.f32.mrb[0].mxu0
        %v1274 = vadd.f32 0.0, %v1273
        %v1275 = vpop.f32.mrb[0].mxu0
        %1276 = vmatprep.mubr.bf16.mxu0 0
        %1277 = vmatmul.mubr.bf16.gmra.mrb[0].mxu0 %v1027
        %v1278 = vpop.f32.mrb[0].mxu0
        %v1279 = vadd.f32 0.0, %v1278
        %v1280 = vpop.f32.mrb[0].mxu0
        %v1281 = vpop.f32.mrb[0].mxu0
        %v1282 = vadd.f32 0.0, %v1281
        %v1283 = vpop.f32.mrb[0].mxu0
        %1284 = vmatprep.mubr.bf16.mxu0 0
        %1285 = vmatmul.mubr.bf16.gmra.mrb[0].mxu0 %v1030
        %v1286 = vpop.f32.mrb[0].mxu0
        %v1287 = vadd.f32 0.0, %v1286
        %v1288 = vpop.f32.mrb[0].mxu0
        %v1289 = vpop.f32.mrb[0].mxu0
        %v1290 = vadd.f32 0.0, %v1289
        %v1291 = vpop.f32.mrb[0].mxu0
        %1292 = vmatprep.mubr.bf16.mxu0 0
        %1293 = vmatmul.mubr.bf16.gmra.mrb[0].mxu0 %v1033
        %v1294 = vpop.f32.mrb[0].mxu0
        %v1295 = vadd.f32 0.0, %v1294
        %v1296 = vpop.f32.mrb[0].mxu0
        %v1297 = vpop.f32.mrb[0].mxu0
        %v1298 = vadd.f32 0.0, %v1297
        %v1299 = vpop.f32.mrb[0].mxu0
        %1300 = vmatprep.mubr.bf16.mxu0 0
        %1301 = vmatmul.mubr.bf16.gmra.mrb[0].mxu0 %v1036
        %v1302 = vpop.f32.mrb[0].mxu0
        %v1303 = vadd.f32 0.0, %v1302
        %v1304 = vpop.f32.mrb[0].mxu0
        %v1305 = vpop.f32.mrb[0].mxu0
        %v1306 = vadd.f32 0.0, %v1305
        %v1307 = vpop.f32.mrb[0].mxu0
        %1308 = vmatprep.mubr.bf16.mxu0 0
        %1309 = vmatmul.mubr.bf16.gmra.mrb[0].mxu0 %v1039
        %v1310 = vpop.f32.mrb[0].mxu0
        %v1311 = vadd.f32 0.0, %v1310
        %v1312 = vpop.f32.mrb[0].mxu0
        %v1313 = vpop.f32.mrb[0].mxu0
        %v1314 = vadd.f32 0.0, %v1313
        %v1315 = vpop.f32.mrb[0].mxu0
        %1316 = vmatprep.mubr.bf16.mxu0 0
        %1317 = vmatmul.mubr.bf16.gmra.mrb[0].mxu0 %v1042
        %v1318 = vpop.f32.mrb[0].mxu0
        %v1319 = vadd.f32 0.0, %v1318
        %v1320 = vpop.f32.mrb[0].mxu0
        %v1321 = vpop.f32.mrb[0].mxu0
        %v1322 = vadd.f32 0.0, %v1321
        %v1323 = vpop.f32.mrb[0].mxu0
        %1324 = vmatprep.mubr.bf16.mxu0 0
        %1325 = vmatmul.mubr.bf16.gmra.mrb[0].mxu0 %v1045
        %v1326 = vpop.f32.mrb[0].mxu0
        %v1327 = vadd.f32 0.0, %v1326
        %v1328 = vpop.f32.mrb[0].mxu0
        %v1329 = vpop.f32.mrb[0].mxu0
        %v1330 = vadd.f32 0.0, %v1329
        %v1331 = vpop.f32.mrb[0].mxu0
        %1332 = vmatprep.mubr.bf16.mxu0 0
        %1333 = vmatmul.mubr.bf16.gmra.mrb[0].mxu0 %v1048
        %v1334 = vpop.f32.mrb[0].mxu0
        %v1335 = vadd.f32 0.0, %v1334
        %v1336 = vpop.f32.mrb[0].mxu0
        %v1337 = vpop.f32.mrb[0].mxu0
        %v1338 = vadd.f32 0.0, %v1337
        %v1339 = vpop.f32.mrb[0].mxu0
        %1340 = vmatprep.mubr.bf16.mxu0 0
        %1341 = vmatmul.mubr.bf16.gmra.mrb[0].mxu0 %v1051
        %v1342 = vpop.f32.mrb[0].mxu0
        %v1343 = vadd.f32 0.0, %v1342
        %v1344 = vpop.f32.mrb[0].mxu0
        %v1345 = vpop.f32.mrb[0].mxu0
        %v1346 = vadd.f32 0.0, %v1345
        %v1347 = vpop.f32.mrb[0].mxu0
        %1348 = vmatprep.mubr.bf16.mxu0 0
        %1349 = vmatmul.mubr.bf16.gmra.mrb[0].mxu0 %v1054
        %v1350 = vpop.f32.mrb[0].mxu0
        %v1351 = vadd.f32 0.0, %v1350
        %v1352 = vpop.f32.mrb[0].mxu0
        %v1353 = vpop.f32.mrb[0].mxu0
        %v1354 = vadd.f32 0.0, %v1353
        %v1355 = vpop.f32.mrb[0].mxu0
        %1356 = vmatprep.mubr.bf16.mxu0 0
        %1357 = vmatmul.mubr.bf16.gmra.mrb[0].mxu0 %v1057
        %v1358 = vpop.f32.mrb[0].mxu0
        %v1359 = vadd.f32 0.0, %v1358
        %v1360 = vpop.f32.mrb[0].mxu0
        %v1361 = vpop.f32.mrb[0].mxu0
        %v1362 = vadd.f32 0.0, %v1361
        %v1363 = vpop.f32.mrb[0].mxu0
        %1364 = vmatprep.mubr.bf16.mxu0 0
        %1365 = vmatmul.mubr.bf16.gmra.mrb[0].mxu0 %v1060
        %v1366 = vpop.f32.mrb[0].mxu0
        %v1367 = vadd.f32 0.0, %v1366
        %v1368 = vpop.f32.mrb[0].mxu0
        %v1369 = vpop.f32.mrb[0].mxu0
        %v1370 = vadd.f32 0.0, %v1369
        %v1371 = vpop.f32.mrb[0].mxu0
        %1372 = vmatprep.mubr.bf16.mxu0 0
        %1373 = vmatmul.mubr.bf16.gmra.mrb[0].mxu0 %v1063
        %v1374 = vpop.f32.mrb[0].mxu0
        %v1375 = vadd.f32 0.0, %v1374
        %v1376 = vpop.f32.mrb[0].mxu0
        %v1377 = vpop.f32.mrb[0].mxu0
        %v1378 = vadd.f32 0.0, %v1377
        %v1379 = vpop.f32.mrb[0].mxu0
        %1380 = vmatprep.mubr.bf16.mxu0 0
        %1381 = vmatmul.mubr.bf16.gmra.mrb[0].mxu0 %v1066
        %v1382 = vpop.f32.mrb[0].mxu0
        %v1383 = vadd.f32 0.0, %v1382
        %v1384 = vpop.f32.mrb[0].mxu0
        %v1385 = vpop.f32.mrb[0].mxu0
        %v1386 = vadd.f32 0.0, %v1385
        %v1387 = vpop.f32.mrb[0].mxu0
        %1388 = vmatprep.mubr.bf16.mxu0 0
        %1389 = vmatmul.mubr.bf16.gmra.mrb[0].mxu0 %v1069
        %v1390 = vpop.f32.mrb[0].mxu0
        %v1391 = vadd.f32 0.0, %v1390
        %v1392 = vpop.f32.mrb[0].mxu0
        %v1393 = vpop.f32.mrb[0].mxu0
        %v1394 = vadd.f32 0.0, %v1393
        %v1395 = vpop.f32.mrb[0].mxu0
        %1396 = vmatprep.mubr.bf16.mxu0 0
        %1397 = vmatmul.mubr.bf16.gmra.mrb[0].mxu0 %v1072
        %v1398 = vpop.f32.mrb[0].mxu0
        %v1399 = vadd.f32 0.0, %v1398
        %v1400 = vpop.f32.mrb[0].mxu0
        %v1401 = vpop.f32.mrb[0].mxu0
        %v1402 = vadd.f32 0.0, %v1401
        %v1403 = vpop.f32.mrb[0].mxu0
        %1404 = vmatprep.mubr.bf16.mxu0 0
        %1405 = vmatmul.mubr.bf16.gmra.mrb[0].mxu0 %v1075
        %v1406 = vpop.f32.mrb[0].mxu0
        %v1407 = vadd.f32 0.0, %v1406
        %v1408 = vpop.f32.mrb[0].mxu0
        %v1409 = vpop.f32.mrb[0].mxu0
        %v1410 = vadd.f32 0.0, %v1409
        %v1411 = vpop.f32.mrb[0].mxu0
        %1412 = vmatprep.mubr.bf16.mxu0 0
        %1413 = vmatmul.mubr.bf16.gmra.mrb[0].mxu0 %v1078
        %v1414 = vpop.f32.mrb[0].mxu0
        %v1415 = vadd.f32 0.0, %v1414
        %v1416 = vpop.f32.mrb[0].mxu0
        %v1417 = vpop.f32.mrb[0].mxu0
        %v1418 = vadd.f32 0.0, %v1417
        %v1419 = vpop.f32.mrb[0].mxu0
        %1420 = vmatprep.mubr.bf16.mxu0 0
        %1421 = vmatmul.mubr.bf16.gmra.mrb[0].mxu0 %v1081
        %v1422 = vpop.f32.mrb[0].mxu0
        %v1423 = vadd.f32 0.0, %v1422
        %v1424 = vpop.f32.mrb[0].mxu0
        %v1425 = vpop.f32.mrb[0].mxu0
        %v1426 = vadd.f32 0.0, %v1425
        %v1427 = vpop.f32.mrb[0].mxu0
        %1428 = vmatprep.mubr.bf16.mxu0 0
        %1429 = vmatmul.mubr.bf16.gmra.mrb[0].mxu0 %v1084
        %v1430 = vpop.f32.mrb[0].mxu0
        %v1431 = vadd.f32 0.0, %v1430
        %v1432 = vpop.f32.mrb[0].mxu0
        %v1433 = vpop.f32.mrb[0].mxu0
        %v1434 = vadd.f32 0.0, %v1433
        %v1435 = vpop.f32.mrb[0].mxu0
        %1436 = vmatprep.mubr.bf16.mxu0 0
        %1437 = vmatmul.mubr.bf16.gmra.mrb[0].mxu0 %v1087
        %v1438 = vpop.f32.mrb[0].mxu0
        %v1439 = vadd.f32 0.0, %v1438
        %v1440 = vpop.f32.mrb[0].mxu0
        %v1441 = vpop.f32.mrb[0].mxu0
        %v1442 = vadd.f32 0.0, %v1441
        %v1443 = vpop.f32.mrb[0].mxu0
        %1444 = vmatprep.mubr.bf16.mxu0 0
        %1445 = vmatmul.mubr.bf16.gmra.mrb[0].mxu0 %v1090
        %v1446 = vpop.f32.mrb[0].mxu0
        %v1447 = vadd.f32 0.0, %v1446
        %v1448 = vpop.f32.mrb[0].mxu0
        %v1449 = vpop.f32.mrb[0].mxu0
        %v1450 = vadd.f32 0.0, %v1449
        %v1451 = vpop.f32.mrb[0].mxu0
        %1452 = vmatprep.mubr.bf16.mxu0 0
        %1453 = vmatmul.mubr.bf16.gmra.mrb[0].mxu0 %v1093
        %v1454 = vpop.f32.mrb[0].mxu0
        %v1455 = vadd.f32 0.0, %v1454
        %v1456 = vpop.f32.mrb[0].mxu0
        %v1457 = vpop.f32.mrb[0].mxu0
        %v1458 = vadd.f32 0.0, %v1457
        %v1459 = vpop.f32.mrb[0].mxu0
        %1460 = vmatprep.mubr.bf16.mxu0 0
        %1461 = vmatmul.mubr.bf16.gmra.mrb[0].mxu0 %v1096
        %v1462 = vpop.f32.mrb[0].mxu0
        %v1463 = vadd.f32 0.0, %v1462
        %v1464 = vpop.f32.mrb[0].mxu0
        %v1465 = vpop.f32.mrb[0].mxu0
        %v1466 = vadd.f32 0.0, %v1465
        %v1467 = vpop.f32.mrb[0].mxu0
        %1468 = vmatprep.mubr.bf16.mxu0 0
        %1469 = vmatmul.mubr.bf16.gmra.mrb[0].mxu0 %v1099
        %v1470 = vpop.f32.mrb[0].mxu0
        %v1471 = vadd.f32 0.0, %v1470
        %v1472 = vpop.f32.mrb[0].mxu0
        %v1473 = vpop.f32.mrb[0].mxu0
        %v1474 = vadd.f32 0.0, %v1473
        %v1475 = vpop.f32.mrb[0].mxu0
        %1476 = vmatprep.mubr.bf16.mxu0 0
        %1477 = vmatmul.mubr.bf16.gmra.mrb[0].mxu0 %v1102
        %v1478 = vpop.f32.mrb[0].mxu0
        %v1479 = vadd.f32 0.0, %v1478
        %v1480 = vpop.f32.mrb[0].mxu0
        %v1481 = vpop.f32.mrb[0].mxu0
        %v1482 = vadd.f32 0.0, %v1481
        %v1483 = vpop.f32.mrb[0].mxu0
        %1484 = vmatprep.mubr.bf16.mxu0 0
        %1485 = vmatmul.mubr.bf16.gmra.mrb[0].mxu0 %v1105
        %v1486 = vpop.f32.mrb[0].mxu0
        %v1487 = vadd.f32 0.0, %v1486
        %v1488 = vpop.f32.mrb[0].mxu0
        %v1489 = vpop.f32.mrb[0].mxu0
        %v1490 = vadd.f32 0.0, %v1489
        %v1491 = vpop.f32.mrb[0].mxu0
        %1492 = vmatprep.mubr.bf16.mxu0 0
        %1493 = vmatmul.mubr.bf16.gmra.mrb[0].mxu0 %v1108
        %v1494 = vpop.f32.mrb[0].mxu0
        %v1495 = vadd.f32 0.0, %v1494
        %v1496 = vpop.f32.mrb[0].mxu0
        %v1497 = vpop.f32.mrb[0].mxu0
        %v1498 = vadd.f32 0.0, %v1497
        %v1499 = vpop.f32.mrb[0].mxu0
        %1500 = vmatprep.mubr.bf16.mxu0 0
        %1501 = vmatmul.mubr.bf16.gmra.mrb[0].mxu0 %v1111
        %v1502 = vpop.f32.mrb[0].mxu0
        %v1503 = vadd.f32 0.0, %v1502
        %v1504 = vpop.f32.mrb[0].mxu0
        %v1505 = vpop.f32.mrb[0].mxu0
        %v1506 = vadd.f32 0.0, %v1505
        %v1507 = vpop.f32.mrb[0].mxu0
        %1508 = vmatprep.mubr.bf16.mxu0 0
        %1509 = vmatmul.mubr.bf16.gmra.mrb[0].mxu0 %v1114
        %v1510 = vpop.f32.mrb[0].mxu0
        %v1511 = vadd.f32 0.0, %v1510
        %v1512 = vpop.f32.mrb[0].mxu0
        %v1513 = vpop.f32.mrb[0].mxu0
        %v1514 = vadd.f32 0.0, %v1513
        %v1515 = vpop.f32.mrb[0].mxu0
        %1516 = vmatprep.mubr.bf16.mxu0 0
        %1517 = vmatmul.mubr.bf16.gmra.mrb[0].mxu0 %v1117
        %v1518 = vpop.f32.mrb[0].mxu0
        %v1519 = vadd.f32 0.0, %v1518
        %v1520 = vpop.f32.mrb[0].mxu0
        %v1521 = vpop.f32.mrb[0].mxu0
        %v1522 = vadd.f32 0.0, %v1521
        %v1523 = vpop.f32.mrb[0].mxu0
        %1524 = vmatprep.mubr.bf16.mxu0 0
        %1525 = vmatmul.mubr.bf16.gmra.mrb[0].mxu0 %v1120
        %v1526 = vpop.f32.mrb[0].mxu0
        %v1527 = vadd.f32 0.0, %v1526
        %v1528 = vpop.f32.mrb[0].mxu0
        %v1529 = vpop.f32.mrb[0].mxu0
        %v1530 = vadd.f32 0.0, %v1529
        %v1531 = vpop.f32.mrb[0].mxu0
        %1532 = vmatprep.mubr.bf16.mxu0 0
        %1533 = vmatmul.mubr.bf16.gmra.mrb[0].mxu0 %v1123
        %v1534 = vpop.f32.mrb[0].mxu0
        %v1535 = vadd.f32 0.0, %v1534
        %v1536 = vpop.f32.mrb[0].mxu0
        %v1537 = vpop.f32.mrb[0].mxu0
        %v1538 = vadd.f32 0.0, %v1537
        %v1539 = vpop.f32.mrb[0].mxu0
        %1540 = vmatprep.mubr.bf16.mxu0 0
        %1541 = vmatmul.mubr.bf16.gmra.mrb[0].mxu0 %v1126
        %v1542 = vpop.f32.mrb[0].mxu0
        %v1543 = vadd.f32 0.0, %v1542
        %v1544 = vpop.f32.mrb[0].mxu0
        %v1545 = vpop.f32.mrb[0].mxu0
        %v1546 = vadd.f32 0.0, %v1545
        %v1547 = vpop.f32.mrb[0].mxu0
        %1548 = vmatprep.mubr.bf16.mxu0 0
        %1549 = vmatmul.mubr.bf16.gmra.mrb[0].mxu0 %v1129
        %v1550 = vpop.f32.mrb[0].mxu0
        %v1551 = vadd.f32 0.0, %v1550
        %v1552 = vpop.f32.mrb[0].mxu0
        %v1553 = vpop.f32.mrb[0].mxu0
        %v1554 = vadd.f32 0.0, %v1553
        %v1555 = vpop.f32.mrb[0].mxu0
        %1556 = vmatprep.mubr.bf16.mxu0 0
        %1557 = vmatmul.mubr.bf16.gmra.mrb[0].mxu0 %v1132
        %v1558 = vpop.f32.mrb[0].mxu0
        %v1559 = vadd.f32 0.0, %v1558
        %v1560 = vpop.f32.mrb[0].mxu0
        %v1561 = vpop.f32.mrb[0].mxu0
        %v1562 = vadd.f32 0.0, %v1561
        %v1563 = vpop.f32.mrb[0].mxu0
        %1564 = vmatprep.mubr.bf16.mxu0 0
        %1565 = vmatmul.mubr.bf16.gmra.mrb[0].mxu0 %v1135
        %v1566 = vpop.f32.mrb[0].mxu0
        %v1567 = vadd.f32 0.0, %v1566
        %v1568 = vpop.f32.mrb[0].mxu0
        %v1569 = vpop.f32.mrb[0].mxu0
        %v1570 = vadd.f32 0.0, %v1569
        %v1571 = vpop.f32.mrb[0].mxu0
        %1572 = vmatprep.mubr.bf16.mxu0 0
        %1573 = vmatmul.mubr.bf16.gmra.mrb[0].mxu0 %v1138
        %v1574 = vpop.f32.mrb[0].mxu0
        %v1575 = vadd.f32 0.0, %v1574
        %v1576 = vpop.f32.mrb[0].mxu0
        %v1577 = vpop.f32.mrb[0].mxu0
        %v1578 = vadd.f32 0.0, %v1577
        %v1579 = vpop.f32.mrb[0].mxu0
        %1580 = vmatprep.mubr.bf16.mxu0 0
        %1581 = vmatmul.mubr.bf16.gmra.mrb[0].mxu0 %v1141
        %v1582 = vpop.f32.mrb[0].mxu0
        %v1583 = vadd.f32 0.0, %v1582
        %v1584 = vpop.f32.mrb[0].mxu0
        %v1585 = vpop.f32.mrb[0].mxu0
        %v1586 = vadd.f32 0.0, %v1585
        %v1587 = vpop.f32.mrb[0].mxu0
        %1588 = vmatprep.mubr.bf16.mxu0 0
        %1589 = vmatmul.mubr.bf16.gmra.mrb[0].mxu0 %v1144
        %v1590 = vpop.f32.mrb[0].mxu0
        %v1591 = vadd.f32 0.0, %v1590
        %v1592 = vpop.f32.mrb[0].mxu0
        %v1593 = vpop.f32.mrb[0].mxu0
        %v1594 = vadd.f32 0.0, %v1593
        %v1595 = vpop.f32.mrb[0].mxu0
        %1596 = vmatprep.mubr.bf16.mxu0 0
        %1597 = vmatmul.mubr.bf16.gmra.mrb[0].mxu0 %v1147
        %v1598 = vpop.f32.mrb[0].mxu0
        %v1599 = vadd.f32 0.0, %v1598
        %v1600 = vpop.f32.mrb[0].mxu0
        %v1601 = vpop.f32.mrb[0].mxu0
        %v1602 = vadd.f32 0.0, %v1601
        %v1603 = vpop.f32.mrb[0].mxu0
        %1604 = vdwg.mxu0
        %v1605 = vmax.f32 %v1191, %v1295
        %v1606 = vmax.f32 %v1194, %v1298
        %v1607 = vmax.f32 %v1199, %v1303
        %v1608 = vmax.f32 %v1202, %v1306
        %v1609 = vmax.f32 %v1207, %v1311
        %v1610 = vmax.f32 %v1210, %v1314
        %v1611 = vmax.f32 %v1215, %v1319
        %v1612 = vmax.f32 %v1218, %v1322
        %v1613 = vmax.f32 %v1223, %v1327
        %v1614 = vmax.f32 %v1226, %v1330
        %v1615 = vmax.f32 %v1231, %v1335
        %v1616 = vmax.f32 %v1234, %v1338
        %v1617 = vmax.f32 %v1239, %v1343
        %v1618 = vmax.f32 %v1242, %v1346
        %v1619 = vmax.f32 %v1247, %v1351
        %v1620 = vmax.f32 %v1250, %v1354
        %v1621 = vmax.f32 %v1255, %v1359
        %v1622 = vmax.f32 %v1258, %v1362
        %v1623 = vmax.f32 %v1263, %v1367
        %v1624 = vmax.f32 %v1266, %v1370
        %v1625 = vmax.f32 %v1271, %v1375
        %v1626 = vmax.f32 %v1274, %v1378
        %v1627 = vmax.f32 %v1279, %v1383
        %v1628 = vmax.f32 %v1282, %v1386
        %v1629 = vmax.f32 %v1287, %v1391
        %v1630 = vmax.f32 %v1290, %v1394
        %v1631 = vmax.f32 %v1399, %v1503
        %v1632 = vmax.f32 %v1402, %v1506
        %v1633 = vmax.f32 %v1407, %v1511
        %v1634 = vmax.f32 %v1410, %v1514
        %v1635 = vmax.f32 %v1415, %v1519
        %v1636 = vmax.f32 %v1418, %v1522
        %v1637 = vmax.f32 %v1423, %v1527
        %v1638 = vmax.f32 %v1426, %v1530
        %v1639 = vmax.f32 %v1431, %v1535
        %v1640 = vmax.f32 %v1434, %v1538
        %v1641 = vmax.f32 %v1439, %v1543
        %v1642 = vmax.f32 %v1442, %v1546
        %v1643 = vmax.f32 %v1447, %v1551
        %v1644 = vmax.f32 %v1450, %v1554
        %v1645 = vmax.f32 %v1455, %v1559
        %v1646 = vmax.f32 %v1458, %v1562
        %v1647 = vmax.f32 %v1463, %v1567
        %v1648 = vmax.f32 %v1466, %v1570
        %v1649 = vmax.f32 %v1471, %v1575
        %v1650 = vmax.f32 %v1474, %v1578
        %v1651 = vmax.f32 %v1479, %v1583
        %v1652 = vmax.f32 %v1482, %v1586
        %v1653 = vmax.f32 %v1487, %v1591
        %v1654 = vmax.f32 %v1490, %v1594
        %v1655 = vmax.f32 %v1495, %v1599
        %v1656 = vmax.f32 %v1498, %v1602
        %v1657 = vmax.f32 %v1605, %v1631
        %v1658 = vmax.f32 %v1606, %v1632
        %v1659 = vmax.f32 %v1607, %v1633
        %v1660 = vmax.f32 %v1608, %v1634
        %v1661 = vmax.f32 %v1609, %v1635
        %v1662 = vmax.f32 %v1610, %v1636
        %v1663 = vmax.f32 %v1611, %v1637
        %v1664 = vmax.f32 %v1612, %v1638
        %v1665 = vmax.f32 %v1613, %v1639
        %v1666 = vmax.f32 %v1614, %v1640
        %v1667 = vmax.f32 %v1615, %v1641
        %v1668 = vmax.f32 %v1616, %v1642
        %v1669 = vmax.f32 %v1617, %v1643
        %v1670 = vmax.f32 %v1618, %v1644
        %v1671 = vmax.f32 %v1619, %v1645
        %v1672 = vmax.f32 %v1620, %v1646
        %v1673 = vmax.f32 %v1621, %v1647
        %v1674 = vmax.f32 %v1622, %v1648
        %v1675 = vmax.f32 %v1623, %v1649
        %v1676 = vmax.f32 %v1624, %v1650
        %v1677 = vmax.f32 %v1625, %v1651
        %v1678 = vmax.f32 %v1626, %v1652
        %v1679 = vmax.f32 %v1627, %v1653
        %v1680 = vmax.f32 %v1628, %v1654
        %v1681 = vmax.f32 %v1629, %v1655
        %v1682 = vmax.f32 %v1630, %v1656
        %v1683 = vld [vmem:[%s2] sm:$0x1]
        %v1685 = vlaneseq
        %v1686 = vshrl.u32 %v1685, 7
        %v1687 = vsub.s32 0, %v1686
        %v1688 = vrot.slane %v1683, %v1687
        %v1690 = vadd.f32 %v1657, %v1688
        %v1691 = vadd.f32 %v1658, %v1688
        %v1692 = vadd.f32 %v1659, %v1688
        %v1693 = vadd.f32 %v1660, %v1688
        %v1694 = vadd.f32 %v1661, %v1688
        %v1695 = vadd.f32 %v1662, %v1688
        %v1696 = vadd.f32 %v1663, %v1688
        %v1697 = vadd.f32 %v1664, %v1688
        %v1698 = vadd.f32 %v1665, %v1688
        %v1699 = vadd.f32 %v1666, %v1688
        %v1700 = vadd.f32 %v1667, %v1688
        %v1701 = vadd.f32 %v1668, %v1688
        %v1702 = vadd.f32 %v1669, %v1688
        %v1703 = vadd.f32 %v1670, %v1688
        %v1704 = vadd.f32 %v1671, %v1688
        %v1705 = vadd.f32 %v1672, %v1688
        %v1706 = vadd.f32 %v1673, %v1688
        %v1707 = vadd.f32 %v1674, %v1688
        %v1708 = vadd.f32 %v1675, %v1688
        %v1709 = vadd.f32 %v1676, %v1688
        %v1710 = vadd.f32 %v1677, %v1688
        %v1711 = vadd.f32 %v1678, %v1688
        %v1712 = vadd.f32 %v1679, %v1688
        %v1713 = vadd.f32 %v1680, %v1688
        %v1714 = vadd.f32 %v1681, %v1688
        %v1715 = vadd.f32 %v1682, %v1688
        %v1716 = vmax.f32 %v1690, 0.0
        %v1717 = vmax.f32 %v1691, 0.0
        %v1718 = vmax.f32 %v1692, 0.0
        %v1719 = vmax.f32 %v1693, 0.0
        %v1720 = vmax.f32 %v1694, 0.0
        %v1721 = vmax.f32 %v1695, 0.0
        %v1722 = vmax.f32 %v1696, 0.0
        %v1723 = vmax.f32 %v1697, 0.0
        %v1724 = vmax.f32 %v1698, 0.0
        %v1725 = vmax.f32 %v1699, 0.0
        %v1726 = vmax.f32 %v1700, 0.0
        %v1727 = vmax.f32 %v1701, 0.0
        %v1728 = vmax.f32 %v1702, 0.0
        %v1729 = vmax.f32 %v1703, 0.0
        %v1730 = vmax.f32 %v1704, 0.0
        %v1731 = vmax.f32 %v1705, 0.0
        %v1732 = vmax.f32 %v1706, 0.0
        %v1733 = vmax.f32 %v1707, 0.0
        %v1734 = vmax.f32 %v1708, 0.0
        %v1735 = vmax.f32 %v1709, 0.0
        %v1736 = vmax.f32 %v1710, 0.0
        %v1737 = vmax.f32 %v1711, 0.0
        %v1738 = vmax.f32 %v1712, 0.0
        %v1739 = vmax.f32 %v1713, 0.0
        %v1740 = vmax.f32 %v1714, 0.0
        %v1741 = vmax.f32 %v1715, 0.0
        %v1742 = vpack.c.bf16 %v1717, %v1716
        %v1743 = vpack.c.bf16 %v1719, %v1718
        %v1744 = vpack.c.bf16 %v1721, %v1720
        %v1745 = vpack.c.bf16 %v1723, %v1722
        %v1746 = vpack.c.bf16 %v1725, %v1724
        %v1747 = vpack.c.bf16 %v1727, %v1726
        %v1748 = vpack.c.bf16 %v1729, %v1728
        %v1749 = vpack.c.bf16 %v1731, %v1730
        %v1750 = vpack.c.bf16 %v1733, %v1732
        %v1751 = vpack.c.bf16 %v1735, %v1734
        %v1752 = vpack.c.bf16 %v1737, %v1736
        %v1753 = vpack.c.bf16 %v1739, %v1738
        %v1754 = vpack.c.bf16 %v1741, %v1740
        %v1768 = vunpack.c.l.b16 %v1742
        %v1769 = vunpack.c.h.b16 %v1742
        %v1770 = vunpack.c.l.b16 %v1743
        %v1771 = vunpack.c.h.b16 %v1743
        %v1772 = vunpack.c.l.b16 %v1744
        %v1773 = vunpack.c.h.b16 %v1744
        %v1774 = vunpack.c.l.b16 %v1745
        %v1775 = vunpack.c.h.b16 %v1745
        %v1776 = vunpack.c.l.b16 %v1746
        %v1777 = vunpack.c.h.b16 %v1746
        %v1778 = vunpack.c.l.b16 %v1747
        %v1779 = vunpack.c.h.b16 %v1747
        %v1780 = vunpack.c.l.b16 %v1748
        %v1781 = vunpack.c.h.b16 %v1748
        %v1782 = vunpack.c.l.b16 %v1749
        %v1783 = vunpack.c.h.b16 %v1749
        %v1784 = vunpack.c.l.b16 %v1750
        %v1785 = vunpack.c.h.b16 %v1750
        %v1786 = vunpack.c.l.b16 %v1751
        %v1787 = vunpack.c.h.b16 %v1751
        %v1788 = vunpack.c.l.b16 %v1752
        %v1789 = vunpack.c.h.b16 %v1752
        %v1790 = vunpack.c.l.b16 %v1753
        %v1791 = vunpack.c.h.b16 %v1753
        %v1792 = vunpack.c.l.b16 %v1754
        %v1793 = vunpack.c.h.b16 %v1754
        %v1794 = vpack.c.b16 %v1768, %v1768
        %v1795 = vpack.c.b16 %v1769, %v1769
        %v1796 = vpack.c.b16 %v1770, %v1770
        %v1797 = vpack.c.b16 %v1771, %v1771
        %v1798 = vpack.c.b16 %v1772, %v1772
        %v1799 = vpack.c.b16 %v1773, %v1773
        %v1800 = vpack.c.b16 %v1774, %v1774
        %v1801 = vpack.c.b16 %v1775, %v1775
        %v1802 = vpack.c.b16 %v1776, %v1776
        %v1803 = vpack.c.b16 %v1777, %v1777
        %v1804 = vpack.c.b16 %v1778, %v1778
        %v1805 = vpack.c.b16 %v1779, %v1779
        %v1806 = vpack.c.b16 %v1780, %v1780
        %v1807 = vpack.c.b16 %v1781, %v1781
        %v1808 = vpack.c.b16 %v1782, %v1782
        %v1809 = vpack.c.b16 %v1783, %v1783
        %v1810 = vpack.c.b16 %v1784, %v1784
        %v1811 = vpack.c.b16 %v1785, %v1785
        %v1812 = vpack.c.b16 %v1786, %v1786
        %v1813 = vpack.c.b16 %v1787, %v1787
        %v1814 = vpack.c.b16 %v1788, %v1788
        %v1815 = vpack.c.b16 %v1789, %v1789
        %v1816 = vpack.c.b16 %v1790, %v1790
        %v1817 = vpack.c.b16 %v1791, %v1791
        %v1818 = vpack.c.b16 %v1792, %v1792
        %v1819 = vpack.c.b16 %v1793, %v1793
        %1846 = vst [vmem:[%s577] sm:$0xf] %v1794
        %1847 = vst [vmem:[%s577 + $0x4] sm:$0xf] %v1795
        %1848 = vst [vmem:[%s577 + $0x8] sm:$0xf] %v1796
        %1849 = vst [vmem:[%s577 + $0xc] sm:$0xf] %v1797
        %1850 = vst [vmem:[%s577 + $0x10] sm:$0xf] %v1798
        %1851 = vst [vmem:[%s577 + $0x14] sm:$0xf] %v1799
        %1852 = vst [vmem:[%s577 + $0x18] sm:$0xf] %v1800
        %1853 = vst [vmem:[%s577 + $0x1c] sm:$0xf] %v1801
        %1854 = vst [vmem:[%s577 + $0x20] sm:$0xf] %v1802
        %1855 = vst [vmem:[%s577 + $0x24] sm:$0xf] %v1803
        %1856 = vst [vmem:[%s577 + $0x28] sm:$0xf] %v1804
        %1857 = vst [vmem:[%s577 + $0x2c] sm:$0xf] %v1805
        %1858 = vst [vmem:[%s577 + $0x30] sm:$0xf] %v1806
        %1859 = vst [vmem:[%s577 + $0x34] sm:$0xf] %v1807
        %1860 = vst [vmem:[%s577 + $0x38] sm:$0xf] %v1808
        %1861 = vst [vmem:[%s577 + $0x3c] sm:$0xf] %v1809
        %1862 = vst [vmem:[%s577 + $0x40] sm:$0xf] %v1810
        %1863 = vst [vmem:[%s577 + $0x44] sm:$0xf] %v1811
        %1864 = vst [vmem:[%s577 + $0x48] sm:$0xf] %v1812
        %1865 = vst [vmem:[%s577 + $0x4c] sm:$0xf] %v1813
        %1866 = vst [vmem:[%s577 + $0x50] sm:$0xf] %v1814
        %1867 = vst [vmem:[%s577 + $0x54] sm:$0xf] %v1815
        %1868 = vst [vmem:[%s577 + $0x58] sm:$0xf] %v1816
        %1869 = vst [vmem:[%s577 + $0x5c] sm:$0xf] %v1817
        %1870 = vst [vmem:[%s577 + $0x60] sm:$0xf] %v1818
        %1871 = vst [vmem:[%s577 + $0x64] sm:$0xf] %v1819
        %s1872 = sand.u32 %s90, 1
        %s1873 = sand.u32 %s90, 1
        %s1874 = smul.addr %s1873, 104
        %s1875 = scalar_lea.vmem [#allocation3], %s1874
        // Predicated region
        $region95: #{net_forward.3} parent=89 // pred_check
          %p1876 = pneg %p100
        $region96: #{net_forward.3} parent=89 // pred_check_branch
          %1878 = sbr.rel (%p1876) target = $region98
        $region97: #{net_forward.3} parent=89 // pred_region
          %s1879 = smul.u32 26, %s14
          %s1880 = ssub.s32 49, %s1879
          %p1881 = scmp.lt.s32.totalorder %s1880, 26
          %s1882 = scalar_select %p1881, %s1880, 26
          %s1883 = smul.u32 64, %s1882
          %p1884 = scmp.ne.s32.totalorder 0, %s1883
          %s1885 = smul.addr %s1879, 4
          %s1886 = scalar_lea.vmem %s3, %s1885
          // Predicated region
          $region99: #{net_forward.3} parent=97 // pred_check
            %p1887 = pneg %p1884
          $region100: #{net_forward.3} parent=97 // pred_check_branch
            %1889 = sbr.rel (%p1887) target = $region102
          $region101: #{net_forward.3} parent=97 // pred_region
            // Predicated region
            $region103: #{net_forward.3} parent=101 // pred_check
              _
            $region104: #{net_forward.3} parent=101 // pred_check_branch
              %1891 = sbr.rel target = $region106
            $region105: #{net_forward.3} parent=101 // pred_region
              // Predicated region
              $region125: #{net_forward.3} parent=105 // pred_check
                _
              $region126: #{net_forward.3} parent=105 // pred_check_branch
                %1991 = sbr.rel (0) target = $region128
              $region127: #{net_forward.3} parent=105 // pred_region
                %s1993 = sdiv.u32.pop %s1882, 26
                %s1994 = srem.u32.pop %s1882, 26
                // While loop
                $region129: #{net_forward.3} parent=127 // loop_pre_header
                  _
                $region130: #{net_forward.3} parent=127 // loop_header
                  %s1996 = sphi 0, %s1998
                  %p1997 = scmp.ge.s32.totalorder %s1996, %s1993
                  %s2001 = sphi 0, %s2058
                  %s2002 = sphi %s1875, %s2061
                  %s2003 = sphi %s1886, %s2062
                $region131: #{net_forward.3} parent=127 // loop_header_branch
                  %2000 = sbr.rel (%p1997) target = $region135
                $region132: #{net_forward.3} parent=127 // loop_body
                  %v2004 = vld [vmem:[%s2002] sm:$0xf]
                  %2005 = vst [vmem:[%s2003] sm:$0xf] %v2004
                  %v2006 = vld [vmem:[%s2002 + $0x4] sm:$0xf]
                  %2007 = vst [vmem:[%s2003 + $0x4] sm:$0xf] %v2006
                  %v2008 = vld [vmem:[%s2002 + $0x8] sm:$0xf]
                  %2009 = vst [vmem:[%s2003 + $0x8] sm:$0xf] %v2008
                  %v2010 = vld [vmem:[%s2002 + $0xc] sm:$0xf]
                  %2011 = vst [vmem:[%s2003 + $0xc] sm:$0xf] %v2010
                  %v2012 = vld [vmem:[%s2002 + $0x10] sm:$0xf]
                  %2013 = vst [vmem:[%s2003 + $0x10] sm:$0xf] %v2012
                  %v2014 = vld [vmem:[%s2002 + $0x14] sm:$0xf]
                  %2015 = vst [vmem:[%s2003 + $0x14] sm:$0xf] %v2014
                  %v2016 = vld [vmem:[%s2002 + $0x18] sm:$0xf]
                  %2017 = vst [vmem:[%s2003 + $0x18] sm:$0xf] %v2016
                  %v2018 = vld [vmem:[%s2002 + $0x1c] sm:$0xf]
                  %2019 = vst [vmem:[%s2003 + $0x1c] sm:$0xf] %v2018
                  %v2020 = vld [vmem:[%s2002 + $0x20] sm:$0xf]
                  %2021 = vst [vmem:[%s2003 + $0x20] sm:$0xf] %v2020
                  %v2022 = vld [vmem:[%s2002 + $0x24] sm:$0xf]
                  %2023 = vst [vmem:[%s2003 + $0x24] sm:$0xf] %v2022
                  %v2024 = vld [vmem:[%s2002 + $0x28] sm:$0xf]
                  %2025 = vst [vmem:[%s2003 + $0x28] sm:$0xf] %v2024
                  %v2026 = vld [vmem:[%s2002 + $0x2c] sm:$0xf]
                  %2027 = vst [vmem:[%s2003 + $0x2c] sm:$0xf] %v2026
                  %v2028 = vld [vmem:[%s2002 + $0x30] sm:$0xf]
                  %2029 = vst [vmem:[%s2003 + $0x30] sm:$0xf] %v2028
                  %v2030 = vld [vmem:[%s2002 + $0x34] sm:$0xf]
                  %2031 = vst [vmem:[%s2003 + $0x34] sm:$0xf] %v2030
                  %v2032 = vld [vmem:[%s2002 + $0x38] sm:$0xf]
                  %2033 = vst [vmem:[%s2003 + $0x38] sm:$0xf] %v2032
                  %v2034 = vld [vmem:[%s2002 + $0x3c] sm:$0xf]
                  %2035 = vst [vmem:[%s2003 + $0x3c] sm:$0xf] %v2034
                  %v2036 = vld [vmem:[%s2002 + $0x40] sm:$0xf]
                  %2037 = vst [vmem:[%s2003 + $0x40] sm:$0xf] %v2036
                  %v2038 = vld [vmem:[%s2002 + $0x44] sm:$0xf]
                  %2039 = vst [vmem:[%s2003 + $0x44] sm:$0xf] %v2038
                  %v2040 = vld [vmem:[%s2002 + $0x48] sm:$0xf]
                  %2041 = vst [vmem:[%s2003 + $0x48] sm:$0xf] %v2040
                  %v2042 = vld [vmem:[%s2002 + $0x4c] sm:$0xf]
                  %2043 = vst [vmem:[%s2003 + $0x4c] sm:$0xf] %v2042
                  %v2044 = vld [vmem:[%s2002 + $0x50] sm:$0xf]
                  %2045 = vst [vmem:[%s2003 + $0x50] sm:$0xf] %v2044
                  %v2046 = vld [vmem:[%s2002 + $0x54] sm:$0xf]
                  %2047 = vst [vmem:[%s2003 + $0x54] sm:$0xf] %v2046
                  %v2048 = vld [vmem:[%s2002 + $0x58] sm:$0xf]
                  %2049 = vst [vmem:[%s2003 + $0x58] sm:$0xf] %v2048
                  %v2050 = vld [vmem:[%s2002 + $0x5c] sm:$0xf]
                  %2051 = vst [vmem:[%s2003 + $0x5c] sm:$0xf] %v2050
                  %v2052 = vld [vmem:[%s2002 + $0x60] sm:$0xf]
                  %2053 = vst [vmem:[%s2003 + $0x60] sm:$0xf] %v2052
                  %v2054 = vld [vmem:[%s2002 + $0x64] sm:$0xf]
                  %2055 = vst [vmem:[%s2003 + $0x64] sm:$0xf] %v2054
                  %s2056 = sadd.s32 1, %s2001
                  %p2057 = scmp.ge.s32.totalorder %s2056, %s1993
                  %s2058 = scalar_select %p2057, 0, %s2056
                  %s2059 = smul.u32 %s2058, 104
                  %s2060 = smul.u32 %s2058, 104
                  %s2061 = scalar_lea.vmem %s1875, %s2059 [#allocation3]
                  %s2062 = scalar_lea.vmem %s1886, %s2060
                $region133: #{net_forward.3} parent=127 // loop_footer
                  %s1998 = sadd.s32 %s1996, 1
                $region134: #{net_forward.3} parent=127 // loop_footer_branch
                  %1995 = sbr.rel target = $region130
                $region135: #{net_forward.3} parent=127 // loop_exit
                  _
                %s2063 = sdiv.u32.pop %s1882, 26
                %s2064 = srem.u32.pop %s1882, 26
                %s2065 = smul.u32 %s2063, 26
                %s2066 = smul.u32 4, %s2065
                %s2067 = scalar_lea.vmem %s1875, %s2066 [#allocation3]
                %s2068 = smul.u32 4, %s2065
                %s2069 = scalar_lea.vmem %s1886, %s2068
                // While loop
                $region136: #{net_forward.3} parent=127 // loop_pre_header
                  _
                $region137: #{net_forward.3} parent=127 // loop_header
                  %s2071 = sphi 0, %s2073
                  %p2072 = scmp.ge.s32.totalorder %s2071, %s2064
                  %s2076 = sphi 0, %s2083
                  %s2077 = sphi %s2067, %s2086
                  %s2078 = sphi %s2069, %s2087
                $region138: #{net_forward.3} parent=127 // loop_header_branch
                  %2075 = sbr.rel (%p2072) target = $region142
                $region139: #{net_forward.3} parent=127 // loop_body
                  %v2079 = vld [vmem:[%s2077] sm:$0xf]
                  %2080 = vst [vmem:[%s2078] sm:$0xf] %v2079
                  %s2081 = sadd.s32 1, %s2076
                  %p2082 = scmp.ge.s32.totalorder %s2081, %s2064
                  %s2083 = scalar_select %p2082, 0, %s2081
                  %s2084 = smul.u32 %s2083, 4
                  %s2085 = smul.u32 %s2083, 4
                  %s2086 = scalar_lea.vmem %s2067, %s2084 [#allocation3]
                  %s2087 = scalar_lea.vmem %s2069, %s2085
                $region140: #{net_forward.3} parent=127 // loop_footer
                  %s2073 = sadd.s32 %s2071, 1
                $region141: #{net_forward.3} parent=127 // loop_footer_branch
                  %2070 = sbr.rel target = $region137
                $region142: #{net_forward.3} parent=127 // loop_exit
                  _
              $region128: #{net_forward.3} parent=105 // pred_fallthru
                _
            $region106: #{net_forward.3} parent=101 // pred_fallthru
              _
            // Predicated region
            $region107: #{net_forward.3} parent=101 // pred_check
              _
            $region108: #{net_forward.3} parent=101 // pred_check_branch
              %1893 = sbr.rel (0) target = $region110
            $region109: #{net_forward.3} parent=101 // pred_region
              %s1895 = sdiv.u32.pop %s1882, 26
              %s1896 = srem.u32.pop %s1882, 26
              // While loop
              $region111: #{net_forward.3} parent=109 // loop_pre_header
                _
              $region112: #{net_forward.3} parent=109 // loop_header
                %s1898 = sphi 0, %s1900
                %p1899 = scmp.ge.s32.totalorder %s1898, %s1895
                %s1903 = sphi 0, %s1960
                %s1904 = sphi %s1875, %s1963
                %s1905 = sphi %s1886, %s1964
              $region113: #{net_forward.3} parent=109 // loop_header_branch
                %1902 = sbr.rel (%p1899) target = $region117
              $region114: #{net_forward.3} parent=109 // loop_body
                %v1906 = vld [vmem:[%s1904] sm:$0xf]
                %1907 = vst [vmem:[%s1905] sm:$0xf] %v1906
                %v1908 = vld [vmem:[%s1904 + $0x4] sm:$0xf]
                %1909 = vst [vmem:[%s1905 + $0x4] sm:$0xf] %v1908
                %v1910 = vld [vmem:[%s1904 + $0x8] sm:$0xf]
                %1911 = vst [vmem:[%s1905 + $0x8] sm:$0xf] %v1910
                %v1912 = vld [vmem:[%s1904 + $0xc] sm:$0xf]
                %1913 = vst [vmem:[%s1905 + $0xc] sm:$0xf] %v1912
                %v1914 = vld [vmem:[%s1904 + $0x10] sm:$0xf]
                %1915 = vst [vmem:[%s1905 + $0x10] sm:$0xf] %v1914
                %v1916 = vld [vmem:[%s1904 + $0x14] sm:$0xf]
                %1917 = vst [vmem:[%s1905 + $0x14] sm:$0xf] %v1916
                %v1918 = vld [vmem:[%s1904 + $0x18] sm:$0xf]
                %1919 = vst [vmem:[%s1905 + $0x18] sm:$0xf] %v1918
                %v1920 = vld [vmem:[%s1904 + $0x1c] sm:$0xf]
                %1921 = vst [vmem:[%s1905 + $0x1c] sm:$0xf] %v1920
                %v1922 = vld [vmem:[%s1904 + $0x20] sm:$0xf]
                %1923 = vst [vmem:[%s1905 + $0x20] sm:$0xf] %v1922
                %v1924 = vld [vmem:[%s1904 + $0x24] sm:$0xf]
                %1925 = vst [vmem:[%s1905 + $0x24] sm:$0xf] %v1924
                %v1926 = vld [vmem:[%s1904 + $0x28] sm:$0xf]
                %1927 = vst [vmem:[%s1905 + $0x28] sm:$0xf] %v1926
                %v1928 = vld [vmem:[%s1904 + $0x2c] sm:$0xf]
                %1929 = vst [vmem:[%s1905 + $0x2c] sm:$0xf] %v1928
                %v1930 = vld [vmem:[%s1904 + $0x30] sm:$0xf]
                %1931 = vst [vmem:[%s1905 + $0x30] sm:$0xf] %v1930
                %v1932 = vld [vmem:[%s1904 + $0x34] sm:$0xf]
                %1933 = vst [vmem:[%s1905 + $0x34] sm:$0xf] %v1932
                %v1934 = vld [vmem:[%s1904 + $0x38] sm:$0xf]
                %1935 = vst [vmem:[%s1905 + $0x38] sm:$0xf] %v1934
                %v1936 = vld [vmem:[%s1904 + $0x3c] sm:$0xf]
                %1937 = vst [vmem:[%s1905 + $0x3c] sm:$0xf] %v1936
                %v1938 = vld [vmem:[%s1904 + $0x40] sm:$0xf]
                %1939 = vst [vmem:[%s1905 + $0x40] sm:$0xf] %v1938
                %v1940 = vld [vmem:[%s1904 + $0x44] sm:$0xf]
                %1941 = vst [vmem:[%s1905 + $0x44] sm:$0xf] %v1940
                %v1942 = vld [vmem:[%s1904 + $0x48] sm:$0xf]
                %1943 = vst [vmem:[%s1905 + $0x48] sm:$0xf] %v1942
                %v1944 = vld [vmem:[%s1904 + $0x4c] sm:$0xf]
                %1945 = vst [vmem:[%s1905 + $0x4c] sm:$0xf] %v1944
                %v1946 = vld [vmem:[%s1904 + $0x50] sm:$0xf]
                %1947 = vst [vmem:[%s1905 + $0x50] sm:$0xf] %v1946
                %v1948 = vld [vmem:[%s1904 + $0x54] sm:$0xf]
                %1949 = vst [vmem:[%s1905 + $0x54] sm:$0xf] %v1948
                %v1950 = vld [vmem:[%s1904 + $0x58] sm:$0xf]
                %1951 = vst [vmem:[%s1905 + $0x58] sm:$0xf] %v1950
                %v1952 = vld [vmem:[%s1904 + $0x5c] sm:$0xf]
                %1953 = vst [vmem:[%s1905 + $0x5c] sm:$0xf] %v1952
                %v1954 = vld [vmem:[%s1904 + $0x60] sm:$0xf]
                %1955 = vst [vmem:[%s1905 + $0x60] sm:$0xf] %v1954
                %v1956 = vld [vmem:[%s1904 + $0x64] sm:$0xf]
                %1957 = vst [vmem:[%s1905 + $0x64] sm:$0xf] %v1956
                %s1958 = sadd.s32 1, %s1903
                %p1959 = scmp.ge.s32.totalorder %s1958, %s1895
                %s1960 = scalar_select %p1959, 0, %s1958
                %s1961 = smul.u32 %s1960, 104
                %s1962 = smul.u32 %s1960, 104
                %s1963 = scalar_lea.vmem %s1875, %s1961 [#allocation3]
                %s1964 = scalar_lea.vmem %s1886, %s1962
              $region115: #{net_forward.3} parent=109 // loop_footer
                %s1900 = sadd.s32 %s1898, 1
              $region116: #{net_forward.3} parent=109 // loop_footer_branch
                %1897 = sbr.rel target = $region112
              $region117: #{net_forward.3} parent=109 // loop_exit
                _
              %s1965 = sdiv.u32.pop %s1882, 26
              %s1966 = srem.u32.pop %s1882, 26
              %s1967 = smul.u32 %s1965, 26
              %s1968 = smul.u32 4, %s1967
              %s1969 = scalar_lea.vmem %s1875, %s1968 [#allocation3]
              %s1970 = smul.u32 4, %s1967
              %s1971 = scalar_lea.vmem %s1886, %s1970
              // While loop
              $region118: #{net_forward.3} parent=109 // loop_pre_header
                _
              $region119: #{net_forward.3} parent=109 // loop_header
                %s1973 = sphi 0, %s1975
                %p1974 = scmp.ge.s32.totalorder %s1973, %s1966
                %s1978 = sphi 0, %s1985
                %s1979 = sphi %s1969, %s1988
                %s1980 = sphi %s1971, %s1989
              $region120: #{net_forward.3} parent=109 // loop_header_branch
                %1977 = sbr.rel (%p1974) target = $region124
              $region121: #{net_forward.3} parent=109 // loop_body
                %v1981 = vld [vmem:[%s1979] sm:$0xf]
                %1982 = vst [vmem:[%s1980] sm:$0xf] %v1981
                %s1983 = sadd.s32 1, %s1978
                %p1984 = scmp.ge.s32.totalorder %s1983, %s1966
                %s1985 = scalar_select %p1984, 0, %s1983
                %s1986 = smul.u32 %s1985, 4
                %s1987 = smul.u32 %s1985, 4
                %s1988 = scalar_lea.vmem %s1969, %s1986 [#allocation3]
                %s1989 = scalar_lea.vmem %s1971, %s1987
              $region122: #{net_forward.3} parent=109 // loop_footer
                %s1975 = sadd.s32 %s1973, 1
              $region123: #{net_forward.3} parent=109 // loop_footer_branch
                %1972 = sbr.rel target = $region119
              $region124: #{net_forward.3} parent=109 // loop_exit
                _
            $region110: #{net_forward.3} parent=101 // pred_fallthru
              _
          $region102: #{net_forward.3} parent=97 // pred_fallthru
            _
          %2088 = vnop
        $region98: #{net_forward.3} parent=89 // pred_fallthru
          _
      $region90: #{net_forward.3} parent=5 // pred_fallthru
        _
      %p2089 = scmp.le.s32.totalorder 2, %s9
      // Predicated region
      $region143: #{net_forward.3} parent=5 // pred_check
        %p2090 = pneg %p2089
      $region144: #{net_forward.3} parent=5 // pred_check_branch
        %2092 = sbr.rel (%p2090) target = $region146
      $region145: #{net_forward.3} parent=5 // pred_region
        %s2093 = ssub.s32 %s9, 2
        // Predicated region
        $region147: #{net_forward.3} parent=145 // pred_check
          %p2094 = pneg %p106
        $region148: #{net_forward.3} parent=145 // pred_check_branch
          %2096 = sbr.rel (%p2094) target = $region150
        $region149: #{net_forward.3} parent=145 // pred_region
          %s2097 = sand.u32 %s91, 1
          %s2098 = sand.u32 %s91, 1
          %s2099 = smul.addr %s2098, 104
          %s2100 = scalar_lea.vmem [#allocation3], %s2099
        $region150: #{net_forward.3} parent=145 // pred_fallthru
          _
      $region146: #{net_forward.3} parent=5 // pred_fallthru
        _
    $region6: #{net_forward.3} parent=1 // loop_footer
      %s13 = sadd.s32 1, %s9
    $region7: #{net_forward.3} parent=1 // loop_footer_branch
      %8 = sbr.rel target = $region3
    $region8: #{net_forward.3} parent=1 // loop_exit
      _

// kernel: net_forward.4
$region0: #{net_forward.4}
  #allocation0 [shape = 'u32[]', space=smem, size = 0x4, offset = 0x4, fixed_abs, tag = 'smem constant byte address 0x4 - core index']
  #allocation1 [shape = 'u32[144,128]{1,0:T(1,128)}', space=vmem, size = 0x12000, scoped, tag = 'internal scratch']
  %s0 = inlined_call_operand.vmem [shape: bf16[4,50,150], index: 0, kind: input, shape index: {}]
  %s1 = inlined_call_operand.vmem [shape: bf16[150,128], index: 1, kind: input, shape index: {}]
  %s2 = inlined_call_operand.vmem [shape: f32[1,128], index: 2, kind: input, shape index: {}]
  %s3 = inlined_call_operand.vmem [shape: bf16[50,128], index: 3, kind: output, shape index: {}]
  %s4 = sld [smem:[#allocation0]]
  $region141: #{net_forward.4} parent=0
    _
  %s6 = ssub.s32 1, %s4
  %s7 = scalar_select 0, %s6, %s4
  $region1: #{net_forward.4} parent=0
    #allocation2 [shape = 'u8[131072]{0}', space=vmem, size = 0x20000, scoped, tag = 'input window, operand 0']
    #allocation3 [shape = 'u8[16384]{0}', space=vmem, size = 0x4000, scoped, tag = 'output window, operand 0']
    loop: start=0, step=1, limit=4
    $region2: #{net_forward.4} parent=1 // loop_pre_header
      _
    $region3: #{net_forward.4} parent=1 // loop_header
      %s9 = sphi 0, %s13
      %p10 = scmp.ge.s32.totalorder %s9, 4
      %s19 = sphi 0, %s21
      %s22 = sphi 0, %s19
      %s23 = sphi 0, %s22
      %s39 = sphi 0, %s23
      %s43 = sphi 0, %s43
      %s45 = sphi 0, %s43
      %s46 = sphi 0, %s45
      %s60 = sphi 0, %s46
      %s64 = sphi 0, %s64
      %s66 = sphi 0, %s64
      %s67 = sphi 0, %s66
      %s81 = sphi 0, %s67
      %s87 = sphi 0, %s89
      %s90 = sphi 0, %s87
      %s91 = sphi 0, %s90
      %s107 = sphi 0, %s91
    $region4: #{net_forward.4} parent=1 // loop_header_branch
      %12 = sbr.rel (%p10) target = $region8
    $region5: #{net_forward.4} parent=1 // loop_body
      %s14 = ssub.s32 %s9, 1
      %s15 = ssub.s32 %s9, 2
      %s16 = sadd.s32 %s9, 1
      %s17 = ssub.s32 %s9, %s16
      %p18 = scmp.eq.s32.totalorder %s17, 0
      %s20 = sadd.s32 %s19, 1
      %s21 = scalar_select %p18, %s19, %s20
      %p24 = pneg %p18
      %p25 = scmp.eq.s32.totalorder %s9, 1
      %p26 = por %p24, %p25
      %p27 = scmp.ne.s32.totalorder %s19, %s22
      %p28 = scmp.eq.s32.totalorder %s9, 0
      %p29 = por %p27, %p28
      %p30 = scmp.ne.s32.totalorder %s19, %s22
      %p31 = scmp.eq.s32.totalorder %s14, 1
      %p32 = por %p30, %p31
      %p33 = scmp.ne.s32.totalorder %s22, %s23
      %p34 = scmp.eq.s32.totalorder %s14, 0
      %p35 = por %p33, %p34
      %p36 = scmp.ne.s32.totalorder %s22, %s23
      %p37 = scmp.eq.s32.totalorder %s15, 1
      %p38 = por %p36, %p37
      %p40 = scmp.ne.s32.totalorder %s23, %s39
      %p41 = scmp.eq.s32.totalorder %s15, 0
      %p42 = por %p40, %p41
      %s44 = sadd.s32 %s43, 1
      %p47 = scmp.eq.s32.totalorder %s9, 1
      %p48 = scmp.ne.s32.totalorder %s43, %s45
      %p49 = scmp.eq.s32.totalorder %s9, 0
      %p50 = por %p48, %p49
      %p51 = scmp.ne.s32.totalorder %s43, %s45
      %p52 = scmp.eq.s32.totalorder %s14, 1
      %p53 = por %p51, %p52
      %p54 = scmp.ne.s32.totalorder %s45, %s46
      %p55 = scmp.eq.s32.totalorder %s14, 0
      %p56 = por %p54, %p55
      %p57 = scmp.ne.s32.totalorder %s45, %s46
      %p58 = scmp.eq.s32.totalorder %s15, 1
      %p59 = por %p57, %p58
      %p61 = scmp.ne.s32.totalorder %s46, %s60
      %p62 = scmp.eq.s32.totalorder %s15, 0
      %p63 = por %p61, %p62
      %s65 = sadd.s32 %s64, 1
      %p68 = scmp.eq.s32.totalorder %s9, 1
      %p69 = scmp.ne.s32.totalorder %s64, %s66
      %p70 = scmp.eq.s32.totalorder %s9, 0
      %p71 = por %p69, %p70
      %p72 = scmp.ne.s32.totalorder %s64, %s66
      %p73 = scmp.eq.s32.totalorder %s14, 1
      %p74 = por %p72, %p73
      %p75 = scmp.ne.s32.totalorder %s66, %s67
      %p76 = scmp.eq.s32.totalorder %s14, 0
      %p77 = por %p75, %p76
      %p78 = scmp.ne.s32.totalorder %s66, %s67
      %p79 = scmp.eq.s32.totalorder %s15, 1
      %p80 = por %p78, %p79
      %p82 = scmp.ne.s32.totalorder %s67, %s81
      %p83 = scmp.eq.s32.totalorder %s15, 0
      %p84 = por %p82, %p83
      %s85 = ssub.s32 %s9, %s16
      %p86 = scmp.eq.s32.totalorder %s85, 0
      %s88 = sadd.s32 %s87, 1
      %s89 = scalar_select %p86, %s87, %s88
      %p92 = pneg %p86
      %p93 = scmp.eq.s32.totalorder %s9, 1
      %p94 = por %p92, %p93
      %p95 = scmp.ne.s32.totalorder %s87, %s90
      %p96 = scmp.eq.s32.totalorder %s9, 0
      %p97 = por %p95, %p96
      %p98 = scmp.ne.s32.totalorder %s87, %s90
      %p99 = scmp.eq.s32.totalorder %s14, 1
      %p100 = por %p98, %p99
      %p101 = scmp.ne.s32.totalorder %s90, %s91
      %p102 = scmp.eq.s32.totalorder %s14, 0
      %p103 = por %p101, %p102
      %p104 = scmp.ne.s32.totalorder %s90, %s91
      %p105 = scmp.eq.s32.totalorder %s15, 1
      %p106 = por %p104, %p105
      %p108 = scmp.ne.s32.totalorder %s91, %s107
      %p109 = scmp.eq.s32.totalorder %s15, 0
      %p110 = por %p108, %p109
      %p111 = scmp.le.s32.totalorder 1, %s9
      %p112 = scmp.lt.s32.totalorder %s9, 3
      %p113 = pnand %p111, %p112
      %p114 = pneg %p113
      // Predicated region
      $region9: #{net_forward.4} parent=5 // pred_check
        _
      $region10: #{net_forward.4} parent=5 // pred_check_branch
        %116 = sbr.rel (%p113) target = $region12
      $region11: #{net_forward.4} parent=5 // pred_region
        %s117 = ssub.s32 %s9, 1
        // Predicated region
        $region13: #{net_forward.4} parent=11 // pred_check
          %p118 = pneg %p56
        $region14: #{net_forward.4} parent=11 // pred_check_branch
          %120 = sbr.rel (%p118) target = $region16
        $region15: #{net_forward.4} parent=11 // pred_region
          _
        $region16: #{net_forward.4} parent=11 // pred_fallthru
          _
        // Predicated region
        $region17: #{net_forward.4} parent=11 // pred_check
          %p121 = pneg %p77
        $region18: #{net_forward.4} parent=11 // pred_check_branch
          %123 = sbr.rel (%p121) target = $region20
        $region19: #{net_forward.4} parent=11 // pred_region
          _
        $region20: #{net_forward.4} parent=11 // pred_fallthru
          _
      $region12: #{net_forward.4} parent=5 // pred_fallthru
        _
      %p124 = scmp.lt.s32.totalorder %s9, 2
      // Predicated region
      $region21: #{net_forward.4} parent=5 // pred_check
        %p125 = pneg %p124
      $region22: #{net_forward.4} parent=5 // pred_check_branch
        %127 = sbr.rel (%p125) target = $region24
      $region23: #{net_forward.4} parent=5 // pred_region
        // Predicated region
        $region25: #{net_forward.4} parent=23 // pred_check
          %p128 = pneg %p29
        $region26: #{net_forward.4} parent=23 // pred_check_branch
          %130 = sbr.rel (%p128) target = $region28
        $region27: #{net_forward.4} parent=23 // pred_region
          %s131 = sand.u32 %s19, 1
          %s132 = sand.u32 %s19, 1
          %s133 = smul.addr %s132, 128
          %s134 = scalar_lea.vmem [#allocation2], %s133
          %s135 = smul.u32 4, %s9
          %s136 = ssub.s32 7, %s135
          %p137 = scmp.lt.s32.totalorder %s136, 4
          %s138 = scalar_select %p137, %s136, 4
          %s139 = smul.u32 256, %s138
          %s140 = smul.u32 %s139, 2
          %p141 = scmp.ne.s32.totalorder 0, %s140
          %s142 = smul.addr %s135, 2
          %s143 = smul.addr %s142, 4
          %s144 = scalar_lea.vmem %s0, %s143
          // Predicated region
          $region29: #{net_forward.4} parent=27 // pred_check
            %p145 = pneg %p141
          $region30: #{net_forward.4} parent=27 // pred_check_branch
            %147 = sbr.rel (%p145) target = $region32
          $region31: #{net_forward.4} parent=27 // pred_region
            // Predicated region
            $region33: #{net_forward.4} parent=31 // pred_check
              _
            $region34: #{net_forward.4} parent=31 // pred_check_branch
              %149 = sbr.rel (0) target = $region36
            $region35: #{net_forward.4} parent=31 // pred_region
              // Predicated region
              $region55: #{net_forward.4} parent=35 // pred_check
                _
              $region56: #{net_forward.4} parent=35 // pred_check_branch
                %234 = sbr.rel (0) target = $region58
              $region57: #{net_forward.4} parent=35 // pred_region
                %s235 = sshrl.u32 %s138, 2
                // While loop
                $region59: #{net_forward.4} parent=57 // loop_pre_header
                  _
                $region60: #{net_forward.4} parent=57 // loop_header
                  %s237 = sphi 0, %s239
                  %p238 = scmp.ge.s32.totalorder %s237, %s235
                  %s242 = sphi 0, %s279
                  %s243 = sphi %s144, %s282
                  %s244 = sphi %s134, %s283
                $region61: #{net_forward.4} parent=57 // loop_header_branch
                  %241 = sbr.rel (%p238) target = $region65
                $region62: #{net_forward.4} parent=57 // loop_body
                  %v245 = vld [vmem:[%s243] sm:$0xff]
                  %246 = vst [vmem:[%s244] sm:$0xff] %v245
                  %v247 = vld [vmem:[%s243 + $0x8] sm:$0xff]
                  %248 = vst [vmem:[%s244 + $0x8] sm:$0xff] %v247
                  %v249 = vld [vmem:[%s243 + $0x10] sm:$0xff]
                  %250 = vst [vmem:[%s244 + $0x10] sm:$0xff] %v249
                  %v251 = vld [vmem:[%s243 + $0x18] sm:$0xff]
                  %252 = vst [vmem:[%s244 + $0x18] sm:$0xff] %v251
                  %v253 = vld [vmem:[%s243 + $0x38] sm:$0xff]
                  %254 = vst [vmem:[%s244 + $0x20] sm:$0xff] %v253
                  %v255 = vld [vmem:[%s243 + $0x40] sm:$0xff]
                  %256 = vst [vmem:[%s244 + $0x28] sm:$0xff] %v255
                  %v257 = vld [vmem:[%s243 + $0x48] sm:$0xff]
                  %258 = vst [vmem:[%s244 + $0x30] sm:$0xff] %v257
                  %v259 = vld [vmem:[%s243 + $0x50] sm:$0xff]
                  %260 = vst [vmem:[%s244 + $0x38] sm:$0xff] %v259
                  %v261 = vld [vmem:[%s243 + $0x70] sm:$0xff]
                  %262 = vst [vmem:[%s244 + $0x40] sm:$0xff] %v261
                  %v263 = vld [vmem:[%s243 + $0x78] sm:$0xff]
                  %264 = vst [vmem:[%s244 + $0x48] sm:$0xff] %v263
                  %v265 = vld [vmem:[%s243 + $0x80] sm:$0xff]
                  %266 = vst [vmem:[%s244 + $0x50] sm:$0xff] %v265
                  %v267 = vld [vmem:[%s243 + $0x88] sm:$0xff]
                  %268 = vst [vmem:[%s244 + $0x58] sm:$0xff] %v267
                  %v269 = vld [vmem:[%s243 + $0xa8] sm:$0xff]
                  %270 = vst [vmem:[%s244 + $0x60] sm:$0xff] %v269
                  %v271 = vld [vmem:[%s243 + $0xb0] sm:$0xff]
                  %272 = vst [vmem:[%s244 + $0x68] sm:$0xff] %v271
                  %v273 = vld [vmem:[%s243 + $0xb8] sm:$0xff]
                  %274 = vst [vmem:[%s244 + $0x70] sm:$0xff] %v273
                  %v275 = vld [vmem:[%s243 + $0xc0] sm:$0xff]
                  %276 = vst [vmem:[%s244 + $0x78] sm:$0xff] %v275
                  %s277 = sadd.s32 1, %s242
                  %p278 = scmp.ge.s32.totalorder %s277, %s235
                  %s279 = scalar_select %p278, 0, %s277
                  %s280 = smul.u32 %s279, 32
                  %s281 = smul.u32 %s279, 32
                  %s282 = scalar_lea.vmem %s144, %s280
                  %s283 = scalar_lea.vmem %s134, %s281 [#allocation2]
                $region63: #{net_forward.4} parent=57 // loop_footer
                  %s239 = sadd.s32 %s237, 1
                $region64: #{net_forward.4} parent=57 // loop_footer_branch
                  %236 = sbr.rel target = $region60
                $region65: #{net_forward.4} parent=57 // loop_exit
                  _
                %s284 = sshrl.u32 %s138, 2
                %s285 = sand.u32 %s138, 3
                %s286 = smul.u32 %s284, 4
                %s287 = smul.u32 8, %s286
                %s288 = scalar_lea.vmem %s144, %s287
                %s289 = smul.u32 8, %s286
                %s290 = scalar_lea.vmem %s134, %s289 [#allocation2]
                // While loop
                $region66: #{net_forward.4} parent=57 // loop_pre_header
                  _
                $region67: #{net_forward.4} parent=57 // loop_header
                  %s292 = sphi 0, %s294
                  %p293 = scmp.ge.s32.totalorder %s292, %s285
                  %s297 = sphi 0, %s310
                  %s298 = sphi %s288, %s313
                  %s299 = sphi %s290, %s314
                $region68: #{net_forward.4} parent=57 // loop_header_branch
                  %296 = sbr.rel (%p293) target = $region72
                $region69: #{net_forward.4} parent=57 // loop_body
                  %v300 = vld [vmem:[%s298] sm:$0xff]
                  %301 = vst [vmem:[%s299] sm:$0xff] %v300
                  %v302 = vld [vmem:[%s298 + $0x38] sm:$0xff]
                  %303 = vst [vmem:[%s299 + $0x20] sm:$0xff] %v302
                  %v304 = vld [vmem:[%s298 + $0x70] sm:$0xff]
                  %305 = vst [vmem:[%s299 + $0x40] sm:$0xff] %v304
                  %v306 = vld [vmem:[%s298 + $0xa8] sm:$0xff]
                  %307 = vst [vmem:[%s299 + $0x60] sm:$0xff] %v306
                  %s308 = sadd.s32 1, %s297
                  %p309 = scmp.ge.s32.totalorder %s308, %s285
                  %s310 = scalar_select %p309, 0, %s308
                  %s311 = smul.u32 %s310, 8
                  %s312 = smul.u32 %s310, 8
                  %s313 = scalar_lea.vmem %s288, %s311
                  %s314 = scalar_lea.vmem %s290, %s312 [#allocation2]
                $region70: #{net_forward.4} parent=57 // loop_footer
                  %s294 = sadd.s32 %s292, 1
                $region71: #{net_forward.4} parent=57 // loop_footer_branch
                  %291 = sbr.rel target = $region67
                $region72: #{net_forward.4} parent=57 // loop_exit
                  _
              $region58: #{net_forward.4} parent=35 // pred_fallthru
                _
              // Predicated region
              $region73: #{net_forward.4} parent=35 // pred_check
                _
              $region74: #{net_forward.4} parent=35 // pred_check_branch
                %316 = sbr.rel target = $region76
              $region75: #{net_forward.4} parent=35 // pred_region
                _
              $region76: #{net_forward.4} parent=35 // pred_fallthru
                _
            $region36: #{net_forward.4} parent=31 // pred_fallthru
              _
            // Predicated region
            $region37: #{net_forward.4} parent=31 // pred_check
              _
            $region38: #{net_forward.4} parent=31 // pred_check_branch
              %151 = sbr.rel target = $region40
            $region39: #{net_forward.4} parent=31 // pred_region
              %s153 = sshrl.u32 %s138, 2
              // While loop
              $region41: #{net_forward.4} parent=39 // loop_pre_header
                _
              $region42: #{net_forward.4} parent=39 // loop_header
                %s155 = sphi 0, %s157
                %p156 = scmp.ge.s32.totalorder %s155, %s153
                %s160 = sphi 0, %s197
                %s161 = sphi %s144, %s200
                %s162 = sphi %s134, %s201
              $region43: #{net_forward.4} parent=39 // loop_header_branch
                %159 = sbr.rel (%p156) target = $region47
              $region44: #{net_forward.4} parent=39 // loop_body
                %v163 = vld [vmem:[%s161] sm:$0xff]
                %164 = vst [vmem:[%s162] sm:$0xff] %v163
                %v165 = vld [vmem:[%s161 + $0x8] sm:$0xff]
                %166 = vst [vmem:[%s162 + $0x8] sm:$0xff] %v165
                %v167 = vld [vmem:[%s161 + $0x10] sm:$0xff]
                %168 = vst [vmem:[%s162 + $0x10] sm:$0xff] %v167
                %v169 = vld [vmem:[%s161 + $0x18] sm:$0xff]
                %170 = vst [vmem:[%s162 + $0x18] sm:$0xff] %v169
                %v171 = vld [vmem:[%s161 + $0x38] sm:$0xff]
                %172 = vst [vmem:[%s162 + $0x20] sm:$0xff] %v171
                %v173 = vld [vmem:[%s161 + $0x40] sm:$0xff]
                %174 = vst [vmem:[%s162 + $0x28] sm:$0xff] %v173
                %v175 = vld [vmem:[%s161 + $0x48] sm:$0xff]
                %176 = vst [vmem:[%s162 + $0x30] sm:$0xff] %v175
                %v177 = vld [vmem:[%s161 + $0x50] sm:$0xff]
                %178 = vst [vmem:[%s162 + $0x38] sm:$0xff] %v177
                %v179 = vld [vmem:[%s161 + $0x70] sm:$0xff]
                %180 = vst [vmem:[%s162 + $0x40] sm:$0xff] %v179
                %v181 = vld [vmem:[%s161 + $0x78] sm:$0xff]
                %182 = vst [vmem:[%s162 + $0x48] sm:$0xff] %v181
                %v183 = vld [vmem:[%s161 + $0x80] sm:$0xff]
                %184 = vst [vmem:[%s162 + $0x50] sm:$0xff] %v183
                %v185 = vld [vmem:[%s161 + $0x88] sm:$0xff]
                %186 = vst [vmem:[%s162 + $0x58] sm:$0xff] %v185
                %v187 = vld [vmem:[%s161 + $0xa8] sm:$0xff]
                %188 = vst [vmem:[%s162 + $0x60] sm:$0xff] %v187
                %v189 = vld [vmem:[%s161 + $0xb0] sm:$0xff]
                %190 = vst [vmem:[%s162 + $0x68] sm:$0xff] %v189
                %v191 = vld [vmem:[%s161 + $0xb8] sm:$0xff]
                %192 = vst [vmem:[%s162 + $0x70] sm:$0xff] %v191
                %v193 = vld [vmem:[%s161 + $0xc0] sm:$0xff]
                %194 = vst [vmem:[%s162 + $0x78] sm:$0xff] %v193
                %s195 = sadd.s32 1, %s160
                %p196 = scmp.ge.s32.totalorder %s195, %s153
                %s197 = scalar_select %p196, 0, %s195
                %s198 = smul.u32 %s197, 32
                %s199 = smul.u32 %s197, 32
                %s200 = scalar_lea.vmem %s144, %s198
                %s201 = scalar_lea.vmem %s134, %s199 [#allocation2]
              $region45: #{net_forward.4} parent=39 // loop_footer
                %s157 = sadd.s32 %s155, 1
              $region46: #{net_forward.4} parent=39 // loop_footer_branch
                %154 = sbr.rel target = $region42
              $region47: #{net_forward.4} parent=39 // loop_exit
                _
              %s202 = sshrl.u32 %s138, 2
              %s203 = sand.u32 %s138, 3
              %s204 = smul.u32 %s202, 4
              %s205 = smul.u32 8, %s204
              %s206 = scalar_lea.vmem %s144, %s205
              %s207 = smul.u32 8, %s204
              %s208 = scalar_lea.vmem %s134, %s207 [#allocation2]
              // While loop
              $region48: #{net_forward.4} parent=39 // loop_pre_header
                _
              $region49: #{net_forward.4} parent=39 // loop_header
                %s210 = sphi 0, %s212
                %p211 = scmp.ge.s32.totalorder %s210, %s203
                %s215 = sphi 0, %s228
                %s216 = sphi %s206, %s231
                %s217 = sphi %s208, %s232
              $region50: #{net_forward.4} parent=39 // loop_header_branch
                %214 = sbr.rel (%p211) target = $region54
              $region51: #{net_forward.4} parent=39 // loop_body
                %v218 = vld [vmem:[%s216] sm:$0xff]
                %219 = vst [vmem:[%s217] sm:$0xff] %v218
                %v220 = vld [vmem:[%s216 + $0x38] sm:$0xff]
                %221 = vst [vmem:[%s217 + $0x20] sm:$0xff] %v220
                %v222 = vld [vmem:[%s216 + $0x70] sm:$0xff]
                %223 = vst [vmem:[%s217 + $0x40] sm:$0xff] %v222
                %v224 = vld [vmem:[%s216 + $0xa8] sm:$0xff]
                %225 = vst [vmem:[%s217 + $0x60] sm:$0xff] %v224
                %s226 = sadd.s32 1, %s215
                %p227 = scmp.ge.s32.totalorder %s226, %s203
                %s228 = scalar_select %p227, 0, %s226
                %s229 = smul.u32 %s228, 8
                %s230 = smul.u32 %s228, 8
                %s231 = scalar_lea.vmem %s206, %s229
                %s232 = scalar_lea.vmem %s208, %s230 [#allocation2]
              $region52: #{net_forward.4} parent=39 // loop_footer
                %s212 = sadd.s32 %s210, 1
              $region53: #{net_forward.4} parent=39 // loop_footer_branch
                %209 = sbr.rel target = $region49
              $region54: #{net_forward.4} parent=39 // loop_exit
                _
            $region40: #{net_forward.4} parent=31 // pred_fallthru
              _
          $region32: #{net_forward.4} parent=27 // pred_fallthru
            _
          %317 = vnop
        $region28: #{net_forward.4} parent=23 // pred_fallthru
          _
      $region24: #{net_forward.4} parent=5 // pred_fallthru
        _
      %p318 = scmp.le.s32.totalorder 1, %s9
      %p319 = scmp.lt.s32.totalorder %s9, 3
      %p320 = pnand %p318, %p319
      %p321 = pneg %p320
      // Predicated region
      $region77: #{net_forward.4} parent=5 // pred_check
        _
      $region78: #{net_forward.4} parent=5 // pred_check_branch
        %323 = sbr.rel (%p320) target = $region80
      $region79: #{net_forward.4} parent=5 // pred_region
        %s324 = ssub.s32 %s9, 1
        %s325 = sand.u32 %s22, 1
        %s326 = sand.u32 %s22, 1
        %s327 = smul.addr %s326, 128
        %s328 = scalar_lea.vmem [#allocation2], %s327
        // Predicated region
        $region81: #{net_forward.4} parent=79 // pred_check
          %p329 = pneg %p35
        $region82: #{net_forward.4} parent=79 // pred_check_branch
          %331 = sbr.rel (%p329) target = $region84
        $region83: #{net_forward.4} parent=79 // pred_region
          _
        $region84: #{net_forward.4} parent=79 // pred_fallthru
          _
        %s332 = sand.u32 %s22, 1
        %s333 = sand.u32 %s22, 1
        %s334 = smul.addr %s333, 128
        %s335 = scalar_lea.vmem [#allocation2], %s334
        %p336 = pneg %p35
        %p337 = pneg %p32
        %p338 = pneg %p56
        %p339 = pneg %p53
        %p340 = pneg %p77
        %p341 = pneg %p74
        %p342 = pneg %p103
        %p343 = pneg %p100
        %s344 = sand.u32 %s90, 1
        %s345 = sand.u32 %s90, 1
        %s346 = smul.addr %s345, 16
        %s347 = scalar_lea.vmem [#allocation3], %s346
        %s348 = smul.u32 4, %s14
        %s349 = ssub.s32 7, %s348
        %p350 = scmp.lt.s32.totalorder %s349, 4
        %s351 = scalar_select %p350, %s349, 4
        %s352 = smul.u32 256, %s351
        %s353 = smul.u32 %s352, 2
        %s354 = smul.u32 4, %s14
        %s355 = ssub.s32 7, %s354
        %p356 = scmp.lt.s32.totalorder %s355, 4
        %s357 = scalar_select %p356, %s355, 4
        %s358 = smul.u32 64, %s357
        %v360 = vld [vmem:[%s328] sm:$0xff]
        %v361 = vld [vmem:[%s328 + $0x8] sm:$0xff]
        %v362 = vld [vmem:[%s328 + $0x10] sm:$0xff]
        %v363 = vld [vmem:[%s328 + $0x18] sm:$0xff]
        %v364 = vld [vmem:[%s328 + $0x20] sm:$0xff]
        %v365 = vld [vmem:[%s328 + $0x28] sm:$0xff]
        %v366 = vld [vmem:[%s328 + $0x30] sm:$0xff]
        %v367 = vld [vmem:[%s328 + $0x38] sm:$0xff]
        %v368 = vld [vmem:[%s328 + $0x40] sm:$0xff]
        %v369 = vld [vmem:[%s328 + $0x48] sm:$0xff]
        %v370 = vld [vmem:[%s328 + $0x50] sm:$0xff]
        %v371 = vld [vmem:[%s328 + $0x58] sm:$0xff]
        %v372 = vld [vmem:[%s328 + $0x60] sm:$0xff]
        %v373 = vld [vmem:[%s328 + $0x68] sm:$0xff]
        %v374 = vld [vmem:[%s328 + $0x70] sm:$0xff]
        %v375 = vld [vmem:[%s328 + $0x78] sm:$0xff]
        %v376 = vld [vmem:[%s1] sm:$0xf]
        %v377 = vld [vmem:[%s1 + $0x4] sm:$0xf]
        %v378 = vld [vmem:[%s1 + $0x8] sm:$0xf]
        %v379 = vld [vmem:[%s1 + $0xc] sm:$0xf]
        %v380 = vld [vmem:[%s1 + $0x10] sm:$0xf]
        %v381 = vld [vmem:[%s1 + $0x14] sm:$0xf]
        %v382 = vld [vmem:[%s1 + $0x18] sm:$0xf]
        %v383 = vld [vmem:[%s1 + $0x1c] sm:$0xf]
        %v384 = vld [vmem:[%s1 + $0x20] sm:$0xf]
        %v385 = vld [vmem:[%s1 + $0x24] sm:$0xf]
        %v386 = vld [vmem:[%s1 + $0x28] sm:$0xf]
        %v387 = vld [vmem:[%s1 + $0x2c] sm:$0xf]
        %v388 = vld [vmem:[%s1 + $0x30] sm:$0xf]
        %v389 = vld [vmem:[%s1 + $0x34] sm:$0xf]
        %v390 = vld [vmem:[%s1 + $0x38] sm:$0xf]
        %v391 = vld [vmem:[%s1 + $0x3c] sm:$0xf]
        %v392 = vld [vmem:[%s1 + $0x40] sm:$0xf]
        %v393 = vld [vmem:[%s1 + $0x44] sm:$0xf]
        %v394 = vld [vmem:[%s1 + $0x48] sm:$0x7]
        %v411 = vunpack.c.l.b16 %v360
        %v412 = vunpack.c.h.b16 %v360
        %v413 = vunpack.c.l.b16 %v361
        %v414 = vunpack.c.h.b16 %v361
        %v415 = vunpack.c.l.b16 %v362
        %v416 = vunpack.c.h.b16 %v362
        %v417 = vunpack.c.l.b16 %v363
        %v418 = vunpack.c.h.b16 %v363
        %v419 = vunpack.c.l.b16 %v364
        %v420 = vunpack.c.h.b16 %v364
        %v421 = vunpack.c.l.b16 %v365
        %v422 = vunpack.c.h.b16 %v365
        %v423 = vunpack.c.l.b16 %v366
        %v424 = vunpack.c.h.b16 %v366
        %v425 = vunpack.c.l.b16 %v367
        %v426 = vunpack.c.h.b16 %v367
        %v427 = vunpack.c.l.b16 %v368
        %v428 = vunpack.c.h.b16 %v368
        %v429 = vunpack.c.l.b16 %v369
        %v430 = vunpack.c.h.b16 %v369
        %v431 = vunpack.c.l.b16 %v370
        %v432 = vunpack.c.h.b16 %v370
        %v433 = vunpack.c.l.b16 %v371
        %v434 = vunpack.c.h.b16 %v371
        %v435 = vunpack.c.l.b16 %v372
        %v436 = vunpack.c.h.b16 %v372
        %v437 = vunpack.c.l.b16 %v373
        %v438 = vunpack.c.h.b16 %v373
        %v439 = vunpack.c.l.b16 %v374
        %v440 = vunpack.c.h.b16 %v374
        %v441 = vunpack.c.l.b16 %v375
        %v442 = vunpack.c.h.b16 %v375
        %v443 = vpack.c.b16 %v413, %v411
        %v444 = vpack.c.b16 %v414, %v412
        %v445 = vpack.c.b16 %v417, %v415
        %v446 = vpack.c.b16 %v418, %v416
        %v447 = vpack.c.b16 %v421, %v419
        %v448 = vpack.c.b16 %v422, %v420
        %v449 = vpack.c.b16 %v425, %v423
        %v450 = vpack.c.b16 %v426, %v424
        %v451 = vpack.c.b16 %v429, %v427
        %v452 = vpack.c.b16 %v430, %v428
        %v453 = vpack.c.b16 %v433, %v431
        %v454 = vpack.c.b16 %v434, %v432
        %v455 = vpack.c.b16 %v437, %v435
        %v456 = vpack.c.b16 %v438, %v436
        %v457 = vpack.c.b16 %v441, %v439
        %v458 = vpack.c.b16 %v442, %v440
        %v486 = vunpack.c.l.b16 %v376
        %v487 = vunpack.c.l.b16 %v377
        %v488 = vunpack.c.l.b16 %v378
        %v489 = vunpack.c.l.b16 %v379
        %v490 = vunpack.c.l.b16 %v380
        %v491 = vunpack.c.l.b16 %v381
        %v492 = vunpack.c.l.b16 %v382
        %v493 = vunpack.c.l.b16 %v383
        %v494 = vunpack.c.l.b16 %v384
        %v495 = vunpack.c.l.b16 %v385
        %v496 = vunpack.c.l.b16 %v386
        %v497 = vunpack.c.l.b16 %v387
        %v498 = vunpack.c.l.b16 %v388
        %v499 = vunpack.c.l.b16 %v389
        %v500 = vunpack.c.l.b16 %v390
        %v501 = vunpack.c.l.b16 %v391
        %v502 = vunpack.c.l.b16 %v392
        %v503 = vunpack.c.l.b16 %v393
        %v504 = vunpack.c.l.b16 %v394
        %v505 = vpack.c.b16 %v487, %v486
        %v506 = vpack.c.b16 %v489, %v488
        %v507 = vpack.c.b16 %v491, %v490
        %v508 = vpack.c.b16 %v493, %v492
        %v509 = vpack.c.b16 %v495, %v494
        %v510 = vpack.c.b16 %v497, %v496
        %v511 = vpack.c.b16 %v499, %v498
        %v512 = vpack.c.b16 %v501, %v500
        %v513 = vpack.c.b16 %v503, %v502
        %v514 = vpack.c.b16 %v504, %v504
        %vm524 = vcmask 179200
        %v526 = vsel %vm524, %v444, 0
        %v529 = vsel %vm524, %v446, 0
        %v532 = vsel %vm524, %v448, 0
        %v535 = vsel %vm524, %v450, 0
        %v538 = vsel %vm524, %v452, 0
        %v541 = vsel %vm524, %v454, 0
        %v544 = vsel %vm524, %v456, 0
        %v547 = vsel %vm524, %v458, 0
        %vm549 = vcmask 1042432
        %v551 = vsel %vm549, %v514, 0
        %553 = vmatprep.subr.bf16.mxu0 0
        %554 = vmatpush1.bf16.msra.mxu0 %v505
        %555 = vmatprep.subr.bf16.mxu0 0
        %556 = vmatpush1.bf16.msra.mxu0 %v506
        %557 = vmatprep.subr.bf16.mxu0 0
        %558 = vmatpush1.bf16.msra.mxu0 %v507
        %559 = vmatprep.subr.bf16.mxu0 0
        %560 = vmatpush1.bf16.msra.mxu0 %v508
        %561 = vmatprep.subr.bf16.mxu0 0
        %562 = vmatpush1.bf16.msra.mxu0 %v509
        %563 = vmatprep.subr.bf16.mxu0 0
        %564 = vmatpush1.bf16.msra.mxu0 %v510
        %565 = vmatprep.subr.bf16.mxu0 0
        %566 = vmatpush1.bf16.msra.mxu0 %v511
        %567 = vmatprep.subr.bf16.mxu0 0
        %568 = vmatpush1.bf16.msra.mxu0 %v512
        %569 = vmatprep.subr.bf16.mxu0 0
        %570 = vmatpush1.bf16.msra.mxu0 %v513
        %571 = vmatprep.subr.bf16.mxu0 0
        %572 = vmatpush1.bf16.msra.mxu0 %v551
        %573 = vmatprep.subr.bf16.mxu0 0
        %574 = vmatpush1.bf16.msra.mxu0 0
        %575 = vmatprep.subr.bf16.mxu0 0
        %576 = vmatpush1.bf16.msra.mxu0 0
        %577 = vmatprep.subr.bf16.mxu0 0
        %578 = vmatpush1.bf16.msra.mxu0 0
        %579 = vmatprep.subr.bf16.mxu0 0
        %580 = vmatpush1.bf16.msra.mxu0 0
        %581 = vmatprep.subr.bf16.mxu0 0
        %582 = vmatpush1.bf16.msra.mxu0 0
        %583 = vmatprep.subr.bf16.mxu0 0
        %584 = vmatpush1.bf16.msra.mxu0 0
        %585 = vmatprep.mubr.bf16.mxu0 %v526
        %586 = vmatmul.mubr.bf16.gmra.mrb[0].mxu0 %v443
        %v587 = vpop.f32.mrb[0].mxu0
        %v588 = vadd.f32 0.0, %v587
        %v589 = vpop.f32.mrb[0].mxu0
        %v590 = vpop.f32.mrb[0].mxu0
        %v591 = vadd.f32 0.0, %v590
        %v592 = vpop.f32.mrb[0].mxu0
        %593 = vmatprep.mubr.bf16.mxu0 %v529
        %594 = vmatmul.mubr.bf16.gmra.mrb[0].mxu0 %v445
        %v595 = vpop.f32.mrb[0].mxu0
        %v596 = vadd.f32 0.0, %v595
        %v597 = vpop.f32.mrb[0].mxu0
        %v598 = vpop.f32.mrb[0].mxu0
        %v599 = vadd.f32 0.0, %v598
        %v600 = vpop.f32.mrb[0].mxu0
        %601 = vmatprep.mubr.bf16.mxu0 %v532
        %602 = vmatmul.mubr.bf16.gmra.mrb[0].mxu0 %v447
        %v603 = vpop.f32.mrb[0].mxu0
        %v604 = vadd.f32 0.0, %v603
        %v605 = vpop.f32.mrb[0].mxu0
        %v606 = vpop.f32.mrb[0].mxu0
        %v607 = vadd.f32 0.0, %v606
        %v608 = vpop.f32.mrb[0].mxu0
        %609 = vmatprep.mubr.bf16.mxu0 %v535
        %610 = vmatmul.mubr.bf16.gmra.mrb[0].mxu0 %v449
        %v611 = vpop.f32.mrb[0].mxu0
        %v612 = vadd.f32 0.0, %v611
        %v613 = vpop.f32.mrb[0].mxu0
        %v614 = vpop.f32.mrb[0].mxu0
        %v615 = vadd.f32 0.0, %v614
        %v616 = vpop.f32.mrb[0].mxu0
        %617 = vmatprep.mubr.bf16.mxu0 %v538
        %618 = vmatmul.mubr.bf16.gmra.mrb[0].mxu0 %v451
        %v619 = vpop.f32.mrb[0].mxu0
        %v620 = vadd.f32 0.0, %v619
        %v621 = vpop.f32.mrb[0].mxu0
        %v622 = vpop.f32.mrb[0].mxu0
        %v623 = vadd.f32 0.0, %v622
        %v624 = vpop.f32.mrb[0].mxu0
        %625 = vmatprep.mubr.bf16.mxu0 %v541
        %626 = vmatmul.mubr.bf16.gmra.mrb[0].mxu0 %v453
        %v627 = vpop.f32.mrb[0].mxu0
        %v628 = vadd.f32 0.0, %v627
        %v629 = vpop.f32.mrb[0].mxu0
        %v630 = vpop.f32.mrb[0].mxu0
        %v631 = vadd.f32 0.0, %v630
        %v632 = vpop.f32.mrb[0].mxu0
        %633 = vmatprep.mubr.bf16.mxu0 %v544
        %634 = vmatmul.mubr.bf16.gmra.mrb[0].mxu0 %v455
        %v635 = vpop.f32.mrb[0].mxu0
        %v636 = vadd.f32 0.0, %v635
        %v637 = vpop.f32.mrb[0].mxu0
        %v638 = vpop.f32.mrb[0].mxu0
        %v639 = vadd.f32 0.0, %v638
        %v640 = vpop.f32.mrb[0].mxu0
        %641 = vmatprep.mubr.bf16.mxu0 %v547
        %642 = vmatmul.mubr.bf16.gmra.mrb[0].mxu0 %v457
        %v643 = vpop.f32.mrb[0].mxu0
        %v644 = vadd.f32 0.0, %v643
        %v645 = vpop.f32.mrb[0].mxu0
        %v646 = vpop.f32.mrb[0].mxu0
        %v647 = vadd.f32 0.0, %v646
        %v648 = vpop.f32.mrb[0].mxu0
        %649 = vdwg.mxu0
        %v650 = vmax.f32 %v588, %v604
        %v651 = vmax.f32 %v591, %v607
        %v652 = vmax.f32 %v596, %v612
        %v653 = vmax.f32 %v599, %v615
        %v654 = vmax.f32 %v620, %v636
        %v655 = vmax.f32 %v623, %v639
        %v656 = vmax.f32 %v628, %v644
        %v657 = vmax.f32 %v631, %v647
        %v658 = vmax.f32 %v650, %v654
        %v659 = vmax.f32 %v651, %v655
        %v660 = vmax.f32 %v652, %v656
        %v661 = vmax.f32 %v653, %v657
        %v662 = vld [vmem:[%s2] sm:$0x1]
        %v664 = vlaneseq
        %v665 = vshrl.u32 %v664, 7
        %v666 = vsub.s32 0, %v665
        %v667 = vrot.slane %v662, %v666
        %v669 = vadd.f32 %v658, %v667
        %v670 = vadd.f32 %v659, %v667
        %v671 = vadd.f32 %v660, %v667
        %v672 = vadd.f32 %v661, %v667
        %v673 = vmax.f32 %v669, 0.0
        %v674 = vmax.f32 %v670, 0.0
        %v675 = vmax.f32 %v671, 0.0
        %v676 = vmax.f32 %v672, 0.0
        %v677 = vpack.c.bf16 %v674, %v673
        %v678 = vpack.c.bf16 %v676, %v675
        %v681 = vunpack.c.l.b16 %v677
        %v682 = vunpack.c.h.b16 %v677
        %v683 = vunpack.c.l.b16 %v678
        %v684 = vunpack.c.h.b16 %v678
        %v685 = vpack.c.b16 %v681, %v681
        %v686 = vpack.c.b16 %v682, %v682
        %v687 = vpack.c.b16 %v683, %v683
        %v688 = vpack.c.b16 %v684, %v684
        %693 = vst [vmem:[%s347] sm:$0xf] %v685
        %694 = vst [vmem:[%s347 + $0x4] sm:$0xf] %v686
        %695 = vst [vmem:[%s347 + $0x8] sm:$0xf] %v687
        %696 = vst [vmem:[%s347 + $0xc] sm:$0xf] %v688
        %s697 = sand.u32 %s90, 1
        %s698 = sand.u32 %s90, 1
        %s699 = smul.addr %s698, 16
        %s700 = scalar_lea.vmem [#allocation3], %s699
        // Predicated region
        $region85: #{net_forward.4} parent=79 // pred_check
          %p701 = pneg %p100
        $region86: #{net_forward.4} parent=79 // pred_check_branch
          %703 = sbr.rel (%p701) target = $region88
        $region87: #{net_forward.4} parent=79 // pred_region
          %s704 = smul.u32 4, %s14
          %s705 = ssub.s32 7, %s704
          %p706 = scmp.lt.s32.totalorder %s705, 4
          %s707 = scalar_select %p706, %s705, 4
          %s708 = smul.u32 64, %s707
          %p709 = scmp.ne.s32.totalorder 0, %s708
          %s710 = smul.addr %s704, 4
          %s711 = scalar_lea.vmem %s3, %s710
          // Predicated region
          $region89: #{net_forward.4} parent=87 // pred_check
            %p712 = pneg %p709
          $region90: #{net_forward.4} parent=87 // pred_check_branch
            %714 = sbr.rel (%p712) target = $region92
          $region91: #{net_forward.4} parent=87 // pred_region
            // Predicated region
            $region93: #{net_forward.4} parent=91 // pred_check
              _
            $region94: #{net_forward.4} parent=91 // pred_check_branch
              %716 = sbr.rel target = $region96
            $region95: #{net_forward.4} parent=91 // pred_region
              // Predicated region
              $region115: #{net_forward.4} parent=95 // pred_check
                _
              $region116: #{net_forward.4} parent=95 // pred_check_branch
                %771 = sbr.rel (0) target = $region118
              $region117: #{net_forward.4} parent=95 // pred_region
                %s773 = sshrl.u32 %s707, 2
                // While loop
                $region119: #{net_forward.4} parent=117 // loop_pre_header
                  _
                $region120: #{net_forward.4} parent=117 // loop_header
                  %s775 = sphi 0, %s777
                  %p776 = scmp.ge.s32.totalorder %s775, %s773
                  %s780 = sphi 0, %s793
                  %s781 = sphi %s700, %s796
                  %s782 = sphi %s711, %s797
                $region121: #{net_forward.4} parent=117 // loop_header_branch
                  %779 = sbr.rel (%p776) target = $region125
                $region122: #{net_forward.4} parent=117 // loop_body
                  %v783 = vld [vmem:[%s781] sm:$0xf]
                  %784 = vst [vmem:[%s782] sm:$0xf] %v783
                  %v785 = vld [vmem:[%s781 + $0x4] sm:$0xf]
                  %786 = vst [vmem:[%s782 + $0x4] sm:$0xf] %v785
                  %v787 = vld [vmem:[%s781 + $0x8] sm:$0xf]
                  %788 = vst [vmem:[%s782 + $0x8] sm:$0xf] %v787
                  %v789 = vld [vmem:[%s781 + $0xc] sm:$0xf]
                  %790 = vst [vmem:[%s782 + $0xc] sm:$0xf] %v789
                  %s791 = sadd.s32 1, %s780
                  %p792 = scmp.ge.s32.totalorder %s791, %s773
                  %s793 = scalar_select %p792, 0, %s791
                  %s794 = smul.u32 %s793, 16
                  %s795 = smul.u32 %s793, 16
                  %s796 = scalar_lea.vmem %s700, %s794 [#allocation3]
                  %s797 = scalar_lea.vmem %s711, %s795
                $region123: #{net_forward.4} parent=117 // loop_footer
                  %s777 = sadd.s32 %s775, 1
                $region124: #{net_forward.4} parent=117 // loop_footer_branch
                  %774 = sbr.rel target = $region120
                $region125: #{net_forward.4} parent=117 // loop_exit
                  _
                %s798 = sshrl.u32 %s707, 2
                %s799 = sand.u32 %s707, 3
                %s800 = smul.u32 %s798, 4
                %s801 = smul.u32 4, %s800
                %s802 = scalar_lea.vmem %s700, %s801 [#allocation3]
                %s803 = smul.u32 4, %s800
                %s804 = scalar_lea.vmem %s711, %s803
                // While loop
                $region126: #{net_forward.4} parent=117 // loop_pre_header
                  _
                $region127: #{net_forward.4} parent=117 // loop_header
                  %s806 = sphi 0, %s808
                  %p807 = scmp.ge.s32.totalorder %s806, %s799
                  %s811 = sphi 0, %s818
                  %s812 = sphi %s802, %s821
                  %s813 = sphi %s804, %s822
                $region128: #{net_forward.4} parent=117 // loop_header_branch
                  %810 = sbr.rel (%p807) target = $region132
                $region129: #{net_forward.4} parent=117 // loop_body
                  %v814 = vld [vmem:[%s812] sm:$0xf]
                  %815 = vst [vmem:[%s813] sm:$0xf] %v814
                  %s816 = sadd.s32 1, %s811
                  %p817 = scmp.ge.s32.totalorder %s816, %s799
                  %s818 = scalar_select %p817, 0, %s816
                  %s819 = smul.u32 %s818, 4
                  %s820 = smul.u32 %s818, 4
                  %s821 = scalar_lea.vmem %s802, %s819 [#allocation3]
                  %s822 = scalar_lea.vmem %s804, %s820
                $region130: #{net_forward.4} parent=117 // loop_footer
                  %s808 = sadd.s32 %s806, 1
                $region131: #{net_forward.4} parent=117 // loop_footer_branch
                  %805 = sbr.rel target = $region127
                $region132: #{net_forward.4} parent=117 // loop_exit
                  _
              $region118: #{net_forward.4} parent=95 // pred_fallthru
                _
            $region96: #{net_forward.4} parent=91 // pred_fallthru
              _
            // Predicated region
            $region97: #{net_forward.4} parent=91 // pred_check
              _
            $region98: #{net_forward.4} parent=91 // pred_check_branch
              %718 = sbr.rel (0) target = $region100
            $region99: #{net_forward.4} parent=91 // pred_region
              %s720 = sshrl.u32 %s707, 2
              // While loop
              $region101: #{net_forward.4} parent=99 // loop_pre_header
                _
              $region102: #{net_forward.4} parent=99 // loop_header
                %s722 = sphi 0, %s724
                %p723 = scmp.ge.s32.totalorder %s722, %s720
                %s727 = sphi 0, %s740
                %s728 = sphi %s700, %s743
                %s729 = sphi %s711, %s744
              $region103: #{net_forward.4} parent=99 // loop_header_branch
                %726 = sbr.rel (%p723) target = $region107
              $region104: #{net_forward.4} parent=99 // loop_body
                %v730 = vld [vmem:[%s728] sm:$0xf]
                %731 = vst [vmem:[%s729] sm:$0xf] %v730
                %v732 = vld [vmem:[%s728 + $0x4] sm:$0xf]
                %733 = vst [vmem:[%s729 + $0x4] sm:$0xf] %v732
                %v734 = vld [vmem:[%s728 + $0x8] sm:$0xf]
                %735 = vst [vmem:[%s729 + $0x8] sm:$0xf] %v734
                %v736 = vld [vmem:[%s728 + $0xc] sm:$0xf]
                %737 = vst [vmem:[%s729 + $0xc] sm:$0xf] %v736
                %s738 = sadd.s32 1, %s727
                %p739 = scmp.ge.s32.totalorder %s738, %s720
                %s740 = scalar_select %p739, 0, %s738
                %s741 = smul.u32 %s740, 16
                %s742 = smul.u32 %s740, 16
                %s743 = scalar_lea.vmem %s700, %s741 [#allocation3]
                %s744 = scalar_lea.vmem %s711, %s742
              $region105: #{net_forward.4} parent=99 // loop_footer
                %s724 = sadd.s32 %s722, 1
              $region106: #{net_forward.4} parent=99 // loop_footer_branch
                %721 = sbr.rel target = $region102
              $region107: #{net_forward.4} parent=99 // loop_exit
                _
              %s745 = sshrl.u32 %s707, 2
              %s746 = sand.u32 %s707, 3
              %s747 = smul.u32 %s745, 4
              %s748 = smul.u32 4, %s747
              %s749 = scalar_lea.vmem %s700, %s748 [#allocation3]
              %s750 = smul.u32 4, %s747
              %s751 = scalar_lea.vmem %s711, %s750
              // While loop
              $region108: #{net_forward.4} parent=99 // loop_pre_header
                _
              $region109: #{net_forward.4} parent=99 // loop_header
                %s753 = sphi 0, %s755
                %p754 = scmp.ge.s32.totalorder %s753, %s746
                %s758 = sphi 0, %s765
                %s759 = sphi %s749, %s768
                %s760 = sphi %s751, %s769
              $region110: #{net_forward.4} parent=99 // loop_header_branch
                %757 = sbr.rel (%p754) target = $region114
              $region111: #{net_forward.4} parent=99 // loop_body
                %v761 = vld [vmem:[%s759] sm:$0xf]
                %762 = vst [vmem:[%s760] sm:$0xf] %v761
                %s763 = sadd.s32 1, %s758
                %p764 = scmp.ge.s32.totalorder %s763, %s746
                %s765 = scalar_select %p764, 0, %s763
                %s766 = smul.u32 %s765, 4
                %s767 = smul.u32 %s765, 4
                %s768 = scalar_lea.vmem %s749, %s766 [#allocation3]
                %s769 = scalar_lea.vmem %s751, %s767
              $region112: #{net_forward.4} parent=99 // loop_footer
                %s755 = sadd.s32 %s753, 1
              $region113: #{net_forward.4} parent=99 // loop_footer_branch
                %752 = sbr.rel target = $region109
              $region114: #{net_forward.4} parent=99 // loop_exit
                _
            $region100: #{net_forward.4} parent=91 // pred_fallthru
              _
          $region92: #{net_forward.4} parent=87 // pred_fallthru
            _
          %823 = vnop
        $region88: #{net_forward.4} parent=79 // pred_fallthru
          _
      $region80: #{net_forward.4} parent=5 // pred_fallthru
        _
      %p824 = scmp.le.s32.totalorder 2, %s9
      // Predicated region
      $region133: #{net_forward.4} parent=5 // pred_check
        %p825 = pneg %p824
      $region134: #{net_forward.4} parent=5 // pred_check_branch
        %827 = sbr.rel (%p825) target = $region136
      $region135: #{net_forward.4} parent=5 // pred_region
        %s828 = ssub.s32 %s9, 2
        // Predicated region
        $region137: #{net_forward.4} parent=135 // pred_check
          %p829 = pneg %p106
        $region138: #{net_forward.4} parent=135 // pred_check_branch
          %831 = sbr.rel (%p829) target = $region140
        $region139: #{net_forward.4} parent=135 // pred_region
          %s832 = sand.u32 %s91, 1
          %s833 = sand.u32 %s91, 1
          %s834 = smul.addr %s833, 16
          %s835 = scalar_lea.vmem [#allocation3], %s834
        $region140: #{net_forward.4} parent=135 // pred_fallthru
          _
      $region136: #{net_forward.4} parent=5 // pred_fallthru
        _
    $region6: #{net_forward.4} parent=1 // loop_footer
      %s13 = sadd.s32 1, %s9
    $region7: #{net_forward.4} parent=1 // loop_footer_branch
      %8 = sbr.rel target = $region3
    $region8: #{net_forward.4} parent=1 // loop_exit
      _

// kernel: net_forward.5
$region0: #{net_forward.5}
  #allocation0 [shape = 'u32[]', space=smem, size = 0x4, offset = 0x4, fixed_abs, tag = 'smem constant byte address 0x4 - core index']
  #allocation1 [shape = 'u32[144,128]{1,0:T(1,128)}', space=vmem, size = 0x12000, scoped, tag = 'internal scratch']
  %s0 = inlined_call_operand.vmem [shape: bf16[2,400], index: 0, kind: input, shape index: {}]
  %s1 = inlined_call_operand.vmem [shape: bf16[400,128], index: 1, kind: input, shape index: {}]
  %s2 = inlined_call_operand.vmem [shape: f32[1,128], index: 2, kind: input, shape index: {}]
  %s3 = inlined_call_operand.vmem [shape: bf16[128,128], index: 3, kind: input, shape index: {}]
  %s4 = inlined_call_operand.vmem [shape: f32[1,128], index: 4, kind: input, shape index: {}]
  %s5 = inlined_call_operand.vmem [shape: bf16[128,128], index: 5, kind: input, shape index: {}]
  %s6 = inlined_call_operand.vmem [shape: f32[1,128], index: 6, kind: input, shape index: {}]
  %s7 = inlined_call_operand.hbm [shape: f32[2,128], index: 7, kind: output, shape index: {}]
  %s8 = sld [smem:[#allocation0]]
  $region38: #{net_forward.5} parent=0
    _
  %s10 = ssub.s32 1, %s8
  %s11 = scalar_select 0, %s10, %s8
  $region1: #{net_forward.5} parent=0
    #allocation2 [shape = 'u8[1024]{0}', space=vmem, size = 0x400, scoped, tag = 'output window, operand 0, single buffered']
    #allocation3 [shape = 's32[1]{0}', space=sflag, size = 0x4, scoped, tag = 'scoped memory for net_forward.5']
    %12 = vsyncpa [#allocation3], 0
    // Predicated region
    $region2: #{net_forward.5} parent=1 // pred_check
      _
    $region3: #{net_forward.5} parent=1 // pred_check_branch
      %14 = sbr.rel (0) target = $region5
    $region4: #{net_forward.5} parent=1 // pred_region
      _
    $region5: #{net_forward.5} parent=1 // pred_fallthru
      _
    // Predicated region
    $region6: #{net_forward.5} parent=1 // pred_check
      _
    $region7: #{net_forward.5} parent=1 // pred_check_branch
      %16 = sbr.rel (0) target = $region9
    $region8: #{net_forward.5} parent=1 // pred_region
      _
    $region9: #{net_forward.5} parent=1 // pred_fallthru
      _
    // Predicated region
    $region10: #{net_forward.5} parent=1 // pred_check
      _
    $region11: #{net_forward.5} parent=1 // pred_check_branch
      %18 = sbr.rel (0) target = $region13
    $region12: #{net_forward.5} parent=1 // pred_region
      _
    $region13: #{net_forward.5} parent=1 // pred_fallthru
      _
    // Predicated region
    $region14: #{net_forward.5} parent=1 // pred_check
      _
    $region15: #{net_forward.5} parent=1 // pred_check_branch
      %20 = sbr.rel (0) target = $region17
    $region16: #{net_forward.5} parent=1 // pred_region
      _
    $region17: #{net_forward.5} parent=1 // pred_fallthru
      _
    // Predicated region
    $region18: #{net_forward.5} parent=1 // pred_check
      _
    $region19: #{net_forward.5} parent=1 // pred_check_branch
      %22 = sbr.rel (0) target = $region21
    $region20: #{net_forward.5} parent=1 // pred_region
      _
    $region21: #{net_forward.5} parent=1 // pred_fallthru
      _
    // Predicated region
    $region22: #{net_forward.5} parent=1 // pred_check
      _
    $region23: #{net_forward.5} parent=1 // pred_check_branch
      %24 = sbr.rel (0) target = $region25
    $region24: #{net_forward.5} parent=1 // pred_region
      _
    $region25: #{net_forward.5} parent=1 // pred_fallthru
      _
    // Predicated region
    $region26: #{net_forward.5} parent=1 // pred_check
      _
    $region27: #{net_forward.5} parent=1 // pred_check_branch
      %26 = sbr.rel (0) target = $region29
    $region28: #{net_forward.5} parent=1 // pred_region
      _
    $region29: #{net_forward.5} parent=1 // pred_fallthru
      _
    %v28 = vld [vmem:[%s0] sm:$0xf]
    %v29 = vld [vmem:[%s1] sm:$0xf]
    %v30 = vld [vmem:[%s1 + $0x4] sm:$0xf]
    %v31 = vld [vmem:[%s1 + $0x8] sm:$0xf]
    %v32 = vld [vmem:[%s1 + $0xc] sm:$0xf]
    %v33 = vld [vmem:[%s1 + $0x10] sm:$0xf]
    %v34 = vld [vmem:[%s1 + $0x14] sm:$0xf]
    %v35 = vld [vmem:[%s1 + $0x18] sm:$0xf]
    %v36 = vld [vmem:[%s1 + $0x1c] sm:$0xf]
    %v37 = vld [vmem:[%s1 + $0x20] sm:$0xf]
    %v38 = vld [vmem:[%s1 + $0x24] sm:$0xf]
    %v39 = vld [vmem:[%s1 + $0x28] sm:$0xf]
    %v40 = vld [vmem:[%s1 + $0x2c] sm:$0xf]
    %v41 = vld [vmem:[%s1 + $0x30] sm:$0xf]
    %v42 = vld [vmem:[%s1 + $0x34] sm:$0xf]
    %v43 = vld [vmem:[%s1 + $0x38] sm:$0xf]
    %v44 = vld [vmem:[%s1 + $0x3c] sm:$0xf]
    %v45 = vld [vmem:[%s1 + $0x40] sm:$0xf]
    %v46 = vld [vmem:[%s1 + $0x44] sm:$0xf]
    %v47 = vld [vmem:[%s1 + $0x48] sm:$0xf]
    %v48 = vld [vmem:[%s1 + $0x4c] sm:$0xf]
    %v49 = vld [vmem:[%s1 + $0x50] sm:$0xf]
    %v50 = vld [vmem:[%s1 + $0x54] sm:$0xf]
    %v51 = vld [vmem:[%s1 + $0x58] sm:$0xf]
    %v52 = vld [vmem:[%s1 + $0x5c] sm:$0xf]
    %v53 = vld [vmem:[%s1 + $0x60] sm:$0xf]
    %v54 = vld [vmem:[%s1 + $0x64] sm:$0xf]
    %v55 = vld [vmem:[%s1 + $0x68] sm:$0xf]
    %v56 = vld [vmem:[%s1 + $0x6c] sm:$0xf]
    %v57 = vld [vmem:[%s1 + $0x70] sm:$0xf]
    %v58 = vld [vmem:[%s1 + $0x74] sm:$0xf]
    %v59 = vld [vmem:[%s1 + $0x78] sm:$0xf]
    %v60 = vld [vmem:[%s1 + $0x7c] sm:$0xf]
    %v61 = vld [vmem:[%s1 + $0x80] sm:$0xf]
    %v62 = vld [vmem:[%s1 + $0x84] sm:$0xf]
    %v63 = vld [vmem:[%s1 + $0x88] sm:$0xf]
    %v64 = vld [vmem:[%s1 + $0x8c] sm:$0xf]
    %v65 = vld [vmem:[%s1 + $0x90] sm:$0xf]
    %v66 = vld [vmem:[%s1 + $0x94] sm:$0xf]
    %v67 = vld [vmem:[%s1 + $0x98] sm:$0xf]
    %v68 = vld [vmem:[%s1 + $0x9c] sm:$0xf]
    %v69 = vld [vmem:[%s1 + $0xa0] sm:$0xf]
    %v70 = vld [vmem:[%s1 + $0xa4] sm:$0xf]
    %v71 = vld [vmem:[%s1 + $0xa8] sm:$0xf]
    %v72 = vld [vmem:[%s1 + $0xac] sm:$0xf]
    %v73 = vld [vmem:[%s1 + $0xb0] sm:$0xf]
    %v74 = vld [vmem:[%s1 + $0xb4] sm:$0xf]
    %v75 = vld [vmem:[%s1 + $0xb8] sm:$0xf]
    %v76 = vld [vmem:[%s1 + $0xbc] sm:$0xf]
    %v77 = vld [vmem:[%s1 + $0xc0] sm:$0xf]
    %v78 = vld [vmem:[%s1 + $0xc4] sm:$0xf]
    %v79 = vld [vmem:[%s2] sm:$0x1]
    %v81 = vlaneseq
    %v82 = vshrl.u32 %v81, 7
    %v83 = vsub.s32 0, %v82
    %v84 = vrot.slane %v79, %v83
    %v88 = vunpack.c.l.s4 1966171168
    %v89 = vunpack.c.0.s8 %v88
    %v90 = vlaneseq
    %v91 = vshrl.u32 %v90, 7
    %v92 = vsub.s32 %v89, %v91
    %v93 = vrot.slane %v28, %v92
    %v94 = vcombine.high %v93, %v93
    %v96 = vunpack.c.l.s4 1966171168
    %v97 = vunpack.c.0.s8 %v96
    %v98 = vlaneseq
    %v99 = vshrl.u32 %v98, 7
    %v100 = vsub.s32 %v97, %v99
    %v101 = vrot.slane %v93, %v100
    %v103 = vunpack.c.l.s4 1966171168
    %v104 = vunpack.c.0.s8 %v103
    %v105 = vlaneseq
    %v106 = vshrl.u32 %v105, 7
    %v107 = vsub.s32 %v104, %v106
    %v108 = vrot.slane %v94, %v107
    %v109 = vcombine.high %v101, %v101
    %v110 = vcombine.high %v108, %v108
    %v164 = vunpack.c.l.b16 %v29
    %v165 = vunpack.c.l.b16 %v30
    %v166 = vunpack.c.l.b16 %v31
    %v167 = vunpack.c.l.b16 %v32
    %v168 = vunpack.c.l.b16 %v33
    %v169 = vunpack.c.l.b16 %v34
    %v170 = vunpack.c.l.b16 %v35
    %v171 = vunpack.c.l.b16 %v36
    %v172 = vunpack.c.l.b16 %v37
    %v173 = vunpack.c.l.b16 %v38
    %v174 = vunpack.c.l.b16 %v39
    %v175 = vunpack.c.l.b16 %v40
    %v176 = vunpack.c.l.b16 %v41
    %v177 = vunpack.c.l.b16 %v42
    %v178 = vunpack.c.l.b16 %v43
    %v179 = vunpack.c.l.b16 %v44
    %v180 = vunpack.c.l.b16 %v45
    %v181 = vunpack.c.l.b16 %v46
    %v182 = vunpack.c.l.b16 %v47
    %v183 = vunpack.c.l.b16 %v48
    %v184 = vunpack.c.l.b16 %v49
    %v185 = vunpack.c.l.b16 %v50
    %v186 = vunpack.c.l.b16 %v51
    %v187 = vunpack.c.l.b16 %v52
    %v188 = vunpack.c.l.b16 %v53
    %v189 = vunpack.c.l.b16 %v54
    %v190 = vunpack.c.l.b16 %v55
    %v191 = vunpack.c.l.b16 %v56
    %v192 = vunpack.c.l.b16 %v57
    %v193 = vunpack.c.l.b16 %v58
    %v194 = vunpack.c.l.b16 %v59
    %v195 = vunpack.c.l.b16 %v60
    %v196 = vunpack.c.l.b16 %v61
    %v197 = vunpack.c.l.b16 %v62
    %v198 = vunpack.c.l.b16 %v63
    %v199 = vunpack.c.l.b16 %v64
    %v200 = vunpack.c.l.b16 %v65
    %v201 = vunpack.c.l.b16 %v66
    %v202 = vunpack.c.l.b16 %v67
    %v203 = vunpack.c.l.b16 %v68
    %v204 = vunpack.c.l.b16 %v69
    %v205 = vunpack.c.l.b16 %v70
    %v206 = vunpack.c.l.b16 %v71
    %v207 = vunpack.c.l.b16 %v72
    %v208 = vunpack.c.l.b16 %v73
    %v209 = vunpack.c.l.b16 %v74
    %v210 = vunpack.c.l.b16 %v75
    %v211 = vunpack.c.l.b16 %v76
    %v212 = vunpack.c.l.b16 %v77
    %v213 = vunpack.c.l.b16 %v78
    %v214 = vpack.c.b16 %v165, %v164
    %v215 = vpack.c.b16 %v167, %v166
    %v216 = vpack.c.b16 %v169, %v168
    %v217 = vpack.c.b16 %v171, %v170
    %v218 = vpack.c.b16 %v173, %v172
    %v219 = vpack.c.b16 %v175, %v174
    %v220 = vpack.c.b16 %v177, %v176
    %v221 = vpack.c.b16 %v179, %v178
    %v222 = vpack.c.b16 %v181, %v180
    %v223 = vpack.c.b16 %v183, %v182
    %v224 = vpack.c.b16 %v185, %v184
    %v225 = vpack.c.b16 %v187, %v186
    %v226 = vpack.c.b16 %v189, %v188
    %v227 = vpack.c.b16 %v191, %v190
    %v228 = vpack.c.b16 %v193, %v192
    %v229 = vpack.c.b16 %v195, %v194
    %v230 = vpack.c.b16 %v197, %v196
    %v231 = vpack.c.b16 %v199, %v198
    %v232 = vpack.c.b16 %v201, %v200
    %v233 = vpack.c.b16 %v203, %v202
    %v234 = vpack.c.b16 %v205, %v204
    %v235 = vpack.c.b16 %v207, %v206
    %v236 = vpack.c.b16 %v209, %v208
    %v237 = vpack.c.b16 %v211, %v210
    %v238 = vpack.c.b16 %v213, %v212
    %vm264 = vcmask 130048
    %v266 = vsel %vm264, %v110, 0
    %268 = vmatprep.subr.bf16.mxu0 0
    %269 = vmatpush1.bf16.msra.mxu0 %v214
    %270 = vmatprep.subr.bf16.mxu0 0
    %271 = vmatpush1.bf16.msra.mxu0 %v215
    %272 = vmatprep.subr.bf16.mxu0 0
    %273 = vmatpush1.bf16.msra.mxu0 %v216
    %274 = vmatprep.subr.bf16.mxu0 0
    %275 = vmatpush1.bf16.msra.mxu0 %v217
    %276 = vmatprep.subr.bf16.mxu0 0
    %277 = vmatpush1.bf16.msra.mxu0 %v218
    %278 = vmatprep.subr.bf16.mxu0 0
    %279 = vmatpush1.bf16.msra.mxu0 %v219
    %280 = vmatprep.subr.bf16.mxu0 0
    %281 = vmatpush1.bf16.msra.mxu0 %v220
    %282 = vmatprep.subr.bf16.mxu0 0
    %283 = vmatpush1.bf16.msra.mxu0 %v221
    %284 = vmatprep.subr.bf16.mxu0 0
    %285 = vmatpush1.bf16.msra.mxu0 %v222
    %286 = vmatprep.subr.bf16.mxu0 0
    %287 = vmatpush1.bf16.msra.mxu0 %v223
    %288 = vmatprep.subr.bf16.mxu0 0
    %289 = vmatpush1.bf16.msra.mxu0 %v224
    %290 = vmatprep.subr.bf16.mxu0 0
    %291 = vmatpush1.bf16.msra.mxu0 %v225
    %292 = vmatprep.subr.bf16.mxu0 0
    %293 = vmatpush1.bf16.msra.mxu0 %v226
    %294 = vmatprep.subr.bf16.mxu0 0
    %295 = vmatpush1.bf16.msra.mxu0 %v227
    %296 = vmatprep.subr.bf16.mxu0 0
    %297 = vmatpush1.bf16.msra.mxu0 %v228
    %298 = vmatprep.subr.bf16.mxu0 0
    %299 = vmatpush1.bf16.msra.mxu0 %v229
    %300 = vmatprep.mubr.bf16.mxu0 %v108
    %301 = vmatmul.mubr.bf16.gmra.mrb[0].mxu0 %v101
    %v302 = vpop.f32.mrb[0].mxu0
    %v303 = vadd.f32 %v84, %v302
    %v304 = vpop.f32.mrb[0].mxu0
    %v305 = vpop.f32.mrb[0].mxu0
    %v306 = vpop.f32.mrb[0].mxu0
    %307 = vdwg.mxu0
    %308 = vmatprep.subr.bf16.mxu0 0
    %309 = vmatpush1.bf16.msra.mxu0 %v230
    %310 = vmatprep.subr.bf16.mxu0 0
    %311 = vmatpush1.bf16.msra.mxu0 %v231
    %312 = vmatprep.subr.bf16.mxu0 0
    %313 = vmatpush1.bf16.msra.mxu0 %v232
    %314 = vmatprep.subr.bf16.mxu0 0
    %315 = vmatpush1.bf16.msra.mxu0 %v233
    %316 = vmatprep.subr.bf16.mxu0 0
    %317 = vmatpush1.bf16.msra.mxu0 %v234
    %318 = vmatprep.subr.bf16.mxu0 0
    %319 = vmatpush1.bf16.msra.mxu0 %v235
    %320 = vmatprep.subr.bf16.mxu0 0
    %321 = vmatpush1.bf16.msra.mxu0 %v236
    %322 = vmatprep.subr.bf16.mxu0 0
    %323 = vmatpush1.bf16.msra.mxu0 %v237
    %324 = vmatprep.subr.bf16.mxu0 0
    %325 = vmatpush1.bf16.msra.mxu0 %v238
    %326 = vmatprep.subr.bf16.mxu0 0
    %327 = vmatpush1.bf16.msra.mxu0 0
    %328 = vmatprep.subr.bf16.mxu0 0
    %329 = vmatpush1.bf16.msra.mxu0 0
    %330 = vmatprep.subr.bf16.mxu0 0
    %331 = vmatpush1.bf16.msra.mxu0 0
    %332 = vmatprep.subr.bf16.mxu0 0
    %333 = vmatpush1.bf16.msra.mxu0 0
    %334 = vmatprep.subr.bf16.mxu0 0
    %335 = vmatpush1.bf16.msra.mxu0 0
    %336 = vmatprep.subr.bf16.mxu0 0
    %337 = vmatpush1.bf16.msra.mxu0 0
    %338 = vmatprep.subr.bf16.mxu0 0
    %339 = vmatpush1.bf16.msra.mxu0 0
    %340 = vmatprep.mubr.bf16.mxu0 %v266
    %341 = vmatmul.mubr.bf16.gmra.mrb[0].mxu0 %v109
    %v342 = vpop.f32.mrb[0].mxu0
    %v343 = vadd.f32 %v303, %v342
    %v344 = vpop.f32.mrb[0].mxu0
    %v345 = vpop.f32.mrb[0].mxu0
    %v346 = vpop.f32.mrb[0].mxu0
    %347 = vdwg.mxu0
    %v348 = vmax.f32 %v343, 0.0
    %v349 = vpack.c.bf16 %v348, %v348
    %v350 = vld [vmem:[%s3] sm:$0xf]
    %v351 = vld [vmem:[%s3 + $0x4] sm:$0xf]
    %v352 = vld [vmem:[%s3 + $0x8] sm:$0xf]
    %v353 = vld [vmem:[%s3 + $0xc] sm:$0xf]
    %v354 = vld [vmem:[%s3 + $0x10] sm:$0xf]
    %v355 = vld [vmem:[%s3 + $0x14] sm:$0xf]
    %v356 = vld [vmem:[%s3 + $0x18] sm:$0xf]
    %v357 = vld [vmem:[%s3 + $0x1c] sm:$0xf]
    %v358 = vld [vmem:[%s3 + $0x20] sm:$0xf]
    %v359 = vld [vmem:[%s3 + $0x24] sm:$0xf]
    %v360 = vld [vmem:[%s3 + $0x28] sm:$0xf]
    %v361 = vld [vmem:[%s3 + $0x2c] sm:$0xf]
    %v362 = vld [vmem:[%s3 + $0x30] sm:$0xf]
    %v363 = vld [vmem:[%s3 + $0x34] sm:$0xf]
    %v364 = vld [vmem:[%s3 + $0x38] sm:$0xf]
    %v365 = vld [vmem:[%s3 + $0x3c] sm:$0xf]
    %v366 = vld [vmem:[%s4] sm:$0x1]
    %v368 = vlaneseq
    %v369 = vshrl.u32 %v368, 7
    %v370 = vsub.s32 0, %v369
    %v371 = vrot.slane %v366, %v370
    %v389 = vunpack.c.l.b16 %v350
    %v390 = vunpack.c.l.b16 %v351
    %v391 = vunpack.c.l.b16 %v352
    %v392 = vunpack.c.l.b16 %v353
    %v393 = vunpack.c.l.b16 %v354
    %v394 = vunpack.c.l.b16 %v355
    %v395 = vunpack.c.l.b16 %v356
    %v396 = vunpack.c.l.b16 %v357
    %v397 = vunpack.c.l.b16 %v358
    %v398 = vunpack.c.l.b16 %v359
    %v399 = vunpack.c.l.b16 %v360
    %v400 = vunpack.c.l.b16 %v361
    %v401 = vunpack.c.l.b16 %v362
    %v402 = vunpack.c.l.b16 %v363
    %v403 = vunpack.c.l.b16 %v364
    %v404 = vunpack.c.l.b16 %v365
    %v405 = vpack.c.b16 %v390, %v389
    %v406 = vpack.c.b16 %v392, %v391
    %v407 = vpack.c.b16 %v394, %v393
    %v408 = vpack.c.b16 %v396, %v395
    %v409 = vpack.c.b16 %v398, %v397
    %v410 = vpack.c.b16 %v400, %v399
    %v411 = vpack.c.b16 %v402, %v401
    %v412 = vpack.c.b16 %v404, %v403
    %421 = vmatprep.subr.bf16.mxu0 0
    %422 = vmatpush1.bf16.msra.mxu0 %v405
    %423 = vmatprep.subr.bf16.mxu0 0
    %424 = vmatpush1.bf16.msra.mxu0 %v406
    %425 = vmatprep.subr.bf16.mxu0 0
    %426 = vmatpush1.bf16.msra.mxu0 %v407
    %427 = vmatprep.subr.bf16.mxu0 0
    %428 = vmatpush1.bf16.msra.mxu0 %v408
    %429 = vmatprep.subr.bf16.mxu0 0
    %430 = vmatpush1.bf16.msra.mxu0 %v409
    %431 = vmatprep.subr.bf16.mxu0 0
    %432 = vmatpush1.bf16.msra.mxu0 %v410
    %433 = vmatprep.subr.bf16.mxu0 0
    %434 = vmatpush1.bf16.msra.mxu0 %v411
    %435 = vmatprep.subr.bf16.mxu0 0
    %436 = vmatpush1.bf16.msra.mxu0 %v412
    %437 = vmatprep.subr.bf16.mxu0 0
    %438 = vmatpush1.bf16.msra.mxu0 0
    %439 = vmatprep.subr.bf16.mxu0 0
    %440 = vmatpush1.bf16.msra.mxu0 0
    %441 = vmatprep.subr.bf16.mxu0 0
    %442 = vmatpush1.bf16.msra.mxu0 0
    %443 = vmatprep.subr.bf16.mxu0 0
    %444 = vmatpush1.bf16.msra.mxu0 0
    %445 = vmatprep.subr.bf16.mxu0 0
    %446 = vmatpush1.bf16.msra.mxu0 0
    %447 = vmatprep.subr.bf16.mxu0 0
    %448 = vmatpush1.bf16.msra.mxu0 0
    %449 = vmatprep.subr.bf16.mxu0 0
    %450 = vmatpush1.bf16.msra.mxu0 0
    %451 = vmatprep.subr.bf16.mxu0 0
    %452 = vmatpush1.bf16.msra.mxu0 0
    %453 = vmatprep.mubr.bf16.mxu0 0
    %454 = vmatmul.mubr.bf16.gmra.mrb[0].mxu0 %v349
    %v455 = vpop.f32.mrb[0].mxu0
    %v456 = vadd.f32 %v371, %v455
    %v457 = vpop.f32.mrb[0].mxu0
    %v458 = vpop.f32.mrb[0].mxu0
    %v459 = vpop.f32.mrb[0].mxu0
    %460 = vdwg.mxu0
    %v461 = vmax.f32 %v456, 0.0
    %v462 = vpack.c.bf16 %v461, %v461
    %v463 = vld [vmem:[%s5] sm:$0xf]
    %v464 = vld [vmem:[%s5 + $0x4] sm:$0xf]
    %v465 = vld [vmem:[%s5 + $0x8] sm:$0xf]
    %v466 = vld [vmem:[%s5 + $0xc] sm:$0xf]
    %v467 = vld [vmem:[%s5 + $0x10] sm:$0xf]
    %v468 = vld [vmem:[%s5 + $0x14] sm:$0xf]
    %v469 = vld [vmem:[%s5 + $0x18] sm:$0xf]
    %v470 = vld [vmem:[%s5 + $0x1c] sm:$0xf]
    %v471 = vld [vmem:[%s5 + $0x20] sm:$0xf]
    %v472 = vld [vmem:[%s5 + $0x24] sm:$0xf]
    %v473 = vld [vmem:[%s5 + $0x28] sm:$0xf]
    %v474 = vld [vmem:[%s5 + $0x2c] sm:$0xf]
    %v475 = vld [vmem:[%s5 + $0x30] sm:$0xf]
    %v476 = vld [vmem:[%s5 + $0x34] sm:$0xf]
    %v477 = vld [vmem:[%s5 + $0x38] sm:$0xf]
    %v478 = vld [vmem:[%s5 + $0x3c] sm:$0xf]
    %v479 = vld [vmem:[%s6] sm:$0x1]
    %v481 = vlaneseq
    %v482 = vshrl.u32 %v481, 7
    %v483 = vsub.s32 0, %v482
    %v484 = vrot.slane %v479, %v483
    %v502 = vunpack.c.l.b16 %v463
    %v503 = vunpack.c.l.b16 %v464
    %v504 = vunpack.c.l.b16 %v465
    %v505 = vunpack.c.l.b16 %v466
    %v506 = vunpack.c.l.b16 %v467
    %v507 = vunpack.c.l.b16 %v468
    %v508 = vunpack.c.l.b16 %v469
    %v509 = vunpack.c.l.b16 %v470
    %v510 = vunpack.c.l.b16 %v471
    %v511 = vunpack.c.l.b16 %v472
    %v512 = vunpack.c.l.b16 %v473
    %v513 = vunpack.c.l.b16 %v474
    %v514 = vunpack.c.l.b16 %v475
    %v515 = vunpack.c.l.b16 %v476
    %v516 = vunpack.c.l.b16 %v477
    %v517 = vunpack.c.l.b16 %v478
    %v518 = vpack.c.b16 %v503, %v502
    %v519 = vpack.c.b16 %v505, %v504
    %v520 = vpack.c.b16 %v507, %v506
    %v521 = vpack.c.b16 %v509, %v508
    %v522 = vpack.c.b16 %v511, %v510
    %v523 = vpack.c.b16 %v513, %v512
    %v524 = vpack.c.b16 %v515, %v514
    %v525 = vpack.c.b16 %v517, %v516
    %534 = vmatprep.subr.bf16.mxu0 0
    %535 = vmatpush1.bf16.msra.mxu0 %v518
    %536 = vmatprep.subr.bf16.mxu0 0
    %537 = vmatpush1.bf16.msra.mxu0 %v519
    %538 = vmatprep.subr.bf16.mxu0 0
    %539 = vmatpush1.bf16.msra.mxu0 %v520
    %540 = vmatprep.subr.bf16.mxu0 0
    %541 = vmatpush1.bf16.msra.mxu0 %v521
    %542 = vmatprep.subr.bf16.mxu0 0
    %543 = vmatpush1.bf16.msra.mxu0 %v522
    %544 = vmatprep.subr.bf16.mxu0 0
    %545 = vmatpush1.bf16.msra.mxu0 %v523
    %546 = vmatprep.subr.bf16.mxu0 0
    %547 = vmatpush1.bf16.msra.mxu0 %v524
    %548 = vmatprep.subr.bf16.mxu0 0
    %549 = vmatpush1.bf16.msra.mxu0 %v525
    %550 = vmatprep.subr.bf16.mxu0 0
    %551 = vmatpush1.bf16.msra.mxu0 0
    %552 = vmatprep.subr.bf16.mxu0 0
    %553 = vmatpush1.bf16.msra.mxu0 0
    %554 = vmatprep.subr.bf16.mxu0 0
    %555 = vmatpush1.bf16.msra.mxu0 0
    %556 = vmatprep.subr.bf16.mxu0 0
    %557 = vmatpush1.bf16.msra.mxu0 0
    %558 = vmatprep.subr.bf16.mxu0 0
    %559 = vmatpush1.bf16.msra.mxu0 0
    %560 = vmatprep.subr.bf16.mxu0 0
    %561 = vmatpush1.bf16.msra.mxu0 0
    %562 = vmatprep.subr.bf16.mxu0 0
    %563 = vmatpush1.bf16.msra.mxu0 0
    %564 = vmatprep.subr.bf16.mxu0 0
    %565 = vmatpush1.bf16.msra.mxu0 0
    %566 = vmatprep.mubr.bf16.mxu0 0
    %567 = vmatmul.mubr.bf16.gmra.mrb[0].mxu0 %v462
    %v568 = vpop.f32.mrb[0].mxu0
    %v569 = vadd.f32 %v484, %v568
    %v570 = vpop.f32.mrb[0].mxu0
    %v571 = vpop.f32.mrb[0].mxu0
    %v572 = vpop.f32.mrb[0].mxu0
    %573 = vdwg.mxu0
    %574 = vst [vmem:[#allocation2] sm:$0x3] %v569
    // Predicated region
    $region30: #{net_forward.5} parent=1 // pred_check
      _
    $region31: #{net_forward.5} parent=1 // pred_check_branch
      %576 = sbr.rel (0) target = $region33
    $region32: #{net_forward.5} parent=1 // pred_region
      %s578 = ssub.s32 32, 32
      %579 = vsyncadd [#allocation3], %s578
      %s581 = sshll.u32 [#allocation2], 4
      %s582 = int_to_ptr.vmem [resolvable:$true] %s581
      %584 = dma.vmem_to_hbm [thread:$0]  %s582, 32, %s7, [#allocation3]
    $region33: #{net_forward.5} parent=1 // pred_fallthru
      _
    // Predicated region
    $region34: #{net_forward.5} parent=1 // pred_check
      _
    $region35: #{net_forward.5} parent=1 // pred_check_branch
      %586 = sbr.rel (0) target = $region37
    $region36: #{net_forward.5} parent=1 // pred_region
      %587 = dma.done [#allocation3], 32
    $region37: #{net_forward.5} parent=1 // pred_fallthru
      _
    %588 = vsyncpa [#allocation3], 1

</llo_original>
